<compile_context>
chip_gen: v7x
topology: tpu7x:2x2x1
jax: 0.10.0
libtpu: 0.0.40
codegen_flags: <defaults>
</compile_context>

<pallas_src>
import functools

import numpy as np

import jax
import jax.numpy as jnp
from jax.experimental import pallas as pl
from jax.experimental.pallas import tpu as pltpu


N_CLASSES = 3
C_PAD = 128           # lane-dense channel padding for all weights/activations
_VMEM = pl.BlockSpec(memory_space=pltpu.MemorySpace.VMEM)


# ---------------------------------------------------------------------------
# Fused Pallas kernel
# ---------------------------------------------------------------------------

def _fused_kernel(p1_ref, w1_ref, b1_ref, s1_ref, t1_ref,
                  sel_ref, w2_ref, b2_ref, s2_ref, t2_ref,
                  wf1_ref, bf1_ref, wf2_ref, bf2_ref, out_ref,
                  *, n_batch, rows_per_sample, valid_rows):
    f32 = jnp.float32
    bf16 = jnp.bfloat16

    # ---- conv1: im2col matmul (MXU, bf16 in / f32 acc) -> ReLU -> BN1 affine.
    h1 = jnp.dot(p1_ref[...], w1_ref[...], preferred_element_type=f32)
    h1 = jnp.maximum(h1 + b1_ref[...], 0.0)          # F.relu(conv1(x))
    h1 = h1 * s1_ref[...] + t1_ref[...]              # bn1(...) (eval affine)
    h1b = h1.astype(bf16)                            # stays in VMEM, no HBM trip

    # ---- conv2: for each of the 9 taps, gather the needed h1 rows with an exact
    #      0/1 selection matmul (spatial stride/padding baked into sel), then
    #      multiply by that tap's (Cin, Cout) weight slab.  Everything is MXU
    #      work on lane-dense 128-wide operands; no strided loads, no reshapes.
    n_taps = sel_ref.shape[0]
    m2 = n_batch * rows_per_sample
    cpad = w2_ref.shape[-1]
    acc = jnp.zeros((m2, cpad), f32)
    for t in range(n_taps):                           # static unroll (9 taps)
        g = jnp.dot(sel_ref[t], h1b, preferred_element_type=f32)   # exact gather
        acc = acc + jnp.dot(g.astype(bf16), w2_ref[t],
                            preferred_element_type=f32)
    y2 = jnp.maximum(acc + b2_ref[...], 0.0)          # F.relu(conv2(x))

    # ---- AdaptiveMaxPool2d(1): global max over output pixels.
    # Padded rows (rows_per_sample > real R) are zeroed; safe since ReLU >= 0.
    y2 = y2.reshape(n_batch, rows_per_sample, cpad)
    row = jax.lax.broadcasted_iota(jnp.int32, y2.shape, 1)
    y2 = jnp.where(row < valid_rows, y2, 0.0)
    pooled = jnp.max(y2, axis=1)                      # (N, 128)

    # ---- BN2 affine applied after the pool: max commutes with the per-channel
    # affine because scale2 = gamma/sqrt(var+eps) > 0 for default gamma=1.
    # TODO(synk): if trained BN gammas can be negative, move this back before the max.
    pooled = pooled * s2_ref[...] + t2_ref[...]

    # ---- fc1 -> ReLU -> fc2 (lane-dense 128 wide; real logits in cols 0:3).
    h = jnp.dot(pooled.astype(bf16), wf1_ref[...], preferred_element_type=f32)
    h = jnp.maximum(h + bf1_ref[...], 0.0)
    out_ref[...] = (jnp.dot(h.astype(bf16), wf2_ref[...],
                            preferred_element_type=f32) + bf2_ref[...])


# ---------------------------------------------------------------------------
# Plain-JAX / numpy glue (data movement & constants only, no compute)
# ---------------------------------------------------------------------------

def _im2col(x_nhwc, kh, kw, stride, pad):
    """conv1 im2col: (N, OH, OW, C*kh*kw), feature order (cin, kh, kw).
    With C_in = 1 this is tiny (16 features/pixel)."""
    n, h, w, c = x_nhwc.shape
    xp = jnp.pad(x_nhwc, ((0, 0), (pad, pad), (pad, pad), (0, 0)))
    oh = (h + 2 * pad - kh) // stride + 1
    ow = (w + 2 * pad - kw) // stride + 1
    cols = []
    for i in range(kh):
        for j in range(kw):
            cols.append(xp[:, i:i + stride * oh:stride,
                           j:j + stride * ow:stride, :])
    p = jnp.stack(cols, axis=-1).reshape(n, oh, ow, c * kh * kw)
    return p, oh, ow


@functools.lru_cache(maxsize=None)
def _build_sel(n, oh1, ow1, oh2, ow2, rp, m1p):
    """0/1 selection matrices: sel[t, (n,oh2,ow2)-row, (n,oh1,ow1)-col] picks the
    h1 row read by conv2 tap t=(i,j) at output pixel (oh2,ow2) (stride 2, pad 1).
    Out-of-bounds (zero-padding) taps simply have an all-zero row."""
    sel = np.zeros((9, n * rp, m1p), np.float32)
    for t in range(9):
        i, j = divmod(t, 3)
        for b in range(n):
            for a in range(oh2):
                for c in range(ow2):
                    ih = 2 * a + i - 1
                    iw = 2 * c + j - 1
                    if 0 <= ih < oh1 and 0 <= iw < ow1:
                        sel[t, b * rp + a * ow2 + c,
                            b * oh1 * ow1 + ih * ow1 + iw] = 1.0
    return sel


def _pad_to(a, shape):
    return jnp.pad(a, [(0, s - d) for d, s in zip(a.shape, shape)])


# ---------------------------------------------------------------------------
# Parameters (deterministic, matching the shapes/inits in __init__)
# ---------------------------------------------------------------------------

def init_params(key):
    ks = jax.random.split(key, 6)
    eps = 1e-5

    # conv1: (16,1,4,4) kaiming fan_out, bias 0 ; conv2: (64,16,3,3) kaiming fan_out, bias 0
    w1 = jax.random.normal(ks[0], (16, 1, 4, 4), jnp.float32) * (2.0 / (16 * 4 * 4)) ** 0.5
    w2 = jax.random.normal(ks[1], (64, 16, 3, 3), jnp.float32) * (2.0 / (64 * 3 * 3)) ** 0.5
    b1 = jnp.zeros((16,), jnp.float32)
    b2 = jnp.zeros((64,), jnp.float32)

    # BatchNorm2d eval-mode affine (gamma=1, beta=0, mean=0, var=1).
    scale1 = jnp.full((16,), 1.0 / (1.0 + eps) ** 0.5, jnp.float32)
    shift1 = jnp.zeros((16,), jnp.float32)
    scale2 = jnp.full((64,), 1.0 / (1.0 + eps) ** 0.5, jnp.float32)
    shift2 = jnp.zeros((64,), jnp.float32)

    # fc1 (64->32), fc2 (32->3): PyTorch default uniform init.
    bnd1 = 1.0 / 64 ** 0.5
    wf1 = jax.random.uniform(ks[2], (64, 32), jnp.float32, -bnd1, bnd1)
    bf1 = jax.random.uniform(ks[3], (32,), jnp.float32, -bnd1, bnd1)
    bnd2 = 1.0 / 32 ** 0.5
    wf2 = jax.random.uniform(ks[4], (32, 3), jnp.float32, -bnd2, bnd2)
    bf2 = jax.random.uniform(ks[5], (3,), jnp.float32, -bnd2, bnd2)

    # Kernel (matmul) forms: lane-padded to 128 with zeros, MXU operands in bf16.
    w1m = _pad_to(w1.reshape(16, 16).T, (16, C_PAD)).astype(jnp.bfloat16)       # (K1=16, 128)
    w2t = _pad_to(jnp.transpose(w2, (2, 3, 1, 0)).reshape(9, 16, 64),
                  (9, C_PAD, C_PAD)).astype(jnp.bfloat16)                        # (9, 128, 128)
    wf1m = _pad_to(wf1, (C_PAD, C_PAD)).astype(jnp.bfloat16)
    wf2m = _pad_to(wf2, (C_PAD, C_PAD)).astype(jnp.bfloat16)

    return dict(
        w1=w1m, b1=_pad_to(b1[None], (1, C_PAD)),
        scale1=_pad_to(scale1[None], (1, C_PAD)), shift1=_pad_to(shift1[None], (1, C_PAD)),
        w2t=w2t, b2=_pad_to(b2[None], (1, C_PAD)),
        scale2=_pad_to(scale2[None], (1, C_PAD)), shift2=_pad_to(shift2[None], (1, C_PAD)),
        wf1=wf1m, bf1=_pad_to(bf1[None], (1, C_PAD)),
        wf2=wf2m, bf2=_pad_to(bf2[None], (1, C_PAD)),
    )


# ---------------------------------------------------------------------------
# Forward pass (NCHW in, (N, 3) logits out)
# ---------------------------------------------------------------------------

@jax.jit
def audio_classifier_forward(x_nchw, params):
    x = jnp.transpose(x_nchw, (0, 2, 3, 1)).astype(jnp.float32)     # -> NHWC
    n = x.shape[0]

    # conv1 im2col in the wrapper (C_in=1 -> only 16 features/pixel, ~KBs);
    # everything downstream (h1, conv2 patches, pooled, fc) stays in VMEM.
    p1, oh1, ow1 = _im2col(x, 4, 4, stride=2, pad=2)
    m1 = n * oh1 * ow1
    m1p = ((m1 + 7) // 8) * 8
    p1 = p1.reshape(m1, -1)
    p1 = jnp.pad(p1, ((0, m1p - m1), (0, 0))).astype(jnp.bfloat16)

    # conv2 output geometry (k=3, s=2, p=1) and sublane-aligned rows/sample.
    oh2 = (oh1 + 2 - 3) // 2 + 1
    ow2 = (ow1 + 2 - 3) // 2 + 1
    r = oh2 * ow2
    rp = ((r + 7) // 8) * 8
    sel = jnp.asarray(_build_sel(n, oh1, ow1, oh2, ow2, rp, m1p), jnp.bfloat16)

    m2 = n * rp
    c = C_PAD
    k1 = p1.shape[1]
    flops = 2 * (m1p * k1 * c + 9 * (m2 * m1p * c + m2 * c * c) + 2 * n * c * c)
    bytes_accessed = (p1.size * 2 + sel.size * 2 + 9 * c * c * 2 + k1 * c * 2
                      + 2 * c * c * 2 + 8 * c * 4 + n * c * 4)

    kernel = functools.partial(_fused_kernel, n_batch=n,
                               rows_per_sample=rp, valid_rows=r)
    out = pl.pallas_call(
        kernel,
        out_shape=jax.ShapeDtypeStruct((n, c), jnp.float32),
        in_specs=[_VMEM] * 14,
        out_specs=_VMEM,
        compiler_params=pltpu.CompilerParams(vmem_limit_bytes=8 * 1024 * 1024),
        cost_estimate=pl.CostEstimate(flops=flops, transcendentals=0,
                                      bytes_accessed=bytes_accessed),
    )(p1, params["w1"], params["b1"], params["scale1"], params["shift1"],
      sel, params["w2t"], params["b2"], params["scale2"], params["shift2"],
      params["wf1"], params["bf1"], params["wf2"], params["bf2"])

    return out[:, :N_CLASSES]


if __name__ == "__main__":
    key = jax.random.PRNGKey(0)
    k_param, k_x = jax.random.split(key)
    params = init_params(k_param)

    # Small spectrogram-like input: batch=2, 1 channel, 16x16 (NCHW like PyTorch).
    x = jax.random.normal(k_x, (2, 1, 16, 16), jnp.float32)

    out = audio_classifier_forward(x, params)
    out = jax.block_until_ready(out)
    assert out.shape == (2, 3) and out.dtype == jnp.float32
    print("KERNEL_OK")
</pallas_src>

<mosaic_0001>
module attributes {stable_mosaic.version = 11 : i64} {
  func.func @_fused_kernel(%arg0: memref<168x16xbf16, #tpu.memory_space<vmem>>, %arg1: memref<16x128xbf16, #tpu.memory_space<vmem>>, %arg2: memref<1x128xf32, #tpu.memory_space<vmem>>, %arg3: memref<1x128xf32, #tpu.memory_space<vmem>>, %arg4: memref<1x128xf32, #tpu.memory_space<vmem>>, %arg5: memref<9x64x168xbf16, #tpu.memory_space<vmem>>, %arg6: memref<9x128x128xbf16, #tpu.memory_space<vmem>>, %arg7: memref<1x128xf32, #tpu.memory_space<vmem>>, %arg8: memref<1x128xf32, #tpu.memory_space<vmem>>, %arg9: memref<1x128xf32, #tpu.memory_space<vmem>>, %arg10: memref<128x128xbf16, #tpu.memory_space<vmem>>, %arg11: memref<1x128xf32, #tpu.memory_space<vmem>>, %arg12: memref<128x128xbf16, #tpu.memory_space<vmem>>, %arg13: memref<1x128xf32, #tpu.memory_space<vmem>>, %arg14: memref<2x128xf32, #tpu.memory_space<vmem>>) attributes {dimension_semantics = [], scalar_prefetch = 0 : i64, scratch_operands = 0 : i64, tpu.core_type = #tpu.core_type<tc>} {
    %c0 = arith.constant 0 : index
    %c0_0 = arith.constant 0 : index
    %0 = vector.load %arg0[%c0, %c0_0] : memref<168x16xbf16, #tpu.memory_space<vmem>>, vector<168x16xbf16>
    %c0_1 = arith.constant 0 : index
    %c0_2 = arith.constant 0 : index
    %1 = vector.load %arg1[%c0_1, %c0_2] : memref<16x128xbf16, #tpu.memory_space<vmem>>, vector<16x128xbf16>
    %cst = arith.constant dense<0.000000e+00> : vector<168x128xf32>
    %2 = tpu.matmul %0, %1, %cst {dimension_numbers = #tpu.dot_dimension_numbers<[1], [0], [0], [1], [0, 0, 1, 1], [], []>} : vector<168x16xbf16>, vector<16x128xbf16>, vector<168x128xf32> -> vector<168x128xf32>
    %c0_3 = arith.constant 0 : index
    %c0_4 = arith.constant 0 : index
    %3 = vector.load %arg2[%c0_3, %c0_4] : memref<1x128xf32, #tpu.memory_space<vmem>>, vector<1x128xf32>
    %4 = vector.broadcast %3 : vector<1x128xf32> to vector<168x128xf32>
    %5 = arith.addf %2, %4 : vector<168x128xf32>
    %cst_5 = arith.constant 0.000000e+00 : f32
    %6 = vector.broadcast %cst_5 : f32 to vector<168x128xf32>
    %7 = arith.maximumf %5, %6 : vector<168x128xf32>
    %c0_6 = arith.constant 0 : index
    %c0_7 = arith.constant 0 : index
    %8 = vector.load %arg3[%c0_6, %c0_7] : memref<1x128xf32, #tpu.memory_space<vmem>>, vector<1x128xf32>
    %9 = vector.broadcast %8 : vector<1x128xf32> to vector<168x128xf32>
    %10 = arith.mulf %7, %9 : vector<168x128xf32>
    %c0_8 = arith.constant 0 : index
    %c0_9 = arith.constant 0 : index
    %11 = vector.load %arg4[%c0_8, %c0_9] : memref<1x128xf32, #tpu.memory_space<vmem>>, vector<1x128xf32>
    %12 = vector.broadcast %11 : vector<1x128xf32> to vector<168x128xf32>
    %13 = arith.addf %10, %12 : vector<168x128xf32>
    %14 = arith.truncf %13 : vector<168x128xf32> to vector<168x128xbf16>
    %cst_10 = arith.constant 0.000000e+00 : f32
    %15 = vector.broadcast %cst_10 : f32 to vector<64x128xf32>
    %c0_11 = arith.constant 0 : index
    %c0_12 = arith.constant 0 : index
    %c0_13 = arith.constant 0 : index
    %16 = vector.load %arg5[%c0_11, %c0_12, %c0_13] : memref<9x64x168xbf16, #tpu.memory_space<vmem>>, vector<1x64x168xbf16>
    %17 = vector.shape_cast %16 : vector<1x64x168xbf16> to vector<64x168xbf16>
    %cst_14 = arith.constant dense<0.000000e+00> : vector<64x128xf32>
    %18 = tpu.matmul %17, %14, %cst_14 {dimension_numbers = #tpu.dot_dimension_numbers<[1], [0], [0], [1], [0, 0, 1, 1], [], []>} : vector<64x168xbf16>, vector<168x128xbf16>, vector<64x128xf32> -> vector<64x128xf32>
    %19 = arith.truncf %18 : vector<64x128xf32> to vector<64x128xbf16>
    %c0_15 = arith.constant 0 : index
    %c0_16 = arith.constant 0 : index
    %c0_17 = arith.constant 0 : index
    %20 = vector.load %arg6[%c0_15, %c0_16, %c0_17] : memref<9x128x128xbf16, #tpu.memory_space<vmem>>, vector<1x128x128xbf16>
    %21 = vector.shape_cast %20 : vector<1x128x128xbf16> to vector<128x128xbf16>
    %cst_18 = arith.constant dense<0.000000e+00> : vector<64x128xf32>
    %22 = tpu.matmul %19, %21, %cst_18 {dimension_numbers = #tpu.dot_dimension_numbers<[1], [0], [0], [1], [0, 0, 1, 1], [], []>} : vector<64x128xbf16>, vector<128x128xbf16>, vector<64x128xf32> -> vector<64x128xf32>
    %23 = arith.addf %15, %22 : vector<64x128xf32>
    %c1 = arith.constant 1 : index
    %c0_19 = arith.constant 0 : index
    %c0_20 = arith.constant 0 : index
    %24 = vector.load %arg5[%c1, %c0_19, %c0_20] : memref<9x64x168xbf16, #tpu.memory_space<vmem>>, vector<1x64x168xbf16>
    %25 = vector.shape_cast %24 : vector<1x64x168xbf16> to vector<64x168xbf16>
    %cst_21 = arith.constant dense<0.000000e+00> : vector<64x128xf32>
    %26 = tpu.matmul %25, %14, %cst_21 {dimension_numbers = #tpu.dot_dimension_numbers<[1], [0], [0], [1], [0, 0, 1, 1], [], []>} : vector<64x168xbf16>, vector<168x128xbf16>, vector<64x128xf32> -> vector<64x128xf32>
    %27 = arith.truncf %26 : vector<64x128xf32> to vector<64x128xbf16>
    %c1_22 = arith.constant 1 : index
    %c0_23 = arith.constant 0 : index
    %c0_24 = arith.constant 0 : index
    %28 = vector.load %arg6[%c1_22, %c0_23, %c0_24] : memref<9x128x128xbf16, #tpu.memory_space<vmem>>, vector<1x128x128xbf16>
    %29 = vector.shape_cast %28 : vector<1x128x128xbf16> to vector<128x128xbf16>
    %cst_25 = arith.constant dense<0.000000e+00> : vector<64x128xf32>
    %30 = tpu.matmul %27, %29, %cst_25 {dimension_numbers = #tpu.dot_dimension_numbers<[1], [0], [0], [1], [0, 0, 1, 1], [], []>} : vector<64x128xbf16>, vector<128x128xbf16>, vector<64x128xf32> -> vector<64x128xf32>
    %31 = arith.addf %23, %30 : vector<64x128xf32>
    %c2 = arith.constant 2 : index
    %c0_26 = arith.constant 0 : index
    %c0_27 = arith.constant 0 : index
    %32 = vector.load %arg5[%c2, %c0_26, %c0_27] : memref<9x64x168xbf16, #tpu.memory_space<vmem>>, vector<1x64x168xbf16>
    %33 = vector.shape_cast %32 : vector<1x64x168xbf16> to vector<64x168xbf16>
    %cst_28 = arith.constant dense<0.000000e+00> : vector<64x128xf32>
    %34 = tpu.matmul %33, %14, %cst_28 {dimension_numbers = #tpu.dot_dimension_numbers<[1], [0], [0], [1], [0, 0, 1, 1], [], []>} : vector<64x168xbf16>, vector<168x128xbf16>, vector<64x128xf32> -> vector<64x128xf32>
    %35 = arith.truncf %34 : vector<64x128xf32> to vector<64x128xbf16>
    %c2_29 = arith.constant 2 : index
    %c0_30 = arith.constant 0 : index
    %c0_31 = arith.constant 0 : index
    %36 = vector.load %arg6[%c2_29, %c0_30, %c0_31] : memref<9x128x128xbf16, #tpu.memory_space<vmem>>, vector<1x128x128xbf16>
    %37 = vector.shape_cast %36 : vector<1x128x128xbf16> to vector<128x128xbf16>
    %cst_32 = arith.constant dense<0.000000e+00> : vector<64x128xf32>
    %38 = tpu.matmul %35, %37, %cst_32 {dimension_numbers = #tpu.dot_dimension_numbers<[1], [0], [0], [1], [0, 0, 1, 1], [], []>} : vector<64x128xbf16>, vector<128x128xbf16>, vector<64x128xf32> -> vector<64x128xf32>
    %39 = arith.addf %31, %38 : vector<64x128xf32>
    %c3 = arith.constant 3 : index
    %c0_33 = arith.constant 0 : index
    %c0_34 = arith.constant 0 : index
    %40 = vector.load %arg5[%c3, %c0_33, %c0_34] : memref<9x64x168xbf16, #tpu.memory_space<vmem>>, vector<1x64x168xbf16>
    %41 = vector.shape_cast %40 : vector<1x64x168xbf16> to vector<64x168xbf16>
    %cst_35 = arith.constant dense<0.000000e+00> : vector<64x128xf32>
    %42 = tpu.matmul %41, %14, %cst_35 {dimension_numbers = #tpu.dot_dimension_numbers<[1], [0], [0], [1], [0, 0, 1, 1], [], []>} : vector<64x168xbf16>, vector<168x128xbf16>, vector<64x128xf32> -> vector<64x128xf32>
    %43 = arith.truncf %42 : vector<64x128xf32> to vector<64x128xbf16>
    %c3_36 = arith.constant 3 : index
    %c0_37 = arith.constant 0 : index
    %c0_38 = arith.constant 0 : index
    %44 = vector.load %arg6[%c3_36, %c0_37, %c0_38] : memref<9x128x128xbf16, #tpu.memory_space<vmem>>, vector<1x128x128xbf16>
    %45 = vector.shape_cast %44 : vector<1x128x128xbf16> to vector<128x128xbf16>
    %cst_39 = arith.constant dense<0.000000e+00> : vector<64x128xf32>
    %46 = tpu.matmul %43, %45, %cst_39 {dimension_numbers = #tpu.dot_dimension_numbers<[1], [0], [0], [1], [0, 0, 1, 1], [], []>} : vector<64x128xbf16>, vector<128x128xbf16>, vector<64x128xf32> -> vector<64x128xf32>
    %47 = arith.addf %39, %46 : vector<64x128xf32>
    %c4 = arith.constant 4 : index
    %c0_40 = arith.constant 0 : index
    %c0_41 = arith.constant 0 : index
    %48 = vector.load %arg5[%c4, %c0_40, %c0_41] : memref<9x64x168xbf16, #tpu.memory_space<vmem>>, vector<1x64x168xbf16>
    %49 = vector.shape_cast %48 : vector<1x64x168xbf16> to vector<64x168xbf16>
    %cst_42 = arith.constant dense<0.000000e+00> : vector<64x128xf32>
    %50 = tpu.matmul %49, %14, %cst_42 {dimension_numbers = #tpu.dot_dimension_numbers<[1], [0], [0], [1], [0, 0, 1, 1], [], []>} : vector<64x168xbf16>, vector<168x128xbf16>, vector<64x128xf32> -> vector<64x128xf32>
    %51 = arith.truncf %50 : vector<64x128xf32> to vector<64x128xbf16>
    %c4_43 = arith.constant 4 : index
    %c0_44 = arith.constant 0 : index
    %c0_45 = arith.constant 0 : index
    %52 = vector.load %arg6[%c4_43, %c0_44, %c0_45] : memref<9x128x128xbf16, #tpu.memory_space<vmem>>, vector<1x128x128xbf16>
    %53 = vector.shape_cast %52 : vector<1x128x128xbf16> to vector<128x128xbf16>
    %cst_46 = arith.constant dense<0.000000e+00> : vector<64x128xf32>
    %54 = tpu.matmul %51, %53, %cst_46 {dimension_numbers = #tpu.dot_dimension_numbers<[1], [0], [0], [1], [0, 0, 1, 1], [], []>} : vector<64x128xbf16>, vector<128x128xbf16>, vector<64x128xf32> -> vector<64x128xf32>
    %55 = arith.addf %47, %54 : vector<64x128xf32>
    %c5 = arith.constant 5 : index
    %c0_47 = arith.constant 0 : index
    %c0_48 = arith.constant 0 : index
    %56 = vector.load %arg5[%c5, %c0_47, %c0_48] : memref<9x64x168xbf16, #tpu.memory_space<vmem>>, vector<1x64x168xbf16>
    %57 = vector.shape_cast %56 : vector<1x64x168xbf16> to vector<64x168xbf16>
    %cst_49 = arith.constant dense<0.000000e+00> : vector<64x128xf32>
    %58 = tpu.matmul %57, %14, %cst_49 {dimension_numbers = #tpu.dot_dimension_numbers<[1], [0], [0], [1], [0, 0, 1, 1], [], []>} : vector<64x168xbf16>, vector<168x128xbf16>, vector<64x128xf32> -> vector<64x128xf32>
    %59 = arith.truncf %58 : vector<64x128xf32> to vector<64x128xbf16>
    %c5_50 = arith.constant 5 : index
    %c0_51 = arith.constant 0 : index
    %c0_52 = arith.constant 0 : index
    %60 = vector.load %arg6[%c5_50, %c0_51, %c0_52] : memref<9x128x128xbf16, #tpu.memory_space<vmem>>, vector<1x128x128xbf16>
    %61 = vector.shape_cast %60 : vector<1x128x128xbf16> to vector<128x128xbf16>
    %cst_53 = arith.constant dense<0.000000e+00> : vector<64x128xf32>
    %62 = tpu.matmul %59, %61, %cst_53 {dimension_numbers = #tpu.dot_dimension_numbers<[1], [0], [0], [1], [0, 0, 1, 1], [], []>} : vector<64x128xbf16>, vector<128x128xbf16>, vector<64x128xf32> -> vector<64x128xf32>
    %63 = arith.addf %55, %62 : vector<64x128xf32>
    %c6 = arith.constant 6 : index
    %c0_54 = arith.constant 0 : index
    %c0_55 = arith.constant 0 : index
    %64 = vector.load %arg5[%c6, %c0_54, %c0_55] : memref<9x64x168xbf16, #tpu.memory_space<vmem>>, vector<1x64x168xbf16>
    %65 = vector.shape_cast %64 : vector<1x64x168xbf16> to vector<64x168xbf16>
    %cst_56 = arith.constant dense<0.000000e+00> : vector<64x128xf32>
    %66 = tpu.matmul %65, %14, %cst_56 {dimension_numbers = #tpu.dot_dimension_numbers<[1], [0], [0], [1], [0, 0, 1, 1], [], []>} : vector<64x168xbf16>, vector<168x128xbf16>, vector<64x128xf32> -> vector<64x128xf32>
    %67 = arith.truncf %66 : vector<64x128xf32> to vector<64x128xbf16>
    %c6_57 = arith.constant 6 : index
    %c0_58 = arith.constant 0 : index
    %c0_59 = arith.constant 0 : index
    %68 = vector.load %arg6[%c6_57, %c0_58, %c0_59] : memref<9x128x128xbf16, #tpu.memory_space<vmem>>, vector<1x128x128xbf16>
    %69 = vector.shape_cast %68 : vector<1x128x128xbf16> to vector<128x128xbf16>
    %cst_60 = arith.constant dense<0.000000e+00> : vector<64x128xf32>
    %70 = tpu.matmul %67, %69, %cst_60 {dimension_numbers = #tpu.dot_dimension_numbers<[1], [0], [0], [1], [0, 0, 1, 1], [], []>} : vector<64x128xbf16>, vector<128x128xbf16>, vector<64x128xf32> -> vector<64x128xf32>
    %71 = arith.addf %63, %70 : vector<64x128xf32>
    %c7 = arith.constant 7 : index
    %c0_61 = arith.constant 0 : index
    %c0_62 = arith.constant 0 : index
    %72 = vector.load %arg5[%c7, %c0_61, %c0_62] : memref<9x64x168xbf16, #tpu.memory_space<vmem>>, vector<1x64x168xbf16>
    %73 = vector.shape_cast %72 : vector<1x64x168xbf16> to vector<64x168xbf16>
    %cst_63 = arith.constant dense<0.000000e+00> : vector<64x128xf32>
    %74 = tpu.matmul %73, %14, %cst_63 {dimension_numbers = #tpu.dot_dimension_numbers<[1], [0], [0], [1], [0, 0, 1, 1], [], []>} : vector<64x168xbf16>, vector<168x128xbf16>, vector<64x128xf32> -> vector<64x128xf32>
    %75 = arith.truncf %74 : vector<64x128xf32> to vector<64x128xbf16>
    %c7_64 = arith.constant 7 : index
    %c0_65 = arith.constant 0 : index
    %c0_66 = arith.constant 0 : index
    %76 = vector.load %arg6[%c7_64, %c0_65, %c0_66] : memref<9x128x128xbf16, #tpu.memory_space<vmem>>, vector<1x128x128xbf16>
    %77 = vector.shape_cast %76 : vector<1x128x128xbf16> to vector<128x128xbf16>
    %cst_67 = arith.constant dense<0.000000e+00> : vector<64x128xf32>
    %78 = tpu.matmul %75, %77, %cst_67 {dimension_numbers = #tpu.dot_dimension_numbers<[1], [0], [0], [1], [0, 0, 1, 1], [], []>} : vector<64x128xbf16>, vector<128x128xbf16>, vector<64x128xf32> -> vector<64x128xf32>
    %79 = arith.addf %71, %78 : vector<64x128xf32>
    %c8 = arith.constant 8 : index
    %c0_68 = arith.constant 0 : index
    %c0_69 = arith.constant 0 : index
    %80 = vector.load %arg5[%c8, %c0_68, %c0_69] : memref<9x64x168xbf16, #tpu.memory_space<vmem>>, vector<1x64x168xbf16>
    %81 = vector.shape_cast %80 : vector<1x64x168xbf16> to vector<64x168xbf16>
    %cst_70 = arith.constant dense<0.000000e+00> : vector<64x128xf32>
    %82 = tpu.matmul %81, %14, %cst_70 {dimension_numbers = #tpu.dot_dimension_numbers<[1], [0], [0], [1], [0, 0, 1, 1], [], []>} : vector<64x168xbf16>, vector<168x128xbf16>, vector<64x128xf32> -> vector<64x128xf32>
    %83 = arith.truncf %82 : vector<64x128xf32> to vector<64x128xbf16>
    %c8_71 = arith.constant 8 : index
    %c0_72 = arith.constant 0 : index
    %c0_73 = arith.constant 0 : index
    %84 = vector.load %arg6[%c8_71, %c0_72, %c0_73] : memref<9x128x128xbf16, #tpu.memory_space<vmem>>, vector<1x128x128xbf16>
    %85 = vector.shape_cast %84 : vector<1x128x128xbf16> to vector<128x128xbf16>
    %cst_74 = arith.constant dense<0.000000e+00> : vector<64x128xf32>
    %86 = tpu.matmul %83, %85, %cst_74 {dimension_numbers = #tpu.dot_dimension_numbers<[1], [0], [0], [1], [0, 0, 1, 1], [], []>} : vector<64x128xbf16>, vector<128x128xbf16>, vector<64x128xf32> -> vector<64x128xf32>
    %87 = arith.addf %79, %86 : vector<64x128xf32>
    %c0_75 = arith.constant 0 : index
    %c0_76 = arith.constant 0 : index
    %88 = vector.load %arg7[%c0_75, %c0_76] : memref<1x128xf32, #tpu.memory_space<vmem>>, vector<1x128xf32>
    %89 = vector.broadcast %88 : vector<1x128xf32> to vector<64x128xf32>
    %90 = arith.addf %87, %89 : vector<64x128xf32>
    %cst_77 = arith.constant 0.000000e+00 : f32
    %91 = vector.broadcast %cst_77 : f32 to vector<64x128xf32>
    %92 = arith.maximumf %90, %91 : vector<64x128xf32>
    %93 = vector.shape_cast %92 : vector<64x128xf32> to vector<2x32x128xf32>
    %94 = tpu.iota {dimensions = array<i32: 1>} : vector<2x32x128xi32>
    %c25_i32 = arith.constant 25 : i32
    %95 = vector.broadcast %c25_i32 : i32 to vector<2x32x128xi32>
    %96 = arith.cmpi slt, %94, %95 : vector<2x32x128xi32>
    %cst_78 = arith.constant 0.000000e+00 : f32
    %97 = vector.broadcast %cst_78 : f32 to vector<2x32x128xf32>
    %98 = arith.select %96, %93, %97 : vector<2x32x128xi1>, vector<2x32x128xf32>
    %cst_79 = arith.constant dense<0xFF800000> : vector<2x128xf32>
    %99 = vector.multi_reduction <maximumf>, %98, %cst_79 [1] : vector<2x32x128xf32> to vector<2x128xf32>
    %c0_80 = arith.constant 0 : index
    %c0_81 = arith.constant 0 : index
    %100 = vector.load %arg8[%c0_80, %c0_81] : memref<1x128xf32, #tpu.memory_space<vmem>>, vector<1x128xf32>
    %101 = vector.broadcast %100 : vector<1x128xf32> to vector<2x128xf32>
    %102 = arith.mulf %99, %101 : vector<2x128xf32>
    %c0_82 = arith.constant 0 : index
    %c0_83 = arith.constant 0 : index
    %103 = vector.load %arg9[%c0_82, %c0_83] : memref<1x128xf32, #tpu.memory_space<vmem>>, vector<1x128xf32>
    %104 = vector.broadcast %103 : vector<1x128xf32> to vector<2x128xf32>
    %105 = arith.addf %102, %104 : vector<2x128xf32>
    %106 = arith.truncf %105 : vector<2x128xf32> to vector<2x128xbf16>
    %c0_84 = arith.constant 0 : index
    %c0_85 = arith.constant 0 : index
    %107 = vector.load %arg10[%c0_84, %c0_85] : memref<128x128xbf16, #tpu.memory_space<vmem>>, vector<128x128xbf16>
    %cst_86 = arith.constant dense<0.000000e+00> : vector<2x128xf32>
    %108 = tpu.matmul %106, %107, %cst_86 {dimension_numbers = #tpu.dot_dimension_numbers<[1], [0], [0], [1], [0, 0, 1, 1], [], []>} : vector<2x128xbf16>, vector<128x128xbf16>, vector<2x128xf32> -> vector<2x128xf32>
    %c0_87 = arith.constant 0 : index
    %c0_88 = arith.constant 0 : index
    %109 = vector.load %arg11[%c0_87, %c0_88] : memref<1x128xf32, #tpu.memory_space<vmem>>, vector<1x128xf32>
    %110 = vector.broadcast %109 : vector<1x128xf32> to vector<2x128xf32>
    %111 = arith.addf %108, %110 : vector<2x128xf32>
    %cst_89 = arith.constant 0.000000e+00 : f32
    %112 = vector.broadcast %cst_89 : f32 to vector<2x128xf32>
    %113 = arith.maximumf %111, %112 : vector<2x128xf32>
    %114 = arith.truncf %113 : vector<2x128xf32> to vector<2x128xbf16>
    %c0_90 = arith.constant 0 : index
    %c0_91 = arith.constant 0 : index
    %115 = vector.load %arg12[%c0_90, %c0_91] : memref<128x128xbf16, #tpu.memory_space<vmem>>, vector<128x128xbf16>
    %cst_92 = arith.constant dense<0.000000e+00> : vector<2x128xf32>
    %116 = tpu.matmul %114, %115, %cst_92 {dimension_numbers = #tpu.dot_dimension_numbers<[1], [0], [0], [1], [0, 0, 1, 1], [], []>} : vector<2x128xbf16>, vector<128x128xbf16>, vector<2x128xf32> -> vector<2x128xf32>
    %c0_93 = arith.constant 0 : index
    %c0_94 = arith.constant 0 : index
    %117 = vector.load %arg13[%c0_93, %c0_94] : memref<1x128xf32, #tpu.memory_space<vmem>>, vector<1x128xf32>
    %118 = vector.broadcast %117 : vector<1x128xf32> to vector<2x128xf32>
    %119 = arith.addf %116, %118 : vector<2x128xf32>
    %c0_95 = arith.constant 0 : index
    %c0_96 = arith.constant 0 : index
    %120 = vector.load %arg14[%c0_95, %c0_96] : memref<2x128xf32, #tpu.memory_space<vmem>>, vector<2x128xf32>
    tpu.vector_store %arg14[%c0_95, %c0_96], %119 {strides = array<i32>} : memref<2x128xf32, #tpu.memory_space<vmem>>, vector<2x128xf32>,
    return
  }
}

</mosaic_0001>

<llo_original>
// kernel: audio_classifier_forward.1
$region0: #{audio_classifier_forward.1}
  #allocation0 [shape = 'u32[]', space=smem, size = 0x4, offset = 0x4, fixed_abs, tag = 'smem constant byte address 0x4 - core index']
  #allocation1 [shape = 'u32[144,128]{1,0:T(1,128)}', space=vmem, size = 0x12000, scoped, tag = 'internal scratch']
  %s0 = inlined_call_operand.vmem [shape: bf16[168,16], index: 0, kind: input, shape index: {}]
  %s1 = inlined_call_operand.vmem [shape: bf16[16,128], index: 1, kind: input, shape index: {}]
  %s2 = inlined_call_operand.vmem [shape: f32[1,128], index: 2, kind: input, shape index: {}]
  %s3 = inlined_call_operand.vmem [shape: f32[1,128], index: 3, kind: input, shape index: {}]
  %s4 = inlined_call_operand.vmem [shape: f32[1,128], index: 4, kind: input, shape index: {}]
  %s5 = inlined_call_operand.vmem [shape: bf16[9,64,168], index: 5, kind: input, shape index: {}]
  %s6 = inlined_call_operand.vmem [shape: bf16[9,128,128], index: 6, kind: input, shape index: {}]
  %s7 = inlined_call_operand.vmem [shape: f32[1,128], index: 7, kind: input, shape index: {}]
  %s8 = inlined_call_operand.vmem [shape: f32[1,128], index: 8, kind: input, shape index: {}]
  %s9 = inlined_call_operand.vmem [shape: f32[1,128], index: 9, kind: input, shape index: {}]
  %s10 = inlined_call_operand.vmem [shape: bf16[128,128], index: 10, kind: input, shape index: {}]
  %s11 = inlined_call_operand.vmem [shape: f32[1,128], index: 11, kind: input, shape index: {}]
  %s12 = inlined_call_operand.vmem [shape: bf16[128,128], index: 12, kind: input, shape index: {}]
  %s13 = inlined_call_operand.vmem [shape: f32[1,128], index: 13, kind: input, shape index: {}]
  %s14 = inlined_call_operand.hbm [shape: f32[2,128], index: 14, kind: output, shape index: {}]
  %s15 = sld [smem:[#allocation0]]
  $region66: #{audio_classifier_forward.1} parent=0
    _
  %s17 = ssub.s32 1, %s15
  %s18 = scalar_select 0, %s17, %s15
  $region1: #{audio_classifier_forward.1} parent=0
    #allocation2 [shape = 'u8[1024]{0}', space=vmem, size = 0x400, scoped, tag = 'output window, operand 0, single buffered']
    #allocation3 [shape = 's32[1]{0}', space=sflag, size = 0x4, scoped, tag = 'scoped memory for audio_classifier_forward.1']
    %19 = vsyncpa [#allocation3], 0
    // Predicated region
    $region2: #{audio_classifier_forward.1} parent=1 // pred_check
      _
    $region3: #{audio_classifier_forward.1} parent=1 // pred_check_branch
      %21 = sbr.rel (0) target = $region5
    $region4: #{audio_classifier_forward.1} parent=1 // pred_region
      _
    $region5: #{audio_classifier_forward.1} parent=1 // pred_fallthru
      _
    // Predicated region
    $region6: #{audio_classifier_forward.1} parent=1 // pred_check
      _
    $region7: #{audio_classifier_forward.1} parent=1 // pred_check_branch
      %23 = sbr.rel (0) target = $region9
    $region8: #{audio_classifier_forward.1} parent=1 // pred_region
      _
    $region9: #{audio_classifier_forward.1} parent=1 // pred_fallthru
      _
    // Predicated region
    $region10: #{audio_classifier_forward.1} parent=1 // pred_check
      _
    $region11: #{audio_classifier_forward.1} parent=1 // pred_check_branch
      %25 = sbr.rel (0) target = $region13
    $region12: #{audio_classifier_forward.1} parent=1 // pred_region
      _
    $region13: #{audio_classifier_forward.1} parent=1 // pred_fallthru
      _
    // Predicated region
    $region14: #{audio_classifier_forward.1} parent=1 // pred_check
      _
    $region15: #{audio_classifier_forward.1} parent=1 // pred_check_branch
      %27 = sbr.rel (0) target = $region17
    $region16: #{audio_classifier_forward.1} parent=1 // pred_region
      _
    $region17: #{audio_classifier_forward.1} parent=1 // pred_fallthru
      _
    // Predicated region
    $region18: #{audio_classifier_forward.1} parent=1 // pred_check
      _
    $region19: #{audio_classifier_forward.1} parent=1 // pred_check_branch
      %29 = sbr.rel (0) target = $region21
    $region20: #{audio_classifier_forward.1} parent=1 // pred_region
      _
    $region21: #{audio_classifier_forward.1} parent=1 // pred_fallthru
      _
    // Predicated region
    $region22: #{audio_classifier_forward.1} parent=1 // pred_check
      _
    $region23: #{audio_classifier_forward.1} parent=1 // pred_check_branch
      %31 = sbr.rel (0) target = $region25
    $region24: #{audio_classifier_forward.1} parent=1 // pred_region
      _
    $region25: #{audio_classifier_forward.1} parent=1 // pred_fallthru
      _
    // Predicated region
    $region26: #{audio_classifier_forward.1} parent=1 // pred_check
      _
    $region27: #{audio_classifier_forward.1} parent=1 // pred_check_branch
      %33 = sbr.rel (0) target = $region29
    $region28: #{audio_classifier_forward.1} parent=1 // pred_region
      _
    $region29: #{audio_classifier_forward.1} parent=1 // pred_fallthru
      _
    // Predicated region
    $region30: #{audio_classifier_forward.1} parent=1 // pred_check
      _
    $region31: #{audio_classifier_forward.1} parent=1 // pred_check_branch
      %35 = sbr.rel (0) target = $region33
    $region32: #{audio_classifier_forward.1} parent=1 // pred_region
      _
    $region33: #{audio_classifier_forward.1} parent=1 // pred_fallthru
      _
    // Predicated region
    $region34: #{audio_classifier_forward.1} parent=1 // pred_check
      _
    $region35: #{audio_classifier_forward.1} parent=1 // pred_check_branch
      %37 = sbr.rel (0) target = $region37
    $region36: #{audio_classifier_forward.1} parent=1 // pred_region
      _
    $region37: #{audio_classifier_forward.1} parent=1 // pred_fallthru
      _
    // Predicated region
    $region38: #{audio_classifier_forward.1} parent=1 // pred_check
      _
    $region39: #{audio_classifier_forward.1} parent=1 // pred_check_branch
      %39 = sbr.rel (0) target = $region41
    $region40: #{audio_classifier_forward.1} parent=1 // pred_region
      _
    $region41: #{audio_classifier_forward.1} parent=1 // pred_fallthru
      _
    // Predicated region
    $region42: #{audio_classifier_forward.1} parent=1 // pred_check
      _
    $region43: #{audio_classifier_forward.1} parent=1 // pred_check_branch
      %41 = sbr.rel (0) target = $region45
    $region44: #{audio_classifier_forward.1} parent=1 // pred_region
      _
    $region45: #{audio_classifier_forward.1} parent=1 // pred_fallthru
      _
    // Predicated region
    $region46: #{audio_classifier_forward.1} parent=1 // pred_check
      _
    $region47: #{audio_classifier_forward.1} parent=1 // pred_check_branch
      %43 = sbr.rel (0) target = $region49
    $region48: #{audio_classifier_forward.1} parent=1 // pred_region
      _
    $region49: #{audio_classifier_forward.1} parent=1 // pred_fallthru
      _
    // Predicated region
    $region50: #{audio_classifier_forward.1} parent=1 // pred_check
      _
    $region51: #{audio_classifier_forward.1} parent=1 // pred_check_branch
      %45 = sbr.rel (0) target = $region53
    $region52: #{audio_classifier_forward.1} parent=1 // pred_region
      _
    $region53: #{audio_classifier_forward.1} parent=1 // pred_fallthru
      _
    // Predicated region
    $region54: #{audio_classifier_forward.1} parent=1 // pred_check
      _
    $region55: #{audio_classifier_forward.1} parent=1 // pred_check_branch
      %47 = sbr.rel (0) target = $region57
    $region56: #{audio_classifier_forward.1} parent=1 // pred_region
      _
    $region57: #{audio_classifier_forward.1} parent=1 // pred_fallthru
      _
    %v49 = vld [vmem:[%s0] sm:$0xf]
    %v50 = vld [vmem:[%s0 + $0x4] sm:$0xf]
    %v51 = vld [vmem:[%s0 + $0x8] sm:$0xf]
    %v52 = vld [vmem:[%s0 + $0xc] sm:$0xf]
    %v53 = vld [vmem:[%s0 + $0x10] sm:$0xf]
    %v54 = vld [vmem:[%s0 + $0x14] sm:$0xf]
    %v55 = vld [vmem:[%s0 + $0x18] sm:$0xf]
    %v56 = vld [vmem:[%s0 + $0x1c] sm:$0xf]
    %v57 = vld [vmem:[%s0 + $0x20] sm:$0xf]
    %v58 = vld [vmem:[%s0 + $0x24] sm:$0xf]
    %v59 = vld [vmem:[%s0 + $0x28] sm:$0xf]
    %v60 = vld [vmem:[%s0 + $0x2c] sm:$0xf]
    %v61 = vld [vmem:[%s0 + $0x30] sm:$0xf]
    %v62 = vld [vmem:[%s0 + $0x34] sm:$0xf]
    %v63 = vld [vmem:[%s0 + $0x38] sm:$0xf]
    %v64 = vld [vmem:[%s0 + $0x3c] sm:$0xf]
    %v65 = vld [vmem:[%s0 + $0x40] sm:$0xf]
    %v66 = vld [vmem:[%s0 + $0x44] sm:$0xf]
    %v67 = vld [vmem:[%s0 + $0x48] sm:$0xf]
    %v68 = vld [vmem:[%s0 + $0x4c] sm:$0xf]
    %v69 = vld [vmem:[%s0 + $0x50] sm:$0xf]
    %v70 = vld [vmem:[%s1] sm:$0xf]
    %v71 = vld [vmem:[%s1 + $0x4] sm:$0xf]
    %v72 = vld [vmem:[%s2] sm:$0x1]
    %v74 = vlaneseq
    %v75 = vshrl.u32 %v74, 7
    %v76 = vsub.s32 0, %v75
    %v77 = vrot.slane %v72, %v76
    %v100 = vunpack.c.l.b16 %v49
    %v101 = vunpack.c.l.b16 %v50
    %v102 = vunpack.c.l.b16 %v51
    %v103 = vunpack.c.l.b16 %v52
    %v104 = vunpack.c.l.b16 %v53
    %v105 = vunpack.c.l.b16 %v54
    %v106 = vunpack.c.l.b16 %v55
    %v107 = vunpack.c.l.b16 %v56
    %v108 = vunpack.c.l.b16 %v57
    %v109 = vunpack.c.l.b16 %v58
    %v110 = vunpack.c.l.b16 %v59
    %v111 = vunpack.c.l.b16 %v60
    %v112 = vunpack.c.l.b16 %v61
    %v113 = vunpack.c.l.b16 %v62
    %v114 = vunpack.c.l.b16 %v63
    %v115 = vunpack.c.l.b16 %v64
    %v116 = vunpack.c.l.b16 %v65
    %v117 = vunpack.c.l.b16 %v66
    %v118 = vunpack.c.l.b16 %v67
    %v119 = vunpack.c.l.b16 %v68
    %v120 = vunpack.c.l.b16 %v69
    %v121 = vpack.c.b16 %v101, %v100
    %v122 = vpack.c.b16 %v103, %v102
    %v123 = vpack.c.b16 %v105, %v104
    %v124 = vpack.c.b16 %v107, %v106
    %v125 = vpack.c.b16 %v109, %v108
    %v126 = vpack.c.b16 %v111, %v110
    %v127 = vpack.c.b16 %v113, %v112
    %v128 = vpack.c.b16 %v115, %v114
    %v129 = vpack.c.b16 %v117, %v116
    %v130 = vpack.c.b16 %v119, %v118
    %v131 = vpack.c.b16 %v120, %v120
    %v134 = vunpack.c.l.b16 %v70
    %v135 = vunpack.c.l.b16 %v71
    %v136 = vpack.c.b16 %v135, %v134
    %vm138 = vcmask 130048
    %v140 = vsel %vm138, %v121, 0
    %v143 = vsel %vm138, %v122, 0
    %v146 = vsel %vm138, %v123, 0
    %v149 = vsel %vm138, %v124, 0
    %v152 = vsel %vm138, %v125, 0
    %v155 = vsel %vm138, %v126, 0
    %v158 = vsel %vm138, %v127, 0
    %v161 = vsel %vm138, %v128, 0
    %v164 = vsel %vm138, %v129, 0
    %v167 = vsel %vm138, %v130, 0
    %v170 = vsel %vm138, %v131, 0
    %172 = vmatprep.subr.bf16.mxu0 0
    %173 = vmatpush1.bf16.msra.mxu0 %v136
    %174 = vmatprep.subr.bf16.mxu0 0
    %175 = vmatpush1.bf16.msra.mxu0 0
    %176 = vmatprep.subr.bf16.mxu0 0
    %177 = vmatpush1.bf16.msra.mxu0 0
    %178 = vmatprep.subr.bf16.mxu0 0
    %179 = vmatpush1.bf16.msra.mxu0 0
    %180 = vmatprep.subr.bf16.mxu0 0
    %181 = vmatpush1.bf16.msra.mxu0 0
    %182 = vmatprep.subr.bf16.mxu0 0
    %183 = vmatpush1.bf16.msra.mxu0 0
    %184 = vmatprep.subr.bf16.mxu0 0
    %185 = vmatpush1.bf16.msra.mxu0 0
    %186 = vmatprep.subr.bf16.mxu0 0
    %187 = vmatpush1.bf16.msra.mxu0 0
    %188 = vmatprep.subr.bf16.mxu0 0
    %189 = vmatpush1.bf16.msra.mxu0 0
    %190 = vmatprep.subr.bf16.mxu0 0
    %191 = vmatpush1.bf16.msra.mxu0 0
    %192 = vmatprep.subr.bf16.mxu0 0
    %193 = vmatpush1.bf16.msra.mxu0 0
    %194 = vmatprep.subr.bf16.mxu0 0
    %195 = vmatpush1.bf16.msra.mxu0 0
    %196 = vmatprep.subr.bf16.mxu0 0
    %197 = vmatpush1.bf16.msra.mxu0 0
    %198 = vmatprep.subr.bf16.mxu0 0
    %199 = vmatpush1.bf16.msra.mxu0 0
    %200 = vmatprep.subr.bf16.mxu0 0
    %201 = vmatpush1.bf16.msra.mxu0 0
    %202 = vmatprep.subr.bf16.mxu0 0
    %203 = vmatpush1.bf16.msra.mxu0 0
    %204 = vmatprep.mubr.bf16.mxu0 0
    %205 = vmatmul.mubr.bf16.gmra.mrb[0].mxu0 %v140
    %v206 = vpop.f32.mrb[0].mxu0
    %v207 = vadd.f32 %v77, %v206
    %v208 = vpop.f32.mrb[0].mxu0
    %v209 = vpop.f32.mrb[0].mxu0
    %v210 = vadd.f32 %v77, %v209
    %v211 = vpop.f32.mrb[0].mxu0
    %212 = vmatprep.mubr.bf16.mxu0 0
    %213 = vmatmul.mubr.bf16.gmra.mrb[0].mxu0 %v143
    %v214 = vpop.f32.mrb[0].mxu0
    %v215 = vadd.f32 %v77, %v214
    %v216 = vpop.f32.mrb[0].mxu0
    %v217 = vpop.f32.mrb[0].mxu0
    %v218 = vadd.f32 %v77, %v217
    %v219 = vpop.f32.mrb[0].mxu0
    %220 = vmatprep.mubr.bf16.mxu0 0
    %221 = vmatmul.mubr.bf16.gmra.mrb[0].mxu0 %v146
    %v222 = vpop.f32.mrb[0].mxu0
    %v223 = vadd.f32 %v77, %v222
    %v224 = vpop.f32.mrb[0].mxu0
    %v225 = vpop.f32.mrb[0].mxu0
    %v226 = vadd.f32 %v77, %v225
    %v227 = vpop.f32.mrb[0].mxu0
    %228 = vmatprep.mubr.bf16.mxu0 0
    %229 = vmatmul.mubr.bf16.gmra.mrb[0].mxu0 %v149
    %v230 = vpop.f32.mrb[0].mxu0
    %v231 = vadd.f32 %v77, %v230
    %v232 = vpop.f32.mrb[0].mxu0
    %v233 = vpop.f32.mrb[0].mxu0
    %v234 = vadd.f32 %v77, %v233
    %v235 = vpop.f32.mrb[0].mxu0
    %236 = vmatprep.mubr.bf16.mxu0 0
    %237 = vmatmul.mubr.bf16.gmra.mrb[0].mxu0 %v152
    %v238 = vpop.f32.mrb[0].mxu0
    %v239 = vadd.f32 %v77, %v238
    %v240 = vpop.f32.mrb[0].mxu0
    %v241 = vpop.f32.mrb[0].mxu0
    %v242 = vadd.f32 %v77, %v241
    %v243 = vpop.f32.mrb[0].mxu0
    %244 = vmatprep.mubr.bf16.mxu0 0
    %245 = vmatmul.mubr.bf16.gmra.mrb[0].mxu0 %v155
    %v246 = vpop.f32.mrb[0].mxu0
    %v247 = vadd.f32 %v77, %v246
    %v248 = vpop.f32.mrb[0].mxu0
    %v249 = vpop.f32.mrb[0].mxu0
    %v250 = vadd.f32 %v77, %v249
    %v251 = vpop.f32.mrb[0].mxu0
    %252 = vmatprep.mubr.bf16.mxu0 0
    %253 = vmatmul.mubr.bf16.gmra.mrb[0].mxu0 %v158
    %v254 = vpop.f32.mrb[0].mxu0
    %v255 = vadd.f32 %v77, %v254
    %v256 = vpop.f32.mrb[0].mxu0
    %v257 = vpop.f32.mrb[0].mxu0
    %v258 = vadd.f32 %v77, %v257
    %v259 = vpop.f32.mrb[0].mxu0
    %260 = vmatprep.mubr.bf16.mxu0 0
    %261 = vmatmul.mubr.bf16.gmra.mrb[0].mxu0 %v161
    %v262 = vpop.f32.mrb[0].mxu0
    %v263 = vadd.f32 %v77, %v262
    %v264 = vpop.f32.mrb[0].mxu0
    %v265 = vpop.f32.mrb[0].mxu0
    %v266 = vadd.f32 %v77, %v265
    %v267 = vpop.f32.mrb[0].mxu0
    %268 = vmatprep.mubr.bf16.mxu0 0
    %269 = vmatmul.mubr.bf16.gmra.mrb[0].mxu0 %v164
    %v270 = vpop.f32.mrb[0].mxu0
    %v271 = vadd.f32 %v77, %v270
    %v272 = vpop.f32.mrb[0].mxu0
    %v273 = vpop.f32.mrb[0].mxu0
    %v274 = vadd.f32 %v77, %v273
    %v275 = vpop.f32.mrb[0].mxu0
    %276 = vmatprep.mubr.bf16.mxu0 0
    %277 = vmatmul.mubr.bf16.gmra.mrb[0].mxu0 %v167
    %v278 = vpop.f32.mrb[0].mxu0
    %v279 = vadd.f32 %v77, %v278
    %v280 = vpop.f32.mrb[0].mxu0
    %v281 = vpop.f32.mrb[0].mxu0
    %v282 = vadd.f32 %v77, %v281
    %v283 = vpop.f32.mrb[0].mxu0
    %284 = vmatprep.mubr.bf16.mxu0 0
    %285 = vmatmul.mubr.bf16.gmra.mrb[0].mxu0 %v170
    %v286 = vpop.f32.mrb[0].mxu0
    %v287 = vadd.f32 %v77, %v286
    %v288 = vpop.f32.mrb[0].mxu0
    %v289 = vpop.f32.mrb[0].mxu0
    %v290 = vpop.f32.mrb[0].mxu0
    %291 = vdwg.mxu0
    %v292 = vmax.f32 %v207, 0.0
    %v293 = vmax.f32 %v210, 0.0
    %v294 = vmax.f32 %v215, 0.0
    %v295 = vmax.f32 %v218, 0.0
    %v296 = vmax.f32 %v223, 0.0
    %v297 = vmax.f32 %v226, 0.0
    %v298 = vmax.f32 %v231, 0.0
    %v299 = vmax.f32 %v234, 0.0
    %v300 = vmax.f32 %v239, 0.0
    %v301 = vmax.f32 %v242, 0.0
    %v302 = vmax.f32 %v247, 0.0
    %v303 = vmax.f32 %v250, 0.0
    %v304 = vmax.f32 %v255, 0.0
    %v305 = vmax.f32 %v258, 0.0
    %v306 = vmax.f32 %v263, 0.0
    %v307 = vmax.f32 %v266, 0.0
    %v308 = vmax.f32 %v271, 0.0
    %v309 = vmax.f32 %v274, 0.0
    %v310 = vmax.f32 %v279, 0.0
    %v311 = vmax.f32 %v282, 0.0
    %v312 = vmax.f32 %v287, 0.0
    %v313 = vld [vmem:[%s3] sm:$0x1]
    %v315 = vlaneseq
    %v316 = vshrl.u32 %v315, 7
    %v317 = vsub.s32 0, %v316
    %v318 = vrot.slane %v313, %v317
    %v320 = vmul.f32 %v292, %v318
    %v321 = vmul.f32 %v293, %v318
    %v322 = vmul.f32 %v294, %v318
    %v323 = vmul.f32 %v295, %v318
    %v324 = vmul.f32 %v296, %v318
    %v325 = vmul.f32 %v297, %v318
    %v326 = vmul.f32 %v298, %v318
    %v327 = vmul.f32 %v299, %v318
    %v328 = vmul.f32 %v300, %v318
    %v329 = vmul.f32 %v301, %v318
    %v330 = vmul.f32 %v302, %v318
    %v331 = vmul.f32 %v303, %v318
    %v332 = vmul.f32 %v304, %v318
    %v333 = vmul.f32 %v305, %v318
    %v334 = vmul.f32 %v306, %v318
    %v335 = vmul.f32 %v307, %v318
    %v336 = vmul.f32 %v308, %v318
    %v337 = vmul.f32 %v309, %v318
    %v338 = vmul.f32 %v310, %v318
    %v339 = vmul.f32 %v311, %v318
    %v340 = vmul.f32 %v312, %v318
    %v341 = vld [vmem:[%s4] sm:$0x1]
    %v343 = vlaneseq
    %v344 = vshrl.u32 %v343, 7
    %v345 = vsub.s32 0, %v344
    %v346 = vrot.slane %v341, %v345
    %v348 = vadd.f32 %v320, %v346
    %v349 = vadd.f32 %v321, %v346
    %v350 = vadd.f32 %v322, %v346
    %v351 = vadd.f32 %v323, %v346
    %v352 = vadd.f32 %v324, %v346
    %v353 = vadd.f32 %v325, %v346
    %v354 = vadd.f32 %v326, %v346
    %v355 = vadd.f32 %v327, %v346
    %v356 = vadd.f32 %v328, %v346
    %v357 = vadd.f32 %v329, %v346
    %v358 = vadd.f32 %v330, %v346
    %v359 = vadd.f32 %v331, %v346
    %v360 = vadd.f32 %v332, %v346
    %v361 = vadd.f32 %v333, %v346
    %v362 = vadd.f32 %v334, %v346
    %v363 = vadd.f32 %v335, %v346
    %v364 = vadd.f32 %v336, %v346
    %v365 = vadd.f32 %v337, %v346
    %v366 = vadd.f32 %v338, %v346
    %v367 = vadd.f32 %v339, %v346
    %v368 = vadd.f32 %v340, %v346
    %v369 = vpack.c.bf16 %v349, %v348
    %v370 = vpack.c.bf16 %v351, %v350
    %v371 = vpack.c.bf16 %v353, %v352
    %v372 = vpack.c.bf16 %v355, %v354
    %v373 = vpack.c.bf16 %v357, %v356
    %v374 = vpack.c.bf16 %v359, %v358
    %v375 = vpack.c.bf16 %v361, %v360
    %v376 = vpack.c.bf16 %v363, %v362
    %v377 = vpack.c.bf16 %v365, %v364
    %v378 = vpack.c.bf16 %v367, %v366
    %v379 = vpack.c.bf16 %v368, %v368
    %v380 = vld [vmem:[%s5] sm:$0xff]
    %v381 = vld [vmem:[%s5 + $0x8] sm:$0xff]
    %v382 = vld [vmem:[%s5 + $0x10] sm:$0xff]
    %v383 = vld [vmem:[%s5 + $0x18] sm:$0xff]
    %v384 = vld [vmem:[%s5 + $0x20] sm:$0xff]
    %v385 = vld [vmem:[%s5 + $0x28] sm:$0xff]
    %v386 = vld [vmem:[%s5 + $0x30] sm:$0xff]
    %v387 = vld [vmem:[%s5 + $0x38] sm:$0xff]
    %v396 = vunpack.c.l.b16 %v380
    %v397 = vunpack.c.h.b16 %v380
    %v398 = vunpack.c.l.b16 %v381
    %v399 = vunpack.c.h.b16 %v381
    %v400 = vunpack.c.l.b16 %v382
    %v401 = vunpack.c.h.b16 %v382
    %v402 = vunpack.c.l.b16 %v383
    %v403 = vunpack.c.h.b16 %v383
    %v404 = vunpack.c.l.b16 %v384
    %v405 = vunpack.c.h.b16 %v384
    %v406 = vunpack.c.l.b16 %v385
    %v407 = vunpack.c.h.b16 %v385
    %v408 = vunpack.c.l.b16 %v386
    %v409 = vunpack.c.h.b16 %v386
    %v410 = vunpack.c.l.b16 %v387
    %v411 = vunpack.c.h.b16 %v387
    %v412 = vpack.c.b16 %v398, %v396
    %v413 = vpack.c.b16 %v399, %v397
    %v414 = vpack.c.b16 %v402, %v400
    %v415 = vpack.c.b16 %v403, %v401
    %v416 = vpack.c.b16 %v406, %v404
    %v417 = vpack.c.b16 %v407, %v405
    %v418 = vpack.c.b16 %v410, %v408
    %v419 = vpack.c.b16 %v411, %v409
    %vm424 = vcmask 326656
    %v426 = vsel %vm424, %v413, 0
    %v429 = vsel %vm424, %v415, 0
    %v432 = vsel %vm424, %v417, 0
    %v435 = vsel %vm424, %v419, 0
    %vm437 = vcmask 1043456
    %v439 = vsel %vm437, %v379, 0
    %441 = vmatprep.subr.bf16.mxu0 0
    %442 = vmatpush1.bf16.msra.mxu0 %v369
    %443 = vmatprep.subr.bf16.mxu0 0
    %444 = vmatpush1.bf16.msra.mxu0 %v370
    %445 = vmatprep.subr.bf16.mxu0 0
    %446 = vmatpush1.bf16.msra.mxu0 %v371
    %447 = vmatprep.subr.bf16.mxu0 0
    %448 = vmatpush1.bf16.msra.mxu0 %v372
    %449 = vmatprep.subr.bf16.mxu0 0
    %450 = vmatpush1.bf16.msra.mxu0 %v373
    %451 = vmatprep.subr.bf16.mxu0 0
    %452 = vmatpush1.bf16.msra.mxu0 %v374
    %453 = vmatprep.subr.bf16.mxu0 0
    %454 = vmatpush1.bf16.msra.mxu0 %v375
    %455 = vmatprep.subr.bf16.mxu0 0
    %456 = vmatpush1.bf16.msra.mxu0 %v376
    %457 = vmatprep.subr.bf16.mxu0 0
    %458 = vmatpush1.bf16.msra.mxu0 %v377
    %459 = vmatprep.subr.bf16.mxu0 0
    %460 = vmatpush1.bf16.msra.mxu0 %v378
    %461 = vmatprep.subr.bf16.mxu0 0
    %462 = vmatpush1.bf16.msra.mxu0 %v439
    %463 = vmatprep.subr.bf16.mxu0 0
    %464 = vmatpush1.bf16.msra.mxu0 0
    %465 = vmatprep.subr.bf16.mxu0 0
    %466 = vmatpush1.bf16.msra.mxu0 0
    %467 = vmatprep.subr.bf16.mxu0 0
    %468 = vmatpush1.bf16.msra.mxu0 0
    %469 = vmatprep.subr.bf16.mxu0 0
    %470 = vmatpush1.bf16.msra.mxu0 0
    %471 = vmatprep.subr.bf16.mxu0 0
    %472 = vmatpush1.bf16.msra.mxu0 0
    %473 = vmatprep.mubr.bf16.mxu0 %v426
    %474 = vmatmul.mubr.bf16.gmra.mrb[0].mxu0 %v412
    %v475 = vpop.f32.mrb[0].mxu0
    %v476 = vadd.f32 0.0, %v475
    %v477 = vpop.f32.mrb[0].mxu0
    %v478 = vpop.f32.mrb[0].mxu0
    %v479 = vadd.f32 0.0, %v478
    %v480 = vpop.f32.mrb[0].mxu0
    %481 = vmatprep.mubr.bf16.mxu0 %v429
    %482 = vmatmul.mubr.bf16.gmra.mrb[0].mxu0 %v414
    %v483 = vpop.f32.mrb[0].mxu0
    %v484 = vadd.f32 0.0, %v483
    %v485 = vpop.f32.mrb[0].mxu0
    %v486 = vpop.f32.mrb[0].mxu0
    %v487 = vadd.f32 0.0, %v486
    %v488 = vpop.f32.mrb[0].mxu0
    %489 = vmatprep.mubr.bf16.mxu0 %v432
    %490 = vmatmul.mubr.bf16.gmra.mrb[0].mxu0 %v416
    %v491 = vpop.f32.mrb[0].mxu0
    %v492 = vadd.f32 0.0, %v491
    %v493 = vpop.f32.mrb[0].mxu0
    %v494 = vpop.f32.mrb[0].mxu0
    %v495 = vadd.f32 0.0, %v494
    %v496 = vpop.f32.mrb[0].mxu0
    %497 = vmatprep.mubr.bf16.mxu0 %v435
    %498 = vmatmul.mubr.bf16.gmra.mrb[0].mxu0 %v418
    %v499 = vpop.f32.mrb[0].mxu0
    %v500 = vadd.f32 0.0, %v499
    %v501 = vpop.f32.mrb[0].mxu0
    %v502 = vpop.f32.mrb[0].mxu0
    %v503 = vadd.f32 0.0, %v502
    %v504 = vpop.f32.mrb[0].mxu0
    %505 = vdwg.mxu0
    %v506 = vpack.c.bf16 %v479, %v476
    %v507 = vpack.c.bf16 %v487, %v484
    %v508 = vpack.c.bf16 %v495, %v492
    %v509 = vpack.c.bf16 %v503, %v500
    %v510 = vld [vmem:[%s6] sm:$0xf]
    %v511 = vld [vmem:[%s6 + $0x4] sm:$0xf]
    %v512 = vld [vmem:[%s6 + $0x8] sm:$0xf]
    %v513 = vld [vmem:[%s6 + $0xc] sm:$0xf]
    %v514 = vld [vmem:[%s6 + $0x10] sm:$0xf]
    %v515 = vld [vmem:[%s6 + $0x14] sm:$0xf]
    %v516 = vld [vmem:[%s6 + $0x18] sm:$0xf]
    %v517 = vld [vmem:[%s6 + $0x1c] sm:$0xf]
    %v518 = vld [vmem:[%s6 + $0x20] sm:$0xf]
    %v519 = vld [vmem:[%s6 + $0x24] sm:$0xf]
    %v520 = vld [vmem:[%s6 + $0x28] sm:$0xf]
    %v521 = vld [vmem:[%s6 + $0x2c] sm:$0xf]
    %v522 = vld [vmem:[%s6 + $0x30] sm:$0xf]
    %v523 = vld [vmem:[%s6 + $0x34] sm:$0xf]
    %v524 = vld [vmem:[%s6 + $0x38] sm:$0xf]
    %v525 = vld [vmem:[%s6 + $0x3c] sm:$0xf]
    %s526 = scalar_lea.vmem %s5, 64
    %v527 = vld [vmem:[%s526] sm:$0xff]
    %v528 = vld [vmem:[%s526 + $0x8] sm:$0xff]
    %v529 = vld [vmem:[%s526 + $0x10] sm:$0xff]
    %v530 = vld [vmem:[%s526 + $0x18] sm:$0xff]
    %v531 = vld [vmem:[%s526 + $0x20] sm:$0xff]
    %v532 = vld [vmem:[%s526 + $0x28] sm:$0xff]
    %v533 = vld [vmem:[%s526 + $0x30] sm:$0xff]
    %v534 = vld [vmem:[%s526 + $0x38] sm:$0xff]
    %v543 = vunpack.c.l.b16 %v527
    %v544 = vunpack.c.h.b16 %v527
    %v545 = vunpack.c.l.b16 %v528
    %v546 = vunpack.c.h.b16 %v528
    %v547 = vunpack.c.l.b16 %v529
    %v548 = vunpack.c.h.b16 %v529
    %v549 = vunpack.c.l.b16 %v530
    %v550 = vunpack.c.h.b16 %v530
    %v551 = vunpack.c.l.b16 %v531
    %v552 = vunpack.c.h.b16 %v531
    %v553 = vunpack.c.l.b16 %v532
    %v554 = vunpack.c.h.b16 %v532
    %v555 = vunpack.c.l.b16 %v533
    %v556 = vunpack.c.h.b16 %v533
    %v557 = vunpack.c.l.b16 %v534
    %v558 = vunpack.c.h.b16 %v534
    %v559 = vpack.c.b16 %v545, %v543
    %v560 = vpack.c.b16 %v546, %v544
    %v561 = vpack.c.b16 %v549, %v547
    %v562 = vpack.c.b16 %v550, %v548
    %v563 = vpack.c.b16 %v553, %v551
    %v564 = vpack.c.b16 %v554, %v552
    %v565 = vpack.c.b16 %v557, %v555
    %v566 = vpack.c.b16 %v558, %v556
    %v572 = vsel %vm424, %v560, 0
    %v575 = vsel %vm424, %v562, 0
    %v578 = vsel %vm424, %v564, 0
    %v581 = vsel %vm424, %v566, 0
    %583 = vmatprep.subr.bf16.mxu0 0
    %584 = vmatpush1.bf16.msra.mxu0 %v369
    %585 = vmatprep.subr.bf16.mxu0 0
    %586 = vmatpush1.bf16.msra.mxu0 %v370
    %587 = vmatprep.subr.bf16.mxu0 0
    %588 = vmatpush1.bf16.msra.mxu0 %v371
    %589 = vmatprep.subr.bf16.mxu0 0
    %590 = vmatpush1.bf16.msra.mxu0 %v372
    %591 = vmatprep.subr.bf16.mxu0 0
    %592 = vmatpush1.bf16.msra.mxu0 %v373
    %593 = vmatprep.subr.bf16.mxu0 0
    %594 = vmatpush1.bf16.msra.mxu0 %v374
    %595 = vmatprep.subr.bf16.mxu0 0
    %596 = vmatpush1.bf16.msra.mxu0 %v375
    %597 = vmatprep.subr.bf16.mxu0 0
    %598 = vmatpush1.bf16.msra.mxu0 %v376
    %599 = vmatprep.subr.bf16.mxu0 0
    %600 = vmatpush1.bf16.msra.mxu0 %v377
    %601 = vmatprep.subr.bf16.mxu0 0
    %602 = vmatpush1.bf16.msra.mxu0 %v378
    %603 = vmatprep.subr.bf16.mxu0 0
    %604 = vmatpush1.bf16.msra.mxu0 %v439
    %605 = vmatprep.subr.bf16.mxu0 0
    %606 = vmatpush1.bf16.msra.mxu0 0
    %607 = vmatprep.subr.bf16.mxu0 0
    %608 = vmatpush1.bf16.msra.mxu0 0
    %609 = vmatprep.subr.bf16.mxu0 0
    %610 = vmatpush1.bf16.msra.mxu0 0
    %611 = vmatprep.subr.bf16.mxu0 0
    %612 = vmatpush1.bf16.msra.mxu0 0
    %613 = vmatprep.subr.bf16.mxu0 0
    %614 = vmatpush1.bf16.msra.mxu0 0
    %615 = vmatprep.mubr.bf16.mxu0 %v572
    %616 = vmatmul.mubr.bf16.gmra.mrb[0].mxu0 %v559
    %v617 = vpop.f32.mrb[0].mxu0
    %v618 = vadd.f32 0.0, %v617
    %v619 = vpop.f32.mrb[0].mxu0
    %v620 = vpop.f32.mrb[0].mxu0
    %v621 = vadd.f32 0.0, %v620
    %v622 = vpop.f32.mrb[0].mxu0
    %623 = vmatprep.mubr.bf16.mxu0 %v575
    %624 = vmatmul.mubr.bf16.gmra.mrb[0].mxu0 %v561
    %v625 = vpop.f32.mrb[0].mxu0
    %v626 = vadd.f32 0.0, %v625
    %v627 = vpop.f32.mrb[0].mxu0
    %v628 = vpop.f32.mrb[0].mxu0
    %v629 = vadd.f32 0.0, %v628
    %v630 = vpop.f32.mrb[0].mxu0
    %631 = vmatprep.mubr.bf16.mxu0 %v578
    %632 = vmatmul.mubr.bf16.gmra.mrb[0].mxu0 %v563
    %v633 = vpop.f32.mrb[0].mxu0
    %v634 = vadd.f32 0.0, %v633
    %v635 = vpop.f32.mrb[0].mxu0
    %v636 = vpop.f32.mrb[0].mxu0
    %v637 = vadd.f32 0.0, %v636
    %v638 = vpop.f32.mrb[0].mxu0
    %639 = vmatprep.mubr.bf16.mxu0 %v581
    %640 = vmatmul.mubr.bf16.gmra.mrb[0].mxu0 %v565
    %v641 = vpop.f32.mrb[0].mxu0
    %v642 = vadd.f32 0.0, %v641
    %v643 = vpop.f32.mrb[0].mxu0
    %v644 = vpop.f32.mrb[0].mxu0
    %v645 = vadd.f32 0.0, %v644
    %v646 = vpop.f32.mrb[0].mxu0
    %647 = vdwg.mxu0
    %v648 = vpack.c.bf16 %v621, %v618
    %v649 = vpack.c.bf16 %v629, %v626
    %v650 = vpack.c.bf16 %v637, %v634
    %v651 = vpack.c.bf16 %v645, %v642
    %s652 = scalar_lea.vmem %s6, 64
    %v653 = vld [vmem:[%s652] sm:$0xf]
    %v654 = vld [vmem:[%s652 + $0x4] sm:$0xf]
    %v655 = vld [vmem:[%s652 + $0x8] sm:$0xf]
    %v656 = vld [vmem:[%s652 + $0xc] sm:$0xf]
    %v657 = vld [vmem:[%s652 + $0x10] sm:$0xf]
    %v658 = vld [vmem:[%s652 + $0x14] sm:$0xf]
    %v659 = vld [vmem:[%s652 + $0x18] sm:$0xf]
    %v660 = vld [vmem:[%s652 + $0x1c] sm:$0xf]
    %v661 = vld [vmem:[%s652 + $0x20] sm:$0xf]
    %v662 = vld [vmem:[%s652 + $0x24] sm:$0xf]
    %v663 = vld [vmem:[%s652 + $0x28] sm:$0xf]
    %v664 = vld [vmem:[%s652 + $0x2c] sm:$0xf]
    %v665 = vld [vmem:[%s652 + $0x30] sm:$0xf]
    %v666 = vld [vmem:[%s652 + $0x34] sm:$0xf]
    %v667 = vld [vmem:[%s652 + $0x38] sm:$0xf]
    %v668 = vld [vmem:[%s652 + $0x3c] sm:$0xf]
    %v685 = vunpack.c.l.b16 %v653
    %v686 = vunpack.c.l.b16 %v654
    %v687 = vunpack.c.l.b16 %v655
    %v688 = vunpack.c.l.b16 %v656
    %v689 = vunpack.c.l.b16 %v657
    %v690 = vunpack.c.l.b16 %v658
    %v691 = vunpack.c.l.b16 %v659
    %v692 = vunpack.c.l.b16 %v660
    %v693 = vunpack.c.l.b16 %v661
    %v694 = vunpack.c.l.b16 %v662
    %v695 = vunpack.c.l.b16 %v663
    %v696 = vunpack.c.l.b16 %v664
    %v697 = vunpack.c.l.b16 %v665
    %v698 = vunpack.c.l.b16 %v666
    %v699 = vunpack.c.l.b16 %v667
    %v700 = vunpack.c.l.b16 %v668
    %v701 = vpack.c.b16 %v686, %v685
    %v702 = vpack.c.b16 %v688, %v687
    %v703 = vpack.c.b16 %v690, %v689
    %v704 = vpack.c.b16 %v692, %v691
    %v705 = vpack.c.b16 %v694, %v693
    %v706 = vpack.c.b16 %v696, %v695
    %v707 = vpack.c.b16 %v698, %v697
    %v708 = vpack.c.b16 %v700, %v699
    %717 = vmatprep.subr.bf16.mxu0 0
    %718 = vmatpush1.bf16.msra.mxu0 %v701
    %719 = vmatprep.subr.bf16.mxu0 0
    %720 = vmatpush1.bf16.msra.mxu0 %v702
    %721 = vmatprep.subr.bf16.mxu0 0
    %722 = vmatpush1.bf16.msra.mxu0 %v703
    %723 = vmatprep.subr.bf16.mxu0 0
    %724 = vmatpush1.bf16.msra.mxu0 %v704
    %725 = vmatprep.subr.bf16.mxu0 0
    %726 = vmatpush1.bf16.msra.mxu0 %v705
    %727 = vmatprep.subr.bf16.mxu0 0
    %728 = vmatpush1.bf16.msra.mxu0 %v706
    %729 = vmatprep.subr.bf16.mxu0 0
    %730 = vmatpush1.bf16.msra.mxu0 %v707
    %731 = vmatprep.subr.bf16.mxu0 0
    %732 = vmatpush1.bf16.msra.mxu0 %v708
    %733 = vmatprep.subr.bf16.mxu0 0
    %734 = vmatpush1.bf16.msra.mxu0 0
    %735 = vmatprep.subr.bf16.mxu0 0
    %736 = vmatpush1.bf16.msra.mxu0 0
    %737 = vmatprep.subr.bf16.mxu0 0
    %738 = vmatpush1.bf16.msra.mxu0 0
    %739 = vmatprep.subr.bf16.mxu0 0
    %740 = vmatpush1.bf16.msra.mxu0 0
    %741 = vmatprep.subr.bf16.mxu0 0
    %742 = vmatpush1.bf16.msra.mxu0 0
    %743 = vmatprep.subr.bf16.mxu0 0
    %744 = vmatpush1.bf16.msra.mxu0 0
    %745 = vmatprep.subr.bf16.mxu0 0
    %746 = vmatpush1.bf16.msra.mxu0 0
    %747 = vmatprep.subr.bf16.mxu0 0
    %748 = vmatpush1.bf16.msra.mxu0 0
    %749 = vmatprep.mubr.bf16.mxu0 0
    %750 = vmatmul.mubr.bf16.gmra.mrb[0].mxu0 %v648
    %v751 = vpop.f32.mrb[0].mxu0
    %v752 = vadd.f32 0.0, %v751
    %v753 = vpop.f32.mrb[0].mxu0
    %v754 = vpop.f32.mrb[0].mxu0
    %v755 = vadd.f32 0.0, %v754
    %v756 = vpop.f32.mrb[0].mxu0
    %757 = vmatprep.mubr.bf16.mxu0 0
    %758 = vmatmul.mubr.bf16.gmra.mrb[0].mxu0 %v649
    %v759 = vpop.f32.mrb[0].mxu0
    %v760 = vadd.f32 0.0, %v759
    %v761 = vpop.f32.mrb[0].mxu0
    %v762 = vpop.f32.mrb[0].mxu0
    %v763 = vadd.f32 0.0, %v762
    %v764 = vpop.f32.mrb[0].mxu0
    %765 = vmatprep.mubr.bf16.mxu0 0
    %766 = vmatmul.mubr.bf16.gmra.mrb[0].mxu0 %v650
    %v767 = vpop.f32.mrb[0].mxu0
    %v768 = vadd.f32 0.0, %v767
    %v769 = vpop.f32.mrb[0].mxu0
    %v770 = vpop.f32.mrb[0].mxu0
    %v771 = vadd.f32 0.0, %v770
    %v772 = vpop.f32.mrb[0].mxu0
    %773 = vmatprep.mubr.bf16.mxu0 0
    %774 = vmatmul.mubr.bf16.gmra.mrb[0].mxu0 %v651
    %v775 = vpop.f32.mrb[0].mxu0
    %v776 = vadd.f32 0.0, %v775
    %v777 = vpop.f32.mrb[0].mxu0
    %v778 = vpop.f32.mrb[0].mxu0
    %v779 = vadd.f32 0.0, %v778
    %v780 = vpop.f32.mrb[0].mxu0
    %781 = vdwg.mxu0
    %v798 = vunpack.c.l.b16 %v510
    %v799 = vunpack.c.l.b16 %v511
    %v800 = vunpack.c.l.b16 %v512
    %v801 = vunpack.c.l.b16 %v513
    %v802 = vunpack.c.l.b16 %v514
    %v803 = vunpack.c.l.b16 %v515
    %v804 = vunpack.c.l.b16 %v516
    %v805 = vunpack.c.l.b16 %v517
    %v806 = vunpack.c.l.b16 %v518
    %v807 = vunpack.c.l.b16 %v519
    %v808 = vunpack.c.l.b16 %v520
    %v809 = vunpack.c.l.b16 %v521
    %v810 = vunpack.c.l.b16 %v522
    %v811 = vunpack.c.l.b16 %v523
    %v812 = vunpack.c.l.b16 %v524
    %v813 = vunpack.c.l.b16 %v525
    %v814 = vpack.c.b16 %v799, %v798
    %v815 = vpack.c.b16 %v801, %v800
    %v816 = vpack.c.b16 %v803, %v802
    %v817 = vpack.c.b16 %v805, %v804
    %v818 = vpack.c.b16 %v807, %v806
    %v819 = vpack.c.b16 %v809, %v808
    %v820 = vpack.c.b16 %v811, %v810
    %v821 = vpack.c.b16 %v813, %v812
    %830 = vmatprep.subr.bf16.mxu0 0
    %831 = vmatpush1.bf16.msra.mxu0 %v814
    %832 = vmatprep.subr.bf16.mxu0 0
    %833 = vmatpush1.bf16.msra.mxu0 %v815
    %834 = vmatprep.subr.bf16.mxu0 0
    %835 = vmatpush1.bf16.msra.mxu0 %v816
    %836 = vmatprep.subr.bf16.mxu0 0
    %837 = vmatpush1.bf16.msra.mxu0 %v817
    %838 = vmatprep.subr.bf16.mxu0 0
    %839 = vmatpush1.bf16.msra.mxu0 %v818
    %840 = vmatprep.subr.bf16.mxu0 0
    %841 = vmatpush1.bf16.msra.mxu0 %v819
    %842 = vmatprep.subr.bf16.mxu0 0
    %843 = vmatpush1.bf16.msra.mxu0 %v820
    %844 = vmatprep.subr.bf16.mxu0 0
    %845 = vmatpush1.bf16.msra.mxu0 %v821
    %846 = vmatprep.subr.bf16.mxu0 0
    %847 = vmatpush1.bf16.msra.mxu0 0
    %848 = vmatprep.subr.bf16.mxu0 0
    %849 = vmatpush1.bf16.msra.mxu0 0
    %850 = vmatprep.subr.bf16.mxu0 0
    %851 = vmatpush1.bf16.msra.mxu0 0
    %852 = vmatprep.subr.bf16.mxu0 0
    %853 = vmatpush1.bf16.msra.mxu0 0
    %854 = vmatprep.subr.bf16.mxu0 0
    %855 = vmatpush1.bf16.msra.mxu0 0
    %856 = vmatprep.subr.bf16.mxu0 0
    %857 = vmatpush1.bf16.msra.mxu0 0
    %858 = vmatprep.subr.bf16.mxu0 0
    %859 = vmatpush1.bf16.msra.mxu0 0
    %860 = vmatprep.subr.bf16.mxu0 0
    %861 = vmatpush1.bf16.msra.mxu0 0
    %862 = vmatprep.mubr.bf16.mxu0 0
    %863 = vmatmul.mubr.bf16.gmra.mrb[0].mxu0 %v506
    %v864 = vpop.f32.mrb[0].mxu0
    %v865 = vadd.f32 %v752, %v864
    %v866 = vpop.f32.mrb[0].mxu0
    %v867 = vpop.f32.mrb[0].mxu0
    %v868 = vadd.f32 %v755, %v867
    %v869 = vpop.f32.mrb[0].mxu0
    %870 = vmatprep.mubr.bf16.mxu0 0
    %871 = vmatmul.mubr.bf16.gmra.mrb[0].mxu0 %v507
    %v872 = vpop.f32.mrb[0].mxu0
    %v873 = vadd.f32 %v760, %v872
    %v874 = vpop.f32.mrb[0].mxu0
    %v875 = vpop.f32.mrb[0].mxu0
    %v876 = vadd.f32 %v763, %v875
    %v877 = vpop.f32.mrb[0].mxu0
    %878 = vmatprep.mubr.bf16.mxu0 0
    %879 = vmatmul.mubr.bf16.gmra.mrb[0].mxu0 %v508
    %v880 = vpop.f32.mrb[0].mxu0
    %v881 = vadd.f32 %v768, %v880
    %v882 = vpop.f32.mrb[0].mxu0
    %v883 = vpop.f32.mrb[0].mxu0
    %v884 = vadd.f32 %v771, %v883
    %v885 = vpop.f32.mrb[0].mxu0
    %886 = vmatprep.mubr.bf16.mxu0 0
    %887 = vmatmul.mubr.bf16.gmra.mrb[0].mxu0 %v509
    %v888 = vpop.f32.mrb[0].mxu0
    %v889 = vadd.f32 %v776, %v888
    %v890 = vpop.f32.mrb[0].mxu0
    %v891 = vpop.f32.mrb[0].mxu0
    %v892 = vadd.f32 %v779, %v891
    %v893 = vpop.f32.mrb[0].mxu0
    %894 = vdwg.mxu0
    %s895 = scalar_lea.vmem %s5, 128
    %v896 = vld [vmem:[%s895] sm:$0xff]
    %v897 = vld [vmem:[%s895 + $0x8] sm:$0xff]
    %v898 = vld [vmem:[%s895 + $0x10] sm:$0xff]
    %v899 = vld [vmem:[%s895 + $0x18] sm:$0xff]
    %v900 = vld [vmem:[%s895 + $0x20] sm:$0xff]
    %v901 = vld [vmem:[%s895 + $0x28] sm:$0xff]
    %v902 = vld [vmem:[%s895 + $0x30] sm:$0xff]
    %v903 = vld [vmem:[%s895 + $0x38] sm:$0xff]
    %v912 = vunpack.c.l.b16 %v896
    %v913 = vunpack.c.h.b16 %v896
    %v914 = vunpack.c.l.b16 %v897
    %v915 = vunpack.c.h.b16 %v897
    %v916 = vunpack.c.l.b16 %v898
    %v917 = vunpack.c.h.b16 %v898
    %v918 = vunpack.c.l.b16 %v899
    %v919 = vunpack.c.h.b16 %v899
    %v920 = vunpack.c.l.b16 %v900
    %v921 = vunpack.c.h.b16 %v900
    %v922 = vunpack.c.l.b16 %v901
    %v923 = vunpack.c.h.b16 %v901
    %v924 = vunpack.c.l.b16 %v902
    %v925 = vunpack.c.h.b16 %v902
    %v926 = vunpack.c.l.b16 %v903
    %v927 = vunpack.c.h.b16 %v903
    %v928 = vpack.c.b16 %v914, %v912
    %v929 = vpack.c.b16 %v915, %v913
    %v930 = vpack.c.b16 %v918, %v916
    %v931 = vpack.c.b16 %v919, %v917
    %v932 = vpack.c.b16 %v922, %v920
    %v933 = vpack.c.b16 %v923, %v921
    %v934 = vpack.c.b16 %v926, %v924
    %v935 = vpack.c.b16 %v927, %v925
    %v941 = vsel %vm424, %v929, 0
    %v944 = vsel %vm424, %v931, 0
    %v947 = vsel %vm424, %v933, 0
    %v950 = vsel %vm424, %v935, 0
    %952 = vmatprep.subr.bf16.mxu0 0
    %953 = vmatpush1.bf16.msra.mxu0 %v369
    %954 = vmatprep.subr.bf16.mxu0 0
    %955 = vmatpush1.bf16.msra.mxu0 %v370
    %956 = vmatprep.subr.bf16.mxu0 0
    %957 = vmatpush1.bf16.msra.mxu0 %v371
    %958 = vmatprep.subr.bf16.mxu0 0
    %959 = vmatpush1.bf16.msra.mxu0 %v372
    %960 = vmatprep.subr.bf16.mxu0 0
    %961 = vmatpush1.bf16.msra.mxu0 %v373
    %962 = vmatprep.subr.bf16.mxu0 0
    %963 = vmatpush1.bf16.msra.mxu0 %v374
    %964 = vmatprep.subr.bf16.mxu0 0
    %965 = vmatpush1.bf16.msra.mxu0 %v375
    %966 = vmatprep.subr.bf16.mxu0 0
    %967 = vmatpush1.bf16.msra.mxu0 %v376
    %968 = vmatprep.subr.bf16.mxu0 0
    %969 = vmatpush1.bf16.msra.mxu0 %v377
    %970 = vmatprep.subr.bf16.mxu0 0
    %971 = vmatpush1.bf16.msra.mxu0 %v378
    %972 = vmatprep.subr.bf16.mxu0 0
    %973 = vmatpush1.bf16.msra.mxu0 %v439
    %974 = vmatprep.subr.bf16.mxu0 0
    %975 = vmatpush1.bf16.msra.mxu0 0
    %976 = vmatprep.subr.bf16.mxu0 0
    %977 = vmatpush1.bf16.msra.mxu0 0
    %978 = vmatprep.subr.bf16.mxu0 0
    %979 = vmatpush1.bf16.msra.mxu0 0
    %980 = vmatprep.subr.bf16.mxu0 0
    %981 = vmatpush1.bf16.msra.mxu0 0
    %982 = vmatprep.subr.bf16.mxu0 0
    %983 = vmatpush1.bf16.msra.mxu0 0
    %984 = vmatprep.mubr.bf16.mxu0 %v941
    %985 = vmatmul.mubr.bf16.gmra.mrb[0].mxu0 %v928
    %v986 = vpop.f32.mrb[0].mxu0
    %v987 = vadd.f32 0.0, %v986
    %v988 = vpop.f32.mrb[0].mxu0
    %v989 = vpop.f32.mrb[0].mxu0
    %v990 = vadd.f32 0.0, %v989
    %v991 = vpop.f32.mrb[0].mxu0
    %992 = vmatprep.mubr.bf16.mxu0 %v944
    %993 = vmatmul.mubr.bf16.gmra.mrb[0].mxu0 %v930
    %v994 = vpop.f32.mrb[0].mxu0
    %v995 = vadd.f32 0.0, %v994
    %v996 = vpop.f32.mrb[0].mxu0
    %v997 = vpop.f32.mrb[0].mxu0
    %v998 = vadd.f32 0.0, %v997
    %v999 = vpop.f32.mrb[0].mxu0
    %1000 = vmatprep.mubr.bf16.mxu0 %v947
    %1001 = vmatmul.mubr.bf16.gmra.mrb[0].mxu0 %v932
    %v1002 = vpop.f32.mrb[0].mxu0
    %v1003 = vadd.f32 0.0, %v1002
    %v1004 = vpop.f32.mrb[0].mxu0
    %v1005 = vpop.f32.mrb[0].mxu0
    %v1006 = vadd.f32 0.0, %v1005
    %v1007 = vpop.f32.mrb[0].mxu0
    %1008 = vmatprep.mubr.bf16.mxu0 %v950
    %1009 = vmatmul.mubr.bf16.gmra.mrb[0].mxu0 %v934
    %v1010 = vpop.f32.mrb[0].mxu0
    %v1011 = vadd.f32 0.0, %v1010
    %v1012 = vpop.f32.mrb[0].mxu0
    %v1013 = vpop.f32.mrb[0].mxu0
    %v1014 = vadd.f32 0.0, %v1013
    %v1015 = vpop.f32.mrb[0].mxu0
    %1016 = vdwg.mxu0
    %v1017 = vpack.c.bf16 %v990, %v987
    %v1018 = vpack.c.bf16 %v998, %v995
    %v1019 = vpack.c.bf16 %v1006, %v1003
    %v1020 = vpack.c.bf16 %v1014, %v1011
    %s1021 = scalar_lea.vmem %s6, 128
    %v1022 = vld [vmem:[%s1021] sm:$0xf]
    %v1023 = vld [vmem:[%s1021 + $0x4] sm:$0xf]
    %v1024 = vld [vmem:[%s1021 + $0x8] sm:$0xf]
    %v1025 = vld [vmem:[%s1021 + $0xc] sm:$0xf]
    %v1026 = vld [vmem:[%s1021 + $0x10] sm:$0xf]
    %v1027 = vld [vmem:[%s1021 + $0x14] sm:$0xf]
    %v1028 = vld [vmem:[%s1021 + $0x18] sm:$0xf]
    %v1029 = vld [vmem:[%s1021 + $0x1c] sm:$0xf]
    %v1030 = vld [vmem:[%s1021 + $0x20] sm:$0xf]
    %v1031 = vld [vmem:[%s1021 + $0x24] sm:$0xf]
    %v1032 = vld [vmem:[%s1021 + $0x28] sm:$0xf]
    %v1033 = vld [vmem:[%s1021 + $0x2c] sm:$0xf]
    %v1034 = vld [vmem:[%s1021 + $0x30] sm:$0xf]
    %v1035 = vld [vmem:[%s1021 + $0x34] sm:$0xf]
    %v1036 = vld [vmem:[%s1021 + $0x38] sm:$0xf]
    %v1037 = vld [vmem:[%s1021 + $0x3c] sm:$0xf]
    %v1054 = vunpack.c.l.b16 %v1022
    %v1055 = vunpack.c.l.b16 %v1023
    %v1056 = vunpack.c.l.b16 %v1024
    %v1057 = vunpack.c.l.b16 %v1025
    %v1058 = vunpack.c.l.b16 %v1026
    %v1059 = vunpack.c.l.b16 %v1027
    %v1060 = vunpack.c.l.b16 %v1028
    %v1061 = vunpack.c.l.b16 %v1029
    %v1062 = vunpack.c.l.b16 %v1030
    %v1063 = vunpack.c.l.b16 %v1031
    %v1064 = vunpack.c.l.b16 %v1032
    %v1065 = vunpack.c.l.b16 %v1033
    %v1066 = vunpack.c.l.b16 %v1034
    %v1067 = vunpack.c.l.b16 %v1035
    %v1068 = vunpack.c.l.b16 %v1036
    %v1069 = vunpack.c.l.b16 %v1037
    %v1070 = vpack.c.b16 %v1055, %v1054
    %v1071 = vpack.c.b16 %v1057, %v1056
    %v1072 = vpack.c.b16 %v1059, %v1058
    %v1073 = vpack.c.b16 %v1061, %v1060
    %v1074 = vpack.c.b16 %v1063, %v1062
    %v1075 = vpack.c.b16 %v1065, %v1064
    %v1076 = vpack.c.b16 %v1067, %v1066
    %v1077 = vpack.c.b16 %v1069, %v1068
    %1086 = vmatprep.subr.bf16.mxu0 0
    %1087 = vmatpush1.bf16.msra.mxu0 %v1070
    %1088 = vmatprep.subr.bf16.mxu0 0
    %1089 = vmatpush1.bf16.msra.mxu0 %v1071
    %1090 = vmatprep.subr.bf16.mxu0 0
    %1091 = vmatpush1.bf16.msra.mxu0 %v1072
    %1092 = vmatprep.subr.bf16.mxu0 0
    %1093 = vmatpush1.bf16.msra.mxu0 %v1073
    %1094 = vmatprep.subr.bf16.mxu0 0
    %1095 = vmatpush1.bf16.msra.mxu0 %v1074
    %1096 = vmatprep.subr.bf16.mxu0 0
    %1097 = vmatpush1.bf16.msra.mxu0 %v1075
    %1098 = vmatprep.subr.bf16.mxu0 0
    %1099 = vmatpush1.bf16.msra.mxu0 %v1076
    %1100 = vmatprep.subr.bf16.mxu0 0
    %1101 = vmatpush1.bf16.msra.mxu0 %v1077
    %1102 = vmatprep.subr.bf16.mxu0 0
    %1103 = vmatpush1.bf16.msra.mxu0 0
    %1104 = vmatprep.subr.bf16.mxu0 0
    %1105 = vmatpush1.bf16.msra.mxu0 0
    %1106 = vmatprep.subr.bf16.mxu0 0
    %1107 = vmatpush1.bf16.msra.mxu0 0
    %1108 = vmatprep.subr.bf16.mxu0 0
    %1109 = vmatpush1.bf16.msra.mxu0 0
    %1110 = vmatprep.subr.bf16.mxu0 0
    %1111 = vmatpush1.bf16.msra.mxu0 0
    %1112 = vmatprep.subr.bf16.mxu0 0
    %1113 = vmatpush1.bf16.msra.mxu0 0
    %1114 = vmatprep.subr.bf16.mxu0 0
    %1115 = vmatpush1.bf16.msra.mxu0 0
    %1116 = vmatprep.subr.bf16.mxu0 0
    %1117 = vmatpush1.bf16.msra.mxu0 0
    %1118 = vmatprep.mubr.bf16.mxu0 0
    %1119 = vmatmul.mubr.bf16.gmra.mrb[0].mxu0 %v1017
    %v1120 = vpop.f32.mrb[0].mxu0
    %v1121 = vadd.f32 0.0, %v1120
    %v1122 = vpop.f32.mrb[0].mxu0
    %v1123 = vpop.f32.mrb[0].mxu0
    %v1124 = vadd.f32 0.0, %v1123
    %v1125 = vpop.f32.mrb[0].mxu0
    %1126 = vmatprep.mubr.bf16.mxu0 0
    %1127 = vmatmul.mubr.bf16.gmra.mrb[0].mxu0 %v1018
    %v1128 = vpop.f32.mrb[0].mxu0
    %v1129 = vadd.f32 0.0, %v1128
    %v1130 = vpop.f32.mrb[0].mxu0
    %v1131 = vpop.f32.mrb[0].mxu0
    %v1132 = vadd.f32 0.0, %v1131
    %v1133 = vpop.f32.mrb[0].mxu0
    %1134 = vmatprep.mubr.bf16.mxu0 0
    %1135 = vmatmul.mubr.bf16.gmra.mrb[0].mxu0 %v1019
    %v1136 = vpop.f32.mrb[0].mxu0
    %v1137 = vadd.f32 0.0, %v1136
    %v1138 = vpop.f32.mrb[0].mxu0
    %v1139 = vpop.f32.mrb[0].mxu0
    %v1140 = vadd.f32 0.0, %v1139
    %v1141 = vpop.f32.mrb[0].mxu0
    %1142 = vmatprep.mubr.bf16.mxu0 0
    %1143 = vmatmul.mubr.bf16.gmra.mrb[0].mxu0 %v1020
    %v1144 = vpop.f32.mrb[0].mxu0
    %v1145 = vadd.f32 0.0, %v1144
    %v1146 = vpop.f32.mrb[0].mxu0
    %v1147 = vpop.f32.mrb[0].mxu0
    %v1148 = vadd.f32 0.0, %v1147
    %v1149 = vpop.f32.mrb[0].mxu0
    %1150 = vdwg.mxu0
    %v1151 = vadd.f32 %v865, %v1121
    %v1152 = vadd.f32 %v868, %v1124
    %v1153 = vadd.f32 %v873, %v1129
    %v1154 = vadd.f32 %v876, %v1132
    %v1155 = vadd.f32 %v881, %v1137
    %v1156 = vadd.f32 %v884, %v1140
    %v1157 = vadd.f32 %v889, %v1145
    %v1158 = vadd.f32 %v892, %v1148
    %s1159 = scalar_lea.vmem %s5, 192
    %v1160 = vld [vmem:[%s1159] sm:$0xff]
    %v1161 = vld [vmem:[%s1159 + $0x8] sm:$0xff]
    %v1162 = vld [vmem:[%s1159 + $0x10] sm:$0xff]
    %v1163 = vld [vmem:[%s1159 + $0x18] sm:$0xff]
    %v1164 = vld [vmem:[%s1159 + $0x20] sm:$0xff]
    %v1165 = vld [vmem:[%s1159 + $0x28] sm:$0xff]
    %v1166 = vld [vmem:[%s1159 + $0x30] sm:$0xff]
    %v1167 = vld [vmem:[%s1159 + $0x38] sm:$0xff]
    %v1176 = vunpack.c.l.b16 %v1160
    %v1177 = vunpack.c.h.b16 %v1160
    %v1178 = vunpack.c.l.b16 %v1161
    %v1179 = vunpack.c.h.b16 %v1161
    %v1180 = vunpack.c.l.b16 %v1162
    %v1181 = vunpack.c.h.b16 %v1162
    %v1182 = vunpack.c.l.b16 %v1163
    %v1183 = vunpack.c.h.b16 %v1163
    %v1184 = vunpack.c.l.b16 %v1164
    %v1185 = vunpack.c.h.b16 %v1164
    %v1186 = vunpack.c.l.b16 %v1165
    %v1187 = vunpack.c.h.b16 %v1165
    %v1188 = vunpack.c.l.b16 %v1166
    %v1189 = vunpack.c.h.b16 %v1166
    %v1190 = vunpack.c.l.b16 %v1167
    %v1191 = vunpack.c.h.b16 %v1167
    %v1192 = vpack.c.b16 %v1178, %v1176
    %v1193 = vpack.c.b16 %v1179, %v1177
    %v1194 = vpack.c.b16 %v1182, %v1180
    %v1195 = vpack.c.b16 %v1183, %v1181
    %v1196 = vpack.c.b16 %v1186, %v1184
    %v1197 = vpack.c.b16 %v1187, %v1185
    %v1198 = vpack.c.b16 %v1190, %v1188
    %v1199 = vpack.c.b16 %v1191, %v1189
    %v1205 = vsel %vm424, %v1193, 0
    %v1208 = vsel %vm424, %v1195, 0
    %v1211 = vsel %vm424, %v1197, 0
    %v1214 = vsel %vm424, %v1199, 0
    %1216 = vmatprep.subr.bf16.mxu0 0
    %1217 = vmatpush1.bf16.msra.mxu0 %v369
    %1218 = vmatprep.subr.bf16.mxu0 0
    %1219 = vmatpush1.bf16.msra.mxu0 %v370
    %1220 = vmatprep.subr.bf16.mxu0 0
    %1221 = vmatpush1.bf16.msra.mxu0 %v371
    %1222 = vmatprep.subr.bf16.mxu0 0
    %1223 = vmatpush1.bf16.msra.mxu0 %v372
    %1224 = vmatprep.subr.bf16.mxu0 0
    %1225 = vmatpush1.bf16.msra.mxu0 %v373
    %1226 = vmatprep.subr.bf16.mxu0 0
    %1227 = vmatpush1.bf16.msra.mxu0 %v374
    %1228 = vmatprep.subr.bf16.mxu0 0
    %1229 = vmatpush1.bf16.msra.mxu0 %v375
    %1230 = vmatprep.subr.bf16.mxu0 0
    %1231 = vmatpush1.bf16.msra.mxu0 %v376
    %1232 = vmatprep.subr.bf16.mxu0 0
    %1233 = vmatpush1.bf16.msra.mxu0 %v377
    %1234 = vmatprep.subr.bf16.mxu0 0
    %1235 = vmatpush1.bf16.msra.mxu0 %v378
    %1236 = vmatprep.subr.bf16.mxu0 0
    %1237 = vmatpush1.bf16.msra.mxu0 %v439
    %1238 = vmatprep.subr.bf16.mxu0 0
    %1239 = vmatpush1.bf16.msra.mxu0 0
    %1240 = vmatprep.subr.bf16.mxu0 0
    %1241 = vmatpush1.bf16.msra.mxu0 0
    %1242 = vmatprep.subr.bf16.mxu0 0
    %1243 = vmatpush1.bf16.msra.mxu0 0
    %1244 = vmatprep.subr.bf16.mxu0 0
    %1245 = vmatpush1.bf16.msra.mxu0 0
    %1246 = vmatprep.subr.bf16.mxu0 0
    %1247 = vmatpush1.bf16.msra.mxu0 0
    %1248 = vmatprep.mubr.bf16.mxu0 %v1205
    %1249 = vmatmul.mubr.bf16.gmra.mrb[0].mxu0 %v1192
    %v1250 = vpop.f32.mrb[0].mxu0
    %v1251 = vadd.f32 0.0, %v1250
    %v1252 = vpop.f32.mrb[0].mxu0
    %v1253 = vpop.f32.mrb[0].mxu0
    %v1254 = vadd.f32 0.0, %v1253
    %v1255 = vpop.f32.mrb[0].mxu0
    %1256 = vmatprep.mubr.bf16.mxu0 %v1208
    %1257 = vmatmul.mubr.bf16.gmra.mrb[0].mxu0 %v1194
    %v1258 = vpop.f32.mrb[0].mxu0
    %v1259 = vadd.f32 0.0, %v1258
    %v1260 = vpop.f32.mrb[0].mxu0
    %v1261 = vpop.f32.mrb[0].mxu0
    %v1262 = vadd.f32 0.0, %v1261
    %v1263 = vpop.f32.mrb[0].mxu0
    %1264 = vmatprep.mubr.bf16.mxu0 %v1211
    %1265 = vmatmul.mubr.bf16.gmra.mrb[0].mxu0 %v1196
    %v1266 = vpop.f32.mrb[0].mxu0
    %v1267 = vadd.f32 0.0, %v1266
    %v1268 = vpop.f32.mrb[0].mxu0
    %v1269 = vpop.f32.mrb[0].mxu0
    %v1270 = vadd.f32 0.0, %v1269
    %v1271 = vpop.f32.mrb[0].mxu0
    %1272 = vmatprep.mubr.bf16.mxu0 %v1214
    %1273 = vmatmul.mubr.bf16.gmra.mrb[0].mxu0 %v1198
    %v1274 = vpop.f32.mrb[0].mxu0
    %v1275 = vadd.f32 0.0, %v1274
    %v1276 = vpop.f32.mrb[0].mxu0
    %v1277 = vpop.f32.mrb[0].mxu0
    %v1278 = vadd.f32 0.0, %v1277
    %v1279 = vpop.f32.mrb[0].mxu0
    %1280 = vdwg.mxu0
    %v1281 = vpack.c.bf16 %v1254, %v1251
    %v1282 = vpack.c.bf16 %v1262, %v1259
    %v1283 = vpack.c.bf16 %v1270, %v1267
    %v1284 = vpack.c.bf16 %v1278, %v1275
    %s1285 = scalar_lea.vmem %s6, 192
    %v1286 = vld [vmem:[%s1285] sm:$0xf]
    %v1287 = vld [vmem:[%s1285 + $0x4] sm:$0xf]
    %v1288 = vld [vmem:[%s1285 + $0x8] sm:$0xf]
    %v1289 = vld [vmem:[%s1285 + $0xc] sm:$0xf]
    %v1290 = vld [vmem:[%s1285 + $0x10] sm:$0xf]
    %v1291 = vld [vmem:[%s1285 + $0x14] sm:$0xf]
    %v1292 = vld [vmem:[%s1285 + $0x18] sm:$0xf]
    %v1293 = vld [vmem:[%s1285 + $0x1c] sm:$0xf]
    %v1294 = vld [vmem:[%s1285 + $0x20] sm:$0xf]
    %v1295 = vld [vmem:[%s1285 + $0x24] sm:$0xf]
    %v1296 = vld [vmem:[%s1285 + $0x28] sm:$0xf]
    %v1297 = vld [vmem:[%s1285 + $0x2c] sm:$0xf]
    %v1298 = vld [vmem:[%s1285 + $0x30] sm:$0xf]
    %v1299 = vld [vmem:[%s1285 + $0x34] sm:$0xf]
    %v1300 = vld [vmem:[%s1285 + $0x38] sm:$0xf]
    %v1301 = vld [vmem:[%s1285 + $0x3c] sm:$0xf]
    %v1318 = vunpack.c.l.b16 %v1286
    %v1319 = vunpack.c.l.b16 %v1287
    %v1320 = vunpack.c.l.b16 %v1288
    %v1321 = vunpack.c.l.b16 %v1289
    %v1322 = vunpack.c.l.b16 %v1290
    %v1323 = vunpack.c.l.b16 %v1291
    %v1324 = vunpack.c.l.b16 %v1292
    %v1325 = vunpack.c.l.b16 %v1293
    %v1326 = vunpack.c.l.b16 %v1294
    %v1327 = vunpack.c.l.b16 %v1295
    %v1328 = vunpack.c.l.b16 %v1296
    %v1329 = vunpack.c.l.b16 %v1297
    %v1330 = vunpack.c.l.b16 %v1298
    %v1331 = vunpack.c.l.b16 %v1299
    %v1332 = vunpack.c.l.b16 %v1300
    %v1333 = vunpack.c.l.b16 %v1301
    %v1334 = vpack.c.b16 %v1319, %v1318
    %v1335 = vpack.c.b16 %v1321, %v1320
    %v1336 = vpack.c.b16 %v1323, %v1322
    %v1337 = vpack.c.b16 %v1325, %v1324
    %v1338 = vpack.c.b16 %v1327, %v1326
    %v1339 = vpack.c.b16 %v1329, %v1328
    %v1340 = vpack.c.b16 %v1331, %v1330
    %v1341 = vpack.c.b16 %v1333, %v1332
    %1350 = vmatprep.subr.bf16.mxu0 0
    %1351 = vmatpush1.bf16.msra.mxu0 %v1334
    %1352 = vmatprep.subr.bf16.mxu0 0
    %1353 = vmatpush1.bf16.msra.mxu0 %v1335
    %1354 = vmatprep.subr.bf16.mxu0 0
    %1355 = vmatpush1.bf16.msra.mxu0 %v1336
    %1356 = vmatprep.subr.bf16.mxu0 0
    %1357 = vmatpush1.bf16.msra.mxu0 %v1337
    %1358 = vmatprep.subr.bf16.mxu0 0
    %1359 = vmatpush1.bf16.msra.mxu0 %v1338
    %1360 = vmatprep.subr.bf16.mxu0 0
    %1361 = vmatpush1.bf16.msra.mxu0 %v1339
    %1362 = vmatprep.subr.bf16.mxu0 0
    %1363 = vmatpush1.bf16.msra.mxu0 %v1340
    %1364 = vmatprep.subr.bf16.mxu0 0
    %1365 = vmatpush1.bf16.msra.mxu0 %v1341
    %1366 = vmatprep.subr.bf16.mxu0 0
    %1367 = vmatpush1.bf16.msra.mxu0 0
    %1368 = vmatprep.subr.bf16.mxu0 0
    %1369 = vmatpush1.bf16.msra.mxu0 0
    %1370 = vmatprep.subr.bf16.mxu0 0
    %1371 = vmatpush1.bf16.msra.mxu0 0
    %1372 = vmatprep.subr.bf16.mxu0 0
    %1373 = vmatpush1.bf16.msra.mxu0 0
    %1374 = vmatprep.subr.bf16.mxu0 0
    %1375 = vmatpush1.bf16.msra.mxu0 0
    %1376 = vmatprep.subr.bf16.mxu0 0
    %1377 = vmatpush1.bf16.msra.mxu0 0
    %1378 = vmatprep.subr.bf16.mxu0 0
    %1379 = vmatpush1.bf16.msra.mxu0 0
    %1380 = vmatprep.subr.bf16.mxu0 0
    %1381 = vmatpush1.bf16.msra.mxu0 0
    %1382 = vmatprep.mubr.bf16.mxu0 0
    %1383 = vmatmul.mubr.bf16.gmra.mrb[0].mxu0 %v1281
    %v1384 = vpop.f32.mrb[0].mxu0
    %v1385 = vadd.f32 0.0, %v1384
    %v1386 = vpop.f32.mrb[0].mxu0
    %v1387 = vpop.f32.mrb[0].mxu0
    %v1388 = vadd.f32 0.0, %v1387
    %v1389 = vpop.f32.mrb[0].mxu0
    %1390 = vmatprep.mubr.bf16.mxu0 0
    %1391 = vmatmul.mubr.bf16.gmra.mrb[0].mxu0 %v1282
    %v1392 = vpop.f32.mrb[0].mxu0
    %v1393 = vadd.f32 0.0, %v1392
    %v1394 = vpop.f32.mrb[0].mxu0
    %v1395 = vpop.f32.mrb[0].mxu0
    %v1396 = vadd.f32 0.0, %v1395
    %v1397 = vpop.f32.mrb[0].mxu0
    %1398 = vmatprep.mubr.bf16.mxu0 0
    %1399 = vmatmul.mubr.bf16.gmra.mrb[0].mxu0 %v1283
    %v1400 = vpop.f32.mrb[0].mxu0
    %v1401 = vadd.f32 0.0, %v1400
    %v1402 = vpop.f32.mrb[0].mxu0
    %v1403 = vpop.f32.mrb[0].mxu0
    %v1404 = vadd.f32 0.0, %v1403
    %v1405 = vpop.f32.mrb[0].mxu0
    %1406 = vmatprep.mubr.bf16.mxu0 0
    %1407 = vmatmul.mubr.bf16.gmra.mrb[0].mxu0 %v1284
    %v1408 = vpop.f32.mrb[0].mxu0
    %v1409 = vadd.f32 0.0, %v1408
    %v1410 = vpop.f32.mrb[0].mxu0
    %v1411 = vpop.f32.mrb[0].mxu0
    %v1412 = vadd.f32 0.0, %v1411
    %v1413 = vpop.f32.mrb[0].mxu0
    %1414 = vdwg.mxu0
    %v1415 = vadd.f32 %v1151, %v1385
    %v1416 = vadd.f32 %v1152, %v1388
    %v1417 = vadd.f32 %v1153, %v1393
    %v1418 = vadd.f32 %v1154, %v1396
    %v1419 = vadd.f32 %v1155, %v1401
    %v1420 = vadd.f32 %v1156, %v1404
    %v1421 = vadd.f32 %v1157, %v1409
    %v1422 = vadd.f32 %v1158, %v1412
    %s1423 = scalar_lea.vmem %s5, 256
    %v1424 = vld [vmem:[%s1423] sm:$0xff]
    %v1425 = vld [vmem:[%s1423 + $0x8] sm:$0xff]
    %v1426 = vld [vmem:[%s1423 + $0x10] sm:$0xff]
    %v1427 = vld [vmem:[%s1423 + $0x18] sm:$0xff]
    %v1428 = vld [vmem:[%s1423 + $0x20] sm:$0xff]
    %v1429 = vld [vmem:[%s1423 + $0x28] sm:$0xff]
    %v1430 = vld [vmem:[%s1423 + $0x30] sm:$0xff]
    %v1431 = vld [vmem:[%s1423 + $0x38] sm:$0xff]
    %v1440 = vunpack.c.l.b16 %v1424
    %v1441 = vunpack.c.h.b16 %v1424
    %v1442 = vunpack.c.l.b16 %v1425
    %v1443 = vunpack.c.h.b16 %v1425
    %v1444 = vunpack.c.l.b16 %v1426
    %v1445 = vunpack.c.h.b16 %v1426
    %v1446 = vunpack.c.l.b16 %v1427
    %v1447 = vunpack.c.h.b16 %v1427
    %v1448 = vunpack.c.l.b16 %v1428
    %v1449 = vunpack.c.h.b16 %v1428
    %v1450 = vunpack.c.l.b16 %v1429
    %v1451 = vunpack.c.h.b16 %v1429
    %v1452 = vunpack.c.l.b16 %v1430
    %v1453 = vunpack.c.h.b16 %v1430
    %v1454 = vunpack.c.l.b16 %v1431
    %v1455 = vunpack.c.h.b16 %v1431
    %v1456 = vpack.c.b16 %v1442, %v1440
    %v1457 = vpack.c.b16 %v1443, %v1441
    %v1458 = vpack.c.b16 %v1446, %v1444
    %v1459 = vpack.c.b16 %v1447, %v1445
    %v1460 = vpack.c.b16 %v1450, %v1448
    %v1461 = vpack.c.b16 %v1451, %v1449
    %v1462 = vpack.c.b16 %v1454, %v1452
    %v1463 = vpack.c.b16 %v1455, %v1453
    %v1469 = vsel %vm424, %v1457, 0
    %v1472 = vsel %vm424, %v1459, 0
    %v1475 = vsel %vm424, %v1461, 0
    %v1478 = vsel %vm424, %v1463, 0
    %1480 = vmatprep.subr.bf16.mxu0 0
    %1481 = vmatpush1.bf16.msra.mxu0 %v369
    %1482 = vmatprep.subr.bf16.mxu0 0
    %1483 = vmatpush1.bf16.msra.mxu0 %v370
    %1484 = vmatprep.subr.bf16.mxu0 0
    %1485 = vmatpush1.bf16.msra.mxu0 %v371
    %1486 = vmatprep.subr.bf16.mxu0 0
    %1487 = vmatpush1.bf16.msra.mxu0 %v372
    %1488 = vmatprep.subr.bf16.mxu0 0
    %1489 = vmatpush1.bf16.msra.mxu0 %v373
    %1490 = vmatprep.subr.bf16.mxu0 0
    %1491 = vmatpush1.bf16.msra.mxu0 %v374
    %1492 = vmatprep.subr.bf16.mxu0 0
    %1493 = vmatpush1.bf16.msra.mxu0 %v375
    %1494 = vmatprep.subr.bf16.mxu0 0
    %1495 = vmatpush1.bf16.msra.mxu0 %v376
    %1496 = vmatprep.subr.bf16.mxu0 0
    %1497 = vmatpush1.bf16.msra.mxu0 %v377
    %1498 = vmatprep.subr.bf16.mxu0 0
    %1499 = vmatpush1.bf16.msra.mxu0 %v378
    %1500 = vmatprep.subr.bf16.mxu0 0
    %1501 = vmatpush1.bf16.msra.mxu0 %v439
    %1502 = vmatprep.subr.bf16.mxu0 0
    %1503 = vmatpush1.bf16.msra.mxu0 0
    %1504 = vmatprep.subr.bf16.mxu0 0
    %1505 = vmatpush1.bf16.msra.mxu0 0
    %1506 = vmatprep.subr.bf16.mxu0 0
    %1507 = vmatpush1.bf16.msra.mxu0 0
    %1508 = vmatprep.subr.bf16.mxu0 0
    %1509 = vmatpush1.bf16.msra.mxu0 0
    %1510 = vmatprep.subr.bf16.mxu0 0
    %1511 = vmatpush1.bf16.msra.mxu0 0
    %1512 = vmatprep.mubr.bf16.mxu0 %v1469
    %1513 = vmatmul.mubr.bf16.gmra.mrb[0].mxu0 %v1456
    %v1514 = vpop.f32.mrb[0].mxu0
    %v1515 = vadd.f32 0.0, %v1514
    %v1516 = vpop.f32.mrb[0].mxu0
    %v1517 = vpop.f32.mrb[0].mxu0
    %v1518 = vadd.f32 0.0, %v1517
    %v1519 = vpop.f32.mrb[0].mxu0
    %1520 = vmatprep.mubr.bf16.mxu0 %v1472
    %1521 = vmatmul.mubr.bf16.gmra.mrb[0].mxu0 %v1458
    %v1522 = vpop.f32.mrb[0].mxu0
    %v1523 = vadd.f32 0.0, %v1522
    %v1524 = vpop.f32.mrb[0].mxu0
    %v1525 = vpop.f32.mrb[0].mxu0
    %v1526 = vadd.f32 0.0, %v1525
    %v1527 = vpop.f32.mrb[0].mxu0
    %1528 = vmatprep.mubr.bf16.mxu0 %v1475
    %1529 = vmatmul.mubr.bf16.gmra.mrb[0].mxu0 %v1460
    %v1530 = vpop.f32.mrb[0].mxu0
    %v1531 = vadd.f32 0.0, %v1530
    %v1532 = vpop.f32.mrb[0].mxu0
    %v1533 = vpop.f32.mrb[0].mxu0
    %v1534 = vadd.f32 0.0, %v1533
    %v1535 = vpop.f32.mrb[0].mxu0
    %1536 = vmatprep.mubr.bf16.mxu0 %v1478
    %1537 = vmatmul.mubr.bf16.gmra.mrb[0].mxu0 %v1462
    %v1538 = vpop.f32.mrb[0].mxu0
    %v1539 = vadd.f32 0.0, %v1538
    %v1540 = vpop.f32.mrb[0].mxu0
    %v1541 = vpop.f32.mrb[0].mxu0
    %v1542 = vadd.f32 0.0, %v1541
    %v1543 = vpop.f32.mrb[0].mxu0
    %1544 = vdwg.mxu0
    %v1545 = vpack.c.bf16 %v1518, %v1515
    %v1546 = vpack.c.bf16 %v1526, %v1523
    %v1547 = vpack.c.bf16 %v1534, %v1531
    %v1548 = vpack.c.bf16 %v1542, %v1539
    %s1549 = scalar_lea.vmem %s6, 256
    %v1550 = vld [vmem:[%s1549] sm:$0xf]
    %v1551 = vld [vmem:[%s1549 + $0x4] sm:$0xf]
    %v1552 = vld [vmem:[%s1549 + $0x8] sm:$0xf]
    %v1553 = vld [vmem:[%s1549 + $0xc] sm:$0xf]
    %v1554 = vld [vmem:[%s1549 + $0x10] sm:$0xf]
    %v1555 = vld [vmem:[%s1549 + $0x14] sm:$0xf]
    %v1556 = vld [vmem:[%s1549 + $0x18] sm:$0xf]
    %v1557 = vld [vmem:[%s1549 + $0x1c] sm:$0xf]
    %v1558 = vld [vmem:[%s1549 + $0x20] sm:$0xf]
    %v1559 = vld [vmem:[%s1549 + $0x24] sm:$0xf]
    %v1560 = vld [vmem:[%s1549 + $0x28] sm:$0xf]
    %v1561 = vld [vmem:[%s1549 + $0x2c] sm:$0xf]
    %v1562 = vld [vmem:[%s1549 + $0x30] sm:$0xf]
    %v1563 = vld [vmem:[%s1549 + $0x34] sm:$0xf]
    %v1564 = vld [vmem:[%s1549 + $0x38] sm:$0xf]
    %v1565 = vld [vmem:[%s1549 + $0x3c] sm:$0xf]
    %v1582 = vunpack.c.l.b16 %v1550
    %v1583 = vunpack.c.l.b16 %v1551
    %v1584 = vunpack.c.l.b16 %v1552
    %v1585 = vunpack.c.l.b16 %v1553
    %v1586 = vunpack.c.l.b16 %v1554
    %v1587 = vunpack.c.l.b16 %v1555
    %v1588 = vunpack.c.l.b16 %v1556
    %v1589 = vunpack.c.l.b16 %v1557
    %v1590 = vunpack.c.l.b16 %v1558
    %v1591 = vunpack.c.l.b16 %v1559
    %v1592 = vunpack.c.l.b16 %v1560
    %v1593 = vunpack.c.l.b16 %v1561
    %v1594 = vunpack.c.l.b16 %v1562
    %v1595 = vunpack.c.l.b16 %v1563
    %v1596 = vunpack.c.l.b16 %v1564
    %v1597 = vunpack.c.l.b16 %v1565
    %v1598 = vpack.c.b16 %v1583, %v1582
    %v1599 = vpack.c.b16 %v1585, %v1584
    %v1600 = vpack.c.b16 %v1587, %v1586
    %v1601 = vpack.c.b16 %v1589, %v1588
    %v1602 = vpack.c.b16 %v1591, %v1590
    %v1603 = vpack.c.b16 %v1593, %v1592
    %v1604 = vpack.c.b16 %v1595, %v1594
    %v1605 = vpack.c.b16 %v1597, %v1596
    %1614 = vmatprep.subr.bf16.mxu0 0
    %1615 = vmatpush1.bf16.msra.mxu0 %v1598
    %1616 = vmatprep.subr.bf16.mxu0 0
    %1617 = vmatpush1.bf16.msra.mxu0 %v1599
    %1618 = vmatprep.subr.bf16.mxu0 0
    %1619 = vmatpush1.bf16.msra.mxu0 %v1600
    %1620 = vmatprep.subr.bf16.mxu0 0
    %1621 = vmatpush1.bf16.msra.mxu0 %v1601
    %1622 = vmatprep.subr.bf16.mxu0 0
    %1623 = vmatpush1.bf16.msra.mxu0 %v1602
    %1624 = vmatprep.subr.bf16.mxu0 0
    %1625 = vmatpush1.bf16.msra.mxu0 %v1603
    %1626 = vmatprep.subr.bf16.mxu0 0
    %1627 = vmatpush1.bf16.msra.mxu0 %v1604
    %1628 = vmatprep.subr.bf16.mxu0 0
    %1629 = vmatpush1.bf16.msra.mxu0 %v1605
    %1630 = vmatprep.subr.bf16.mxu0 0
    %1631 = vmatpush1.bf16.msra.mxu0 0
    %1632 = vmatprep.subr.bf16.mxu0 0
    %1633 = vmatpush1.bf16.msra.mxu0 0
    %1634 = vmatprep.subr.bf16.mxu0 0
    %1635 = vmatpush1.bf16.msra.mxu0 0
    %1636 = vmatprep.subr.bf16.mxu0 0
    %1637 = vmatpush1.bf16.msra.mxu0 0
    %1638 = vmatprep.subr.bf16.mxu0 0
    %1639 = vmatpush1.bf16.msra.mxu0 0
    %1640 = vmatprep.subr.bf16.mxu0 0
    %1641 = vmatpush1.bf16.msra.mxu0 0
    %1642 = vmatprep.subr.bf16.mxu0 0
    %1643 = vmatpush1.bf16.msra.mxu0 0
    %1644 = vmatprep.subr.bf16.mxu0 0
    %1645 = vmatpush1.bf16.msra.mxu0 0
    %1646 = vmatprep.mubr.bf16.mxu0 0
    %1647 = vmatmul.mubr.bf16.gmra.mrb[0].mxu0 %v1545
    %v1648 = vpop.f32.mrb[0].mxu0
    %v1649 = vadd.f32 0.0, %v1648
    %v1650 = vpop.f32.mrb[0].mxu0
    %v1651 = vpop.f32.mrb[0].mxu0
    %v1652 = vadd.f32 0.0, %v1651
    %v1653 = vpop.f32.mrb[0].mxu0
    %1654 = vmatprep.mubr.bf16.mxu0 0
    %1655 = vmatmul.mubr.bf16.gmra.mrb[0].mxu0 %v1546
    %v1656 = vpop.f32.mrb[0].mxu0
    %v1657 = vadd.f32 0.0, %v1656
    %v1658 = vpop.f32.mrb[0].mxu0
    %v1659 = vpop.f32.mrb[0].mxu0
    %v1660 = vadd.f32 0.0, %v1659
    %v1661 = vpop.f32.mrb[0].mxu0
    %1662 = vmatprep.mubr.bf16.mxu0 0
    %1663 = vmatmul.mubr.bf16.gmra.mrb[0].mxu0 %v1547
    %v1664 = vpop.f32.mrb[0].mxu0
    %v1665 = vadd.f32 0.0, %v1664
    %v1666 = vpop.f32.mrb[0].mxu0
    %v1667 = vpop.f32.mrb[0].mxu0
    %v1668 = vadd.f32 0.0, %v1667
    %v1669 = vpop.f32.mrb[0].mxu0
    %1670 = vmatprep.mubr.bf16.mxu0 0
    %1671 = vmatmul.mubr.bf16.gmra.mrb[0].mxu0 %v1548
    %v1672 = vpop.f32.mrb[0].mxu0
    %v1673 = vadd.f32 0.0, %v1672
    %v1674 = vpop.f32.mrb[0].mxu0
    %v1675 = vpop.f32.mrb[0].mxu0
    %v1676 = vadd.f32 0.0, %v1675
    %v1677 = vpop.f32.mrb[0].mxu0
    %1678 = vdwg.mxu0
    %v1679 = vadd.f32 %v1415, %v1649
    %v1680 = vadd.f32 %v1416, %v1652
    %v1681 = vadd.f32 %v1417, %v1657
    %v1682 = vadd.f32 %v1418, %v1660
    %v1683 = vadd.f32 %v1419, %v1665
    %v1684 = vadd.f32 %v1420, %v1668
    %v1685 = vadd.f32 %v1421, %v1673
    %v1686 = vadd.f32 %v1422, %v1676
    %s1687 = scalar_lea.vmem %s5, 320
    %v1688 = vld [vmem:[%s1687] sm:$0xff]
    %v1689 = vld [vmem:[%s1687 + $0x8] sm:$0xff]
    %v1690 = vld [vmem:[%s1687 + $0x10] sm:$0xff]
    %v1691 = vld [vmem:[%s1687 + $0x18] sm:$0xff]
    %v1692 = vld [vmem:[%s1687 + $0x20] sm:$0xff]
    %v1693 = vld [vmem:[%s1687 + $0x28] sm:$0xff]
    %v1694 = vld [vmem:[%s1687 + $0x30] sm:$0xff]
    %v1695 = vld [vmem:[%s1687 + $0x38] sm:$0xff]
    %v1704 = vunpack.c.l.b16 %v1688
    %v1705 = vunpack.c.h.b16 %v1688
    %v1706 = vunpack.c.l.b16 %v1689
    %v1707 = vunpack.c.h.b16 %v1689
    %v1708 = vunpack.c.l.b16 %v1690
    %v1709 = vunpack.c.h.b16 %v1690
    %v1710 = vunpack.c.l.b16 %v1691
    %v1711 = vunpack.c.h.b16 %v1691
    %v1712 = vunpack.c.l.b16 %v1692
    %v1713 = vunpack.c.h.b16 %v1692
    %v1714 = vunpack.c.l.b16 %v1693
    %v1715 = vunpack.c.h.b16 %v1693
    %v1716 = vunpack.c.l.b16 %v1694
    %v1717 = vunpack.c.h.b16 %v1694
    %v1718 = vunpack.c.l.b16 %v1695
    %v1719 = vunpack.c.h.b16 %v1695
    %v1720 = vpack.c.b16 %v1706, %v1704
    %v1721 = vpack.c.b16 %v1707, %v1705
    %v1722 = vpack.c.b16 %v1710, %v1708
    %v1723 = vpack.c.b16 %v1711, %v1709
    %v1724 = vpack.c.b16 %v1714, %v1712
    %v1725 = vpack.c.b16 %v1715, %v1713
    %v1726 = vpack.c.b16 %v1718, %v1716
    %v1727 = vpack.c.b16 %v1719, %v1717
    %v1733 = vsel %vm424, %v1721, 0
    %v1736 = vsel %vm424, %v1723, 0
    %v1739 = vsel %vm424, %v1725, 0
    %v1742 = vsel %vm424, %v1727, 0
    %1744 = vmatprep.subr.bf16.mxu0 0
    %1745 = vmatpush1.bf16.msra.mxu0 %v369
    %1746 = vmatprep.subr.bf16.mxu0 0
    %1747 = vmatpush1.bf16.msra.mxu0 %v370
    %1748 = vmatprep.subr.bf16.mxu0 0
    %1749 = vmatpush1.bf16.msra.mxu0 %v371
    %1750 = vmatprep.subr.bf16.mxu0 0
    %1751 = vmatpush1.bf16.msra.mxu0 %v372
    %1752 = vmatprep.subr.bf16.mxu0 0
    %1753 = vmatpush1.bf16.msra.mxu0 %v373
    %1754 = vmatprep.subr.bf16.mxu0 0
    %1755 = vmatpush1.bf16.msra.mxu0 %v374
    %1756 = vmatprep.subr.bf16.mxu0 0
    %1757 = vmatpush1.bf16.msra.mxu0 %v375
    %1758 = vmatprep.subr.bf16.mxu0 0
    %1759 = vmatpush1.bf16.msra.mxu0 %v376
    %1760 = vmatprep.subr.bf16.mxu0 0
    %1761 = vmatpush1.bf16.msra.mxu0 %v377
    %1762 = vmatprep.subr.bf16.mxu0 0
    %1763 = vmatpush1.bf16.msra.mxu0 %v378
    %1764 = vmatprep.subr.bf16.mxu0 0
    %1765 = vmatpush1.bf16.msra.mxu0 %v439
    %1766 = vmatprep.subr.bf16.mxu0 0
    %1767 = vmatpush1.bf16.msra.mxu0 0
    %1768 = vmatprep.subr.bf16.mxu0 0
    %1769 = vmatpush1.bf16.msra.mxu0 0
    %1770 = vmatprep.subr.bf16.mxu0 0
    %1771 = vmatpush1.bf16.msra.mxu0 0
    %1772 = vmatprep.subr.bf16.mxu0 0
    %1773 = vmatpush1.bf16.msra.mxu0 0
    %1774 = vmatprep.subr.bf16.mxu0 0
    %1775 = vmatpush1.bf16.msra.mxu0 0
    %1776 = vmatprep.mubr.bf16.mxu0 %v1733
    %1777 = vmatmul.mubr.bf16.gmra.mrb[0].mxu0 %v1720
    %v1778 = vpop.f32.mrb[0].mxu0
    %v1779 = vadd.f32 0.0, %v1778
    %v1780 = vpop.f32.mrb[0].mxu0
    %v1781 = vpop.f32.mrb[0].mxu0
    %v1782 = vadd.f32 0.0, %v1781
    %v1783 = vpop.f32.mrb[0].mxu0
    %1784 = vmatprep.mubr.bf16.mxu0 %v1736
    %1785 = vmatmul.mubr.bf16.gmra.mrb[0].mxu0 %v1722
    %v1786 = vpop.f32.mrb[0].mxu0
    %v1787 = vadd.f32 0.0, %v1786
    %v1788 = vpop.f32.mrb[0].mxu0
    %v1789 = vpop.f32.mrb[0].mxu0
    %v1790 = vadd.f32 0.0, %v1789
    %v1791 = vpop.f32.mrb[0].mxu0
    %1792 = vmatprep.mubr.bf16.mxu0 %v1739
    %1793 = vmatmul.mubr.bf16.gmra.mrb[0].mxu0 %v1724
    %v1794 = vpop.f32.mrb[0].mxu0
    %v1795 = vadd.f32 0.0, %v1794
    %v1796 = vpop.f32.mrb[0].mxu0
    %v1797 = vpop.f32.mrb[0].mxu0
    %v1798 = vadd.f32 0.0, %v1797
    %v1799 = vpop.f32.mrb[0].mxu0
    %1800 = vmatprep.mubr.bf16.mxu0 %v1742
    %1801 = vmatmul.mubr.bf16.gmra.mrb[0].mxu0 %v1726
    %v1802 = vpop.f32.mrb[0].mxu0
    %v1803 = vadd.f32 0.0, %v1802
    %v1804 = vpop.f32.mrb[0].mxu0
    %v1805 = vpop.f32.mrb[0].mxu0
    %v1806 = vadd.f32 0.0, %v1805
    %v1807 = vpop.f32.mrb[0].mxu0
    %1808 = vdwg.mxu0
    %v1809 = vpack.c.bf16 %v1782, %v1779
    %v1810 = vpack.c.bf16 %v1790, %v1787
    %v1811 = vpack.c.bf16 %v1798, %v1795
    %v1812 = vpack.c.bf16 %v1806, %v1803
    %s1813 = scalar_lea.vmem %s6, 320
    %v1814 = vld [vmem:[%s1813] sm:$0xf]
    %v1815 = vld [vmem:[%s1813 + $0x4] sm:$0xf]
    %v1816 = vld [vmem:[%s1813 + $0x8] sm:$0xf]
    %v1817 = vld [vmem:[%s1813 + $0xc] sm:$0xf]
    %v1818 = vld [vmem:[%s1813 + $0x10] sm:$0xf]
    %v1819 = vld [vmem:[%s1813 + $0x14] sm:$0xf]
    %v1820 = vld [vmem:[%s1813 + $0x18] sm:$0xf]
    %v1821 = vld [vmem:[%s1813 + $0x1c] sm:$0xf]
    %v1822 = vld [vmem:[%s1813 + $0x20] sm:$0xf]
    %v1823 = vld [vmem:[%s1813 + $0x24] sm:$0xf]
    %v1824 = vld [vmem:[%s1813 + $0x28] sm:$0xf]
    %v1825 = vld [vmem:[%s1813 + $0x2c] sm:$0xf]
    %v1826 = vld [vmem:[%s1813 + $0x30] sm:$0xf]
    %v1827 = vld [vmem:[%s1813 + $0x34] sm:$0xf]
    %v1828 = vld [vmem:[%s1813 + $0x38] sm:$0xf]
    %v1829 = vld [vmem:[%s1813 + $0x3c] sm:$0xf]
    %v1846 = vunpack.c.l.b16 %v1814
    %v1847 = vunpack.c.l.b16 %v1815
    %v1848 = vunpack.c.l.b16 %v1816
    %v1849 = vunpack.c.l.b16 %v1817
    %v1850 = vunpack.c.l.b16 %v1818
    %v1851 = vunpack.c.l.b16 %v1819
    %v1852 = vunpack.c.l.b16 %v1820
    %v1853 = vunpack.c.l.b16 %v1821
    %v1854 = vunpack.c.l.b16 %v1822
    %v1855 = vunpack.c.l.b16 %v1823
    %v1856 = vunpack.c.l.b16 %v1824
    %v1857 = vunpack.c.l.b16 %v1825
    %v1858 = vunpack.c.l.b16 %v1826
    %v1859 = vunpack.c.l.b16 %v1827
    %v1860 = vunpack.c.l.b16 %v1828
    %v1861 = vunpack.c.l.b16 %v1829
    %v1862 = vpack.c.b16 %v1847, %v1846
    %v1863 = vpack.c.b16 %v1849, %v1848
    %v1864 = vpack.c.b16 %v1851, %v1850
    %v1865 = vpack.c.b16 %v1853, %v1852
    %v1866 = vpack.c.b16 %v1855, %v1854
    %v1867 = vpack.c.b16 %v1857, %v1856
    %v1868 = vpack.c.b16 %v1859, %v1858
    %v1869 = vpack.c.b16 %v1861, %v1860
    %1878 = vmatprep.subr.bf16.mxu0 0
    %1879 = vmatpush1.bf16.msra.mxu0 %v1862
    %1880 = vmatprep.subr.bf16.mxu0 0
    %1881 = vmatpush1.bf16.msra.mxu0 %v1863
    %1882 = vmatprep.subr.bf16.mxu0 0
    %1883 = vmatpush1.bf16.msra.mxu0 %v1864
    %1884 = vmatprep.subr.bf16.mxu0 0
    %1885 = vmatpush1.bf16.msra.mxu0 %v1865
    %1886 = vmatprep.subr.bf16.mxu0 0
    %1887 = vmatpush1.bf16.msra.mxu0 %v1866
    %1888 = vmatprep.subr.bf16.mxu0 0
    %1889 = vmatpush1.bf16.msra.mxu0 %v1867
    %1890 = vmatprep.subr.bf16.mxu0 0
    %1891 = vmatpush1.bf16.msra.mxu0 %v1868
    %1892 = vmatprep.subr.bf16.mxu0 0
    %1893 = vmatpush1.bf16.msra.mxu0 %v1869
    %1894 = vmatprep.subr.bf16.mxu0 0
    %1895 = vmatpush1.bf16.msra.mxu0 0
    %1896 = vmatprep.subr.bf16.mxu0 0
    %1897 = vmatpush1.bf16.msra.mxu0 0
    %1898 = vmatprep.subr.bf16.mxu0 0
    %1899 = vmatpush1.bf16.msra.mxu0 0
    %1900 = vmatprep.subr.bf16.mxu0 0
    %1901 = vmatpush1.bf16.msra.mxu0 0
    %1902 = vmatprep.subr.bf16.mxu0 0
    %1903 = vmatpush1.bf16.msra.mxu0 0
    %1904 = vmatprep.subr.bf16.mxu0 0
    %1905 = vmatpush1.bf16.msra.mxu0 0
    %1906 = vmatprep.subr.bf16.mxu0 0
    %1907 = vmatpush1.bf16.msra.mxu0 0
    %1908 = vmatprep.subr.bf16.mxu0 0
    %1909 = vmatpush1.bf16.msra.mxu0 0
    %1910 = vmatprep.mubr.bf16.mxu0 0
    %1911 = vmatmul.mubr.bf16.gmra.mrb[0].mxu0 %v1809
    %v1912 = vpop.f32.mrb[0].mxu0
    %v1913 = vadd.f32 0.0, %v1912
    %v1914 = vpop.f32.mrb[0].mxu0
    %v1915 = vpop.f32.mrb[0].mxu0
    %v1916 = vadd.f32 0.0, %v1915
    %v1917 = vpop.f32.mrb[0].mxu0
    %1918 = vmatprep.mubr.bf16.mxu0 0
    %1919 = vmatmul.mubr.bf16.gmra.mrb[0].mxu0 %v1810
    %v1920 = vpop.f32.mrb[0].mxu0
    %v1921 = vadd.f32 0.0, %v1920
    %v1922 = vpop.f32.mrb[0].mxu0
    %v1923 = vpop.f32.mrb[0].mxu0
    %v1924 = vadd.f32 0.0, %v1923
    %v1925 = vpop.f32.mrb[0].mxu0
    %1926 = vmatprep.mubr.bf16.mxu0 0
    %1927 = vmatmul.mubr.bf16.gmra.mrb[0].mxu0 %v1811
    %v1928 = vpop.f32.mrb[0].mxu0
    %v1929 = vadd.f32 0.0, %v1928
    %v1930 = vpop.f32.mrb[0].mxu0
    %v1931 = vpop.f32.mrb[0].mxu0
    %v1932 = vadd.f32 0.0, %v1931
    %v1933 = vpop.f32.mrb[0].mxu0
    %1934 = vmatprep.mubr.bf16.mxu0 0
    %1935 = vmatmul.mubr.bf16.gmra.mrb[0].mxu0 %v1812
    %v1936 = vpop.f32.mrb[0].mxu0
    %v1937 = vadd.f32 0.0, %v1936
    %v1938 = vpop.f32.mrb[0].mxu0
    %v1939 = vpop.f32.mrb[0].mxu0
    %v1940 = vadd.f32 0.0, %v1939
    %v1941 = vpop.f32.mrb[0].mxu0
    %1942 = vdwg.mxu0
    %v1943 = vadd.f32 %v1679, %v1913
    %v1944 = vadd.f32 %v1680, %v1916
    %v1945 = vadd.f32 %v1681, %v1921
    %v1946 = vadd.f32 %v1682, %v1924
    %v1947 = vadd.f32 %v1683, %v1929
    %v1948 = vadd.f32 %v1684, %v1932
    %v1949 = vadd.f32 %v1685, %v1937
    %v1950 = vadd.f32 %v1686, %v1940
    %s1951 = scalar_lea.vmem %s5, 384
    %v1952 = vld [vmem:[%s1951] sm:$0xff]
    %v1953 = vld [vmem:[%s1951 + $0x8] sm:$0xff]
    %v1954 = vld [vmem:[%s1951 + $0x10] sm:$0xff]
    %v1955 = vld [vmem:[%s1951 + $0x18] sm:$0xff]
    %v1956 = vld [vmem:[%s1951 + $0x20] sm:$0xff]
    %v1957 = vld [vmem:[%s1951 + $0x28] sm:$0xff]
    %v1958 = vld [vmem:[%s1951 + $0x30] sm:$0xff]
    %v1959 = vld [vmem:[%s1951 + $0x38] sm:$0xff]
    %v1968 = vunpack.c.l.b16 %v1952
    %v1969 = vunpack.c.h.b16 %v1952
    %v1970 = vunpack.c.l.b16 %v1953
    %v1971 = vunpack.c.h.b16 %v1953
    %v1972 = vunpack.c.l.b16 %v1954
    %v1973 = vunpack.c.h.b16 %v1954
    %v1974 = vunpack.c.l.b16 %v1955
    %v1975 = vunpack.c.h.b16 %v1955
    %v1976 = vunpack.c.l.b16 %v1956
    %v1977 = vunpack.c.h.b16 %v1956
    %v1978 = vunpack.c.l.b16 %v1957
    %v1979 = vunpack.c.h.b16 %v1957
    %v1980 = vunpack.c.l.b16 %v1958
    %v1981 = vunpack.c.h.b16 %v1958
    %v1982 = vunpack.c.l.b16 %v1959
    %v1983 = vunpack.c.h.b16 %v1959
    %v1984 = vpack.c.b16 %v1970, %v1968
    %v1985 = vpack.c.b16 %v1971, %v1969
    %v1986 = vpack.c.b16 %v1974, %v1972
    %v1987 = vpack.c.b16 %v1975, %v1973
    %v1988 = vpack.c.b16 %v1978, %v1976
    %v1989 = vpack.c.b16 %v1979, %v1977
    %v1990 = vpack.c.b16 %v1982, %v1980
    %v1991 = vpack.c.b16 %v1983, %v1981
    %v1997 = vsel %vm424, %v1985, 0
    %v2000 = vsel %vm424, %v1987, 0
    %v2003 = vsel %vm424, %v1989, 0
    %v2006 = vsel %vm424, %v1991, 0
    %2008 = vmatprep.subr.bf16.mxu0 0
    %2009 = vmatpush1.bf16.msra.mxu0 %v369
    %2010 = vmatprep.subr.bf16.mxu0 0
    %2011 = vmatpush1.bf16.msra.mxu0 %v370
    %2012 = vmatprep.subr.bf16.mxu0 0
    %2013 = vmatpush1.bf16.msra.mxu0 %v371
    %2014 = vmatprep.subr.bf16.mxu0 0
    %2015 = vmatpush1.bf16.msra.mxu0 %v372
    %2016 = vmatprep.subr.bf16.mxu0 0
    %2017 = vmatpush1.bf16.msra.mxu0 %v373
    %2018 = vmatprep.subr.bf16.mxu0 0
    %2019 = vmatpush1.bf16.msra.mxu0 %v374
    %2020 = vmatprep.subr.bf16.mxu0 0
    %2021 = vmatpush1.bf16.msra.mxu0 %v375
    %2022 = vmatprep.subr.bf16.mxu0 0
    %2023 = vmatpush1.bf16.msra.mxu0 %v376
    %2024 = vmatprep.subr.bf16.mxu0 0
    %2025 = vmatpush1.bf16.msra.mxu0 %v377
    %2026 = vmatprep.subr.bf16.mxu0 0
    %2027 = vmatpush1.bf16.msra.mxu0 %v378
    %2028 = vmatprep.subr.bf16.mxu0 0
    %2029 = vmatpush1.bf16.msra.mxu0 %v439
    %2030 = vmatprep.subr.bf16.mxu0 0
    %2031 = vmatpush1.bf16.msra.mxu0 0
    %2032 = vmatprep.subr.bf16.mxu0 0
    %2033 = vmatpush1.bf16.msra.mxu0 0
    %2034 = vmatprep.subr.bf16.mxu0 0
    %2035 = vmatpush1.bf16.msra.mxu0 0
    %2036 = vmatprep.subr.bf16.mxu0 0
    %2037 = vmatpush1.bf16.msra.mxu0 0
    %2038 = vmatprep.subr.bf16.mxu0 0
    %2039 = vmatpush1.bf16.msra.mxu0 0
    %2040 = vmatprep.mubr.bf16.mxu0 %v1997
    %2041 = vmatmul.mubr.bf16.gmra.mrb[0].mxu0 %v1984
    %v2042 = vpop.f32.mrb[0].mxu0
    %v2043 = vadd.f32 0.0, %v2042
    %v2044 = vpop.f32.mrb[0].mxu0
    %v2045 = vpop.f32.mrb[0].mxu0
    %v2046 = vadd.f32 0.0, %v2045
    %v2047 = vpop.f32.mrb[0].mxu0
    %2048 = vmatprep.mubr.bf16.mxu0 %v2000
    %2049 = vmatmul.mubr.bf16.gmra.mrb[0].mxu0 %v1986
    %v2050 = vpop.f32.mrb[0].mxu0
    %v2051 = vadd.f32 0.0, %v2050
    %v2052 = vpop.f32.mrb[0].mxu0
    %v2053 = vpop.f32.mrb[0].mxu0
    %v2054 = vadd.f32 0.0, %v2053
    %v2055 = vpop.f32.mrb[0].mxu0
    %2056 = vmatprep.mubr.bf16.mxu0 %v2003
    %2057 = vmatmul.mubr.bf16.gmra.mrb[0].mxu0 %v1988
    %v2058 = vpop.f32.mrb[0].mxu0
    %v2059 = vadd.f32 0.0, %v2058
    %v2060 = vpop.f32.mrb[0].mxu0
    %v2061 = vpop.f32.mrb[0].mxu0
    %v2062 = vadd.f32 0.0, %v2061
    %v2063 = vpop.f32.mrb[0].mxu0
    %2064 = vmatprep.mubr.bf16.mxu0 %v2006
    %2065 = vmatmul.mubr.bf16.gmra.mrb[0].mxu0 %v1990
    %v2066 = vpop.f32.mrb[0].mxu0
    %v2067 = vadd.f32 0.0, %v2066
    %v2068 = vpop.f32.mrb[0].mxu0
    %v2069 = vpop.f32.mrb[0].mxu0
    %v2070 = vadd.f32 0.0, %v2069
    %v2071 = vpop.f32.mrb[0].mxu0
    %2072 = vdwg.mxu0
    %v2073 = vpack.c.bf16 %v2046, %v2043
    %v2074 = vpack.c.bf16 %v2054, %v2051
    %v2075 = vpack.c.bf16 %v2062, %v2059
    %v2076 = vpack.c.bf16 %v2070, %v2067
    %s2077 = scalar_lea.vmem %s6, 384
    %v2078 = vld [vmem:[%s2077] sm:$0xf]
    %v2079 = vld [vmem:[%s2077 + $0x4] sm:$0xf]
    %v2080 = vld [vmem:[%s2077 + $0x8] sm:$0xf]
    %v2081 = vld [vmem:[%s2077 + $0xc] sm:$0xf]
    %v2082 = vld [vmem:[%s2077 + $0x10] sm:$0xf]
    %v2083 = vld [vmem:[%s2077 + $0x14] sm:$0xf]
    %v2084 = vld [vmem:[%s2077 + $0x18] sm:$0xf]
    %v2085 = vld [vmem:[%s2077 + $0x1c] sm:$0xf]
    %v2086 = vld [vmem:[%s2077 + $0x20] sm:$0xf]
    %v2087 = vld [vmem:[%s2077 + $0x24] sm:$0xf]
    %v2088 = vld [vmem:[%s2077 + $0x28] sm:$0xf]
    %v2089 = vld [vmem:[%s2077 + $0x2c] sm:$0xf]
    %v2090 = vld [vmem:[%s2077 + $0x30] sm:$0xf]
    %v2091 = vld [vmem:[%s2077 + $0x34] sm:$0xf]
    %v2092 = vld [vmem:[%s2077 + $0x38] sm:$0xf]
    %v2093 = vld [vmem:[%s2077 + $0x3c] sm:$0xf]
    %v2110 = vunpack.c.l.b16 %v2078
    %v2111 = vunpack.c.l.b16 %v2079
    %v2112 = vunpack.c.l.b16 %v2080
    %v2113 = vunpack.c.l.b16 %v2081
    %v2114 = vunpack.c.l.b16 %v2082
    %v2115 = vunpack.c.l.b16 %v2083
    %v2116 = vunpack.c.l.b16 %v2084
    %v2117 = vunpack.c.l.b16 %v2085
    %v2118 = vunpack.c.l.b16 %v2086
    %v2119 = vunpack.c.l.b16 %v2087
    %v2120 = vunpack.c.l.b16 %v2088
    %v2121 = vunpack.c.l.b16 %v2089
    %v2122 = vunpack.c.l.b16 %v2090
    %v2123 = vunpack.c.l.b16 %v2091
    %v2124 = vunpack.c.l.b16 %v2092
    %v2125 = vunpack.c.l.b16 %v2093
    %v2126 = vpack.c.b16 %v2111, %v2110
    %v2127 = vpack.c.b16 %v2113, %v2112
    %v2128 = vpack.c.b16 %v2115, %v2114
    %v2129 = vpack.c.b16 %v2117, %v2116
    %v2130 = vpack.c.b16 %v2119, %v2118
    %v2131 = vpack.c.b16 %v2121, %v2120
    %v2132 = vpack.c.b16 %v2123, %v2122
    %v2133 = vpack.c.b16 %v2125, %v2124
    %2142 = vmatprep.subr.bf16.mxu0 0
    %2143 = vmatpush1.bf16.msra.mxu0 %v2126
    %2144 = vmatprep.subr.bf16.mxu0 0
    %2145 = vmatpush1.bf16.msra.mxu0 %v2127
    %2146 = vmatprep.subr.bf16.mxu0 0
    %2147 = vmatpush1.bf16.msra.mxu0 %v2128
    %2148 = vmatprep.subr.bf16.mxu0 0
    %2149 = vmatpush1.bf16.msra.mxu0 %v2129
    %2150 = vmatprep.subr.bf16.mxu0 0
    %2151 = vmatpush1.bf16.msra.mxu0 %v2130
    %2152 = vmatprep.subr.bf16.mxu0 0
    %2153 = vmatpush1.bf16.msra.mxu0 %v2131
    %2154 = vmatprep.subr.bf16.mxu0 0
    %2155 = vmatpush1.bf16.msra.mxu0 %v2132
    %2156 = vmatprep.subr.bf16.mxu0 0
    %2157 = vmatpush1.bf16.msra.mxu0 %v2133
    %2158 = vmatprep.subr.bf16.mxu0 0
    %2159 = vmatpush1.bf16.msra.mxu0 0
    %2160 = vmatprep.subr.bf16.mxu0 0
    %2161 = vmatpush1.bf16.msra.mxu0 0
    %2162 = vmatprep.subr.bf16.mxu0 0
    %2163 = vmatpush1.bf16.msra.mxu0 0
    %2164 = vmatprep.subr.bf16.mxu0 0
    %2165 = vmatpush1.bf16.msra.mxu0 0
    %2166 = vmatprep.subr.bf16.mxu0 0
    %2167 = vmatpush1.bf16.msra.mxu0 0
    %2168 = vmatprep.subr.bf16.mxu0 0
    %2169 = vmatpush1.bf16.msra.mxu0 0
    %2170 = vmatprep.subr.bf16.mxu0 0
    %2171 = vmatpush1.bf16.msra.mxu0 0
    %2172 = vmatprep.subr.bf16.mxu0 0
    %2173 = vmatpush1.bf16.msra.mxu0 0
    %2174 = vmatprep.mubr.bf16.mxu0 0
    %2175 = vmatmul.mubr.bf16.gmra.mrb[0].mxu0 %v2073
    %v2176 = vpop.f32.mrb[0].mxu0
    %v2177 = vadd.f32 0.0, %v2176
    %v2178 = vpop.f32.mrb[0].mxu0
    %v2179 = vpop.f32.mrb[0].mxu0
    %v2180 = vadd.f32 0.0, %v2179
    %v2181 = vpop.f32.mrb[0].mxu0
    %2182 = vmatprep.mubr.bf16.mxu0 0
    %2183 = vmatmul.mubr.bf16.gmra.mrb[0].mxu0 %v2074
    %v2184 = vpop.f32.mrb[0].mxu0
    %v2185 = vadd.f32 0.0, %v2184
    %v2186 = vpop.f32.mrb[0].mxu0
    %v2187 = vpop.f32.mrb[0].mxu0
    %v2188 = vadd.f32 0.0, %v2187
    %v2189 = vpop.f32.mrb[0].mxu0
    %2190 = vmatprep.mubr.bf16.mxu0 0
    %2191 = vmatmul.mubr.bf16.gmra.mrb[0].mxu0 %v2075
    %v2192 = vpop.f32.mrb[0].mxu0
    %v2193 = vadd.f32 0.0, %v2192
    %v2194 = vpop.f32.mrb[0].mxu0
    %v2195 = vpop.f32.mrb[0].mxu0
    %v2196 = vadd.f32 0.0, %v2195
    %v2197 = vpop.f32.mrb[0].mxu0
    %2198 = vmatprep.mubr.bf16.mxu0 0
    %2199 = vmatmul.mubr.bf16.gmra.mrb[0].mxu0 %v2076
    %v2200 = vpop.f32.mrb[0].mxu0
    %v2201 = vadd.f32 0.0, %v2200
    %v2202 = vpop.f32.mrb[0].mxu0
    %v2203 = vpop.f32.mrb[0].mxu0
    %v2204 = vadd.f32 0.0, %v2203
    %v2205 = vpop.f32.mrb[0].mxu0
    %2206 = vdwg.mxu0
    %v2207 = vadd.f32 %v1943, %v2177
    %v2208 = vadd.f32 %v1944, %v2180
    %v2209 = vadd.f32 %v1945, %v2185
    %v2210 = vadd.f32 %v1946, %v2188
    %v2211 = vadd.f32 %v1947, %v2193
    %v2212 = vadd.f32 %v1948, %v2196
    %v2213 = vadd.f32 %v1949, %v2201
    %v2214 = vadd.f32 %v1950, %v2204
    %s2215 = scalar_lea.vmem %s5, 448
    %v2216 = vld [vmem:[%s2215] sm:$0xff]
    %v2217 = vld [vmem:[%s2215 + $0x8] sm:$0xff]
    %v2218 = vld [vmem:[%s2215 + $0x10] sm:$0xff]
    %v2219 = vld [vmem:[%s2215 + $0x18] sm:$0xff]
    %v2220 = vld [vmem:[%s2215 + $0x20] sm:$0xff]
    %v2221 = vld [vmem:[%s2215 + $0x28] sm:$0xff]
    %v2222 = vld [vmem:[%s2215 + $0x30] sm:$0xff]
    %v2223 = vld [vmem:[%s2215 + $0x38] sm:$0xff]
    %v2232 = vunpack.c.l.b16 %v2216
    %v2233 = vunpack.c.h.b16 %v2216
    %v2234 = vunpack.c.l.b16 %v2217
    %v2235 = vunpack.c.h.b16 %v2217
    %v2236 = vunpack.c.l.b16 %v2218
    %v2237 = vunpack.c.h.b16 %v2218
    %v2238 = vunpack.c.l.b16 %v2219
    %v2239 = vunpack.c.h.b16 %v2219
    %v2240 = vunpack.c.l.b16 %v2220
    %v2241 = vunpack.c.h.b16 %v2220
    %v2242 = vunpack.c.l.b16 %v2221
    %v2243 = vunpack.c.h.b16 %v2221
    %v2244 = vunpack.c.l.b16 %v2222
    %v2245 = vunpack.c.h.b16 %v2222
    %v2246 = vunpack.c.l.b16 %v2223
    %v2247 = vunpack.c.h.b16 %v2223
    %v2248 = vpack.c.b16 %v2234, %v2232
    %v2249 = vpack.c.b16 %v2235, %v2233
    %v2250 = vpack.c.b16 %v2238, %v2236
    %v2251 = vpack.c.b16 %v2239, %v2237
    %v2252 = vpack.c.b16 %v2242, %v2240
    %v2253 = vpack.c.b16 %v2243, %v2241
    %v2254 = vpack.c.b16 %v2246, %v2244
    %v2255 = vpack.c.b16 %v2247, %v2245
    %v2261 = vsel %vm424, %v2249, 0
    %v2264 = vsel %vm424, %v2251, 0
    %v2267 = vsel %vm424, %v2253, 0
    %v2270 = vsel %vm424, %v2255, 0
    %2272 = vmatprep.subr.bf16.mxu0 0
    %2273 = vmatpush1.bf16.msra.mxu0 %v369
    %2274 = vmatprep.subr.bf16.mxu0 0
    %2275 = vmatpush1.bf16.msra.mxu0 %v370
    %2276 = vmatprep.subr.bf16.mxu0 0
    %2277 = vmatpush1.bf16.msra.mxu0 %v371
    %2278 = vmatprep.subr.bf16.mxu0 0
    %2279 = vmatpush1.bf16.msra.mxu0 %v372
    %2280 = vmatprep.subr.bf16.mxu0 0
    %2281 = vmatpush1.bf16.msra.mxu0 %v373
    %2282 = vmatprep.subr.bf16.mxu0 0
    %2283 = vmatpush1.bf16.msra.mxu0 %v374
    %2284 = vmatprep.subr.bf16.mxu0 0
    %2285 = vmatpush1.bf16.msra.mxu0 %v375
    %2286 = vmatprep.subr.bf16.mxu0 0
    %2287 = vmatpush1.bf16.msra.mxu0 %v376
    %2288 = vmatprep.subr.bf16.mxu0 0
    %2289 = vmatpush1.bf16.msra.mxu0 %v377
    %2290 = vmatprep.subr.bf16.mxu0 0
    %2291 = vmatpush1.bf16.msra.mxu0 %v378
    %2292 = vmatprep.subr.bf16.mxu0 0
    %2293 = vmatpush1.bf16.msra.mxu0 %v439
    %2294 = vmatprep.subr.bf16.mxu0 0
    %2295 = vmatpush1.bf16.msra.mxu0 0
    %2296 = vmatprep.subr.bf16.mxu0 0
    %2297 = vmatpush1.bf16.msra.mxu0 0
    %2298 = vmatprep.subr.bf16.mxu0 0
    %2299 = vmatpush1.bf16.msra.mxu0 0
    %2300 = vmatprep.subr.bf16.mxu0 0
    %2301 = vmatpush1.bf16.msra.mxu0 0
    %2302 = vmatprep.subr.bf16.mxu0 0
    %2303 = vmatpush1.bf16.msra.mxu0 0
    %2304 = vmatprep.mubr.bf16.mxu0 %v2261
    %2305 = vmatmul.mubr.bf16.gmra.mrb[0].mxu0 %v2248
    %v2306 = vpop.f32.mrb[0].mxu0
    %v2307 = vadd.f32 0.0, %v2306
    %v2308 = vpop.f32.mrb[0].mxu0
    %v2309 = vpop.f32.mrb[0].mxu0
    %v2310 = vadd.f32 0.0, %v2309
    %v2311 = vpop.f32.mrb[0].mxu0
    %2312 = vmatprep.mubr.bf16.mxu0 %v2264
    %2313 = vmatmul.mubr.bf16.gmra.mrb[0].mxu0 %v2250
    %v2314 = vpop.f32.mrb[0].mxu0
    %v2315 = vadd.f32 0.0, %v2314
    %v2316 = vpop.f32.mrb[0].mxu0
    %v2317 = vpop.f32.mrb[0].mxu0
    %v2318 = vadd.f32 0.0, %v2317
    %v2319 = vpop.f32.mrb[0].mxu0
    %2320 = vmatprep.mubr.bf16.mxu0 %v2267
    %2321 = vmatmul.mubr.bf16.gmra.mrb[0].mxu0 %v2252
    %v2322 = vpop.f32.mrb[0].mxu0
    %v2323 = vadd.f32 0.0, %v2322
    %v2324 = vpop.f32.mrb[0].mxu0
    %v2325 = vpop.f32.mrb[0].mxu0
    %v2326 = vadd.f32 0.0, %v2325
    %v2327 = vpop.f32.mrb[0].mxu0
    %2328 = vmatprep.mubr.bf16.mxu0 %v2270
    %2329 = vmatmul.mubr.bf16.gmra.mrb[0].mxu0 %v2254
    %v2330 = vpop.f32.mrb[0].mxu0
    %v2331 = vadd.f32 0.0, %v2330
    %v2332 = vpop.f32.mrb[0].mxu0
    %v2333 = vpop.f32.mrb[0].mxu0
    %v2334 = vadd.f32 0.0, %v2333
    %v2335 = vpop.f32.mrb[0].mxu0
    %2336 = vdwg.mxu0
    %v2337 = vpack.c.bf16 %v2310, %v2307
    %v2338 = vpack.c.bf16 %v2318, %v2315
    %v2339 = vpack.c.bf16 %v2326, %v2323
    %v2340 = vpack.c.bf16 %v2334, %v2331
    %s2341 = scalar_lea.vmem %s6, 448
    %v2342 = vld [vmem:[%s2341] sm:$0xf]
    %v2343 = vld [vmem:[%s2341 + $0x4] sm:$0xf]
    %v2344 = vld [vmem:[%s2341 + $0x8] sm:$0xf]
    %v2345 = vld [vmem:[%s2341 + $0xc] sm:$0xf]
    %v2346 = vld [vmem:[%s2341 + $0x10] sm:$0xf]
    %v2347 = vld [vmem:[%s2341 + $0x14] sm:$0xf]
    %v2348 = vld [vmem:[%s2341 + $0x18] sm:$0xf]
    %v2349 = vld [vmem:[%s2341 + $0x1c] sm:$0xf]
    %v2350 = vld [vmem:[%s2341 + $0x20] sm:$0xf]
    %v2351 = vld [vmem:[%s2341 + $0x24] sm:$0xf]
    %v2352 = vld [vmem:[%s2341 + $0x28] sm:$0xf]
    %v2353 = vld [vmem:[%s2341 + $0x2c] sm:$0xf]
    %v2354 = vld [vmem:[%s2341 + $0x30] sm:$0xf]
    %v2355 = vld [vmem:[%s2341 + $0x34] sm:$0xf]
    %v2356 = vld [vmem:[%s2341 + $0x38] sm:$0xf]
    %v2357 = vld [vmem:[%s2341 + $0x3c] sm:$0xf]
    %v2374 = vunpack.c.l.b16 %v2342
    %v2375 = vunpack.c.l.b16 %v2343
    %v2376 = vunpack.c.l.b16 %v2344
    %v2377 = vunpack.c.l.b16 %v2345
    %v2378 = vunpack.c.l.b16 %v2346
    %v2379 = vunpack.c.l.b16 %v2347
    %v2380 = vunpack.c.l.b16 %v2348
    %v2381 = vunpack.c.l.b16 %v2349
    %v2382 = vunpack.c.l.b16 %v2350
    %v2383 = vunpack.c.l.b16 %v2351
    %v2384 = vunpack.c.l.b16 %v2352
    %v2385 = vunpack.c.l.b16 %v2353
    %v2386 = vunpack.c.l.b16 %v2354
    %v2387 = vunpack.c.l.b16 %v2355
    %v2388 = vunpack.c.l.b16 %v2356
    %v2389 = vunpack.c.l.b16 %v2357
    %v2390 = vpack.c.b16 %v2375, %v2374
    %v2391 = vpack.c.b16 %v2377, %v2376
    %v2392 = vpack.c.b16 %v2379, %v2378
    %v2393 = vpack.c.b16 %v2381, %v2380
    %v2394 = vpack.c.b16 %v2383, %v2382
    %v2395 = vpack.c.b16 %v2385, %v2384
    %v2396 = vpack.c.b16 %v2387, %v2386
    %v2397 = vpack.c.b16 %v2389, %v2388
    %2406 = vmatprep.subr.bf16.mxu0 0
    %2407 = vmatpush1.bf16.msra.mxu0 %v2390
    %2408 = vmatprep.subr.bf16.mxu0 0
    %2409 = vmatpush1.bf16.msra.mxu0 %v2391
    %2410 = vmatprep.subr.bf16.mxu0 0
    %2411 = vmatpush1.bf16.msra.mxu0 %v2392
    %2412 = vmatprep.subr.bf16.mxu0 0
    %2413 = vmatpush1.bf16.msra.mxu0 %v2393
    %2414 = vmatprep.subr.bf16.mxu0 0
    %2415 = vmatpush1.bf16.msra.mxu0 %v2394
    %2416 = vmatprep.subr.bf16.mxu0 0
    %2417 = vmatpush1.bf16.msra.mxu0 %v2395
    %2418 = vmatprep.subr.bf16.mxu0 0
    %2419 = vmatpush1.bf16.msra.mxu0 %v2396
    %2420 = vmatprep.subr.bf16.mxu0 0
    %2421 = vmatpush1.bf16.msra.mxu0 %v2397
    %2422 = vmatprep.subr.bf16.mxu0 0
    %2423 = vmatpush1.bf16.msra.mxu0 0
    %2424 = vmatprep.subr.bf16.mxu0 0
    %2425 = vmatpush1.bf16.msra.mxu0 0
    %2426 = vmatprep.subr.bf16.mxu0 0
    %2427 = vmatpush1.bf16.msra.mxu0 0
    %2428 = vmatprep.subr.bf16.mxu0 0
    %2429 = vmatpush1.bf16.msra.mxu0 0
    %2430 = vmatprep.subr.bf16.mxu0 0
    %2431 = vmatpush1.bf16.msra.mxu0 0
    %2432 = vmatprep.subr.bf16.mxu0 0
    %2433 = vmatpush1.bf16.msra.mxu0 0
    %2434 = vmatprep.subr.bf16.mxu0 0
    %2435 = vmatpush1.bf16.msra.mxu0 0
    %2436 = vmatprep.subr.bf16.mxu0 0
    %2437 = vmatpush1.bf16.msra.mxu0 0
    %2438 = vmatprep.mubr.bf16.mxu0 0
    %2439 = vmatmul.mubr.bf16.gmra.mrb[0].mxu0 %v2337
    %v2440 = vpop.f32.mrb[0].mxu0
    %v2441 = vadd.f32 0.0, %v2440
    %v2442 = vpop.f32.mrb[0].mxu0
    %v2443 = vpop.f32.mrb[0].mxu0
    %v2444 = vadd.f32 0.0, %v2443
    %v2445 = vpop.f32.mrb[0].mxu0
    %2446 = vmatprep.mubr.bf16.mxu0 0
    %2447 = vmatmul.mubr.bf16.gmra.mrb[0].mxu0 %v2338
    %v2448 = vpop.f32.mrb[0].mxu0
    %v2449 = vadd.f32 0.0, %v2448
    %v2450 = vpop.f32.mrb[0].mxu0
    %v2451 = vpop.f32.mrb[0].mxu0
    %v2452 = vadd.f32 0.0, %v2451
    %v2453 = vpop.f32.mrb[0].mxu0
    %2454 = vmatprep.mubr.bf16.mxu0 0
    %2455 = vmatmul.mubr.bf16.gmra.mrb[0].mxu0 %v2339
    %v2456 = vpop.f32.mrb[0].mxu0
    %v2457 = vadd.f32 0.0, %v2456
    %v2458 = vpop.f32.mrb[0].mxu0
    %v2459 = vpop.f32.mrb[0].mxu0
    %v2460 = vadd.f32 0.0, %v2459
    %v2461 = vpop.f32.mrb[0].mxu0
    %2462 = vmatprep.mubr.bf16.mxu0 0
    %2463 = vmatmul.mubr.bf16.gmra.mrb[0].mxu0 %v2340
    %v2464 = vpop.f32.mrb[0].mxu0
    %v2465 = vadd.f32 0.0, %v2464
    %v2466 = vpop.f32.mrb[0].mxu0
    %v2467 = vpop.f32.mrb[0].mxu0
    %v2468 = vadd.f32 0.0, %v2467
    %v2469 = vpop.f32.mrb[0].mxu0
    %2470 = vdwg.mxu0
    %v2471 = vadd.f32 %v2207, %v2441
    %v2472 = vadd.f32 %v2208, %v2444
    %v2473 = vadd.f32 %v2209, %v2449
    %v2474 = vadd.f32 %v2210, %v2452
    %v2475 = vadd.f32 %v2211, %v2457
    %v2476 = vadd.f32 %v2212, %v2460
    %v2477 = vadd.f32 %v2213, %v2465
    %v2478 = vadd.f32 %v2214, %v2468
    %s2479 = scalar_lea.vmem %s5, 512
    %v2480 = vld [vmem:[%s2479] sm:$0xff]
    %v2481 = vld [vmem:[%s2479 + $0x8] sm:$0xff]
    %v2482 = vld [vmem:[%s2479 + $0x10] sm:$0xff]
    %v2483 = vld [vmem:[%s2479 + $0x18] sm:$0xff]
    %v2484 = vld [vmem:[%s2479 + $0x20] sm:$0xff]
    %v2485 = vld [vmem:[%s2479 + $0x28] sm:$0xff]
    %v2486 = vld [vmem:[%s2479 + $0x30] sm:$0xff]
    %v2487 = vld [vmem:[%s2479 + $0x38] sm:$0xff]
    %v2496 = vunpack.c.l.b16 %v2480
    %v2497 = vunpack.c.h.b16 %v2480
    %v2498 = vunpack.c.l.b16 %v2481
    %v2499 = vunpack.c.h.b16 %v2481
    %v2500 = vunpack.c.l.b16 %v2482
    %v2501 = vunpack.c.h.b16 %v2482
    %v2502 = vunpack.c.l.b16 %v2483
    %v2503 = vunpack.c.h.b16 %v2483
    %v2504 = vunpack.c.l.b16 %v2484
    %v2505 = vunpack.c.h.b16 %v2484
    %v2506 = vunpack.c.l.b16 %v2485
    %v2507 = vunpack.c.h.b16 %v2485
    %v2508 = vunpack.c.l.b16 %v2486
    %v2509 = vunpack.c.h.b16 %v2486
    %v2510 = vunpack.c.l.b16 %v2487
    %v2511 = vunpack.c.h.b16 %v2487
    %v2512 = vpack.c.b16 %v2498, %v2496
    %v2513 = vpack.c.b16 %v2499, %v2497
    %v2514 = vpack.c.b16 %v2502, %v2500
    %v2515 = vpack.c.b16 %v2503, %v2501
    %v2516 = vpack.c.b16 %v2506, %v2504
    %v2517 = vpack.c.b16 %v2507, %v2505
    %v2518 = vpack.c.b16 %v2510, %v2508
    %v2519 = vpack.c.b16 %v2511, %v2509
    %v2525 = vsel %vm424, %v2513, 0
    %v2528 = vsel %vm424, %v2515, 0
    %v2531 = vsel %vm424, %v2517, 0
    %v2534 = vsel %vm424, %v2519, 0
    %2536 = vmatprep.subr.bf16.mxu0 0
    %2537 = vmatpush1.bf16.msra.mxu0 %v369
    %2538 = vmatprep.subr.bf16.mxu0 0
    %2539 = vmatpush1.bf16.msra.mxu0 %v370
    %2540 = vmatprep.subr.bf16.mxu0 0
    %2541 = vmatpush1.bf16.msra.mxu0 %v371
    %2542 = vmatprep.subr.bf16.mxu0 0
    %2543 = vmatpush1.bf16.msra.mxu0 %v372
    %2544 = vmatprep.subr.bf16.mxu0 0
    %2545 = vmatpush1.bf16.msra.mxu0 %v373
    %2546 = vmatprep.subr.bf16.mxu0 0
    %2547 = vmatpush1.bf16.msra.mxu0 %v374
    %2548 = vmatprep.subr.bf16.mxu0 0
    %2549 = vmatpush1.bf16.msra.mxu0 %v375
    %2550 = vmatprep.subr.bf16.mxu0 0
    %2551 = vmatpush1.bf16.msra.mxu0 %v376
    %2552 = vmatprep.subr.bf16.mxu0 0
    %2553 = vmatpush1.bf16.msra.mxu0 %v377
    %2554 = vmatprep.subr.bf16.mxu0 0
    %2555 = vmatpush1.bf16.msra.mxu0 %v378
    %2556 = vmatprep.subr.bf16.mxu0 0
    %2557 = vmatpush1.bf16.msra.mxu0 %v439
    %2558 = vmatprep.subr.bf16.mxu0 0
    %2559 = vmatpush1.bf16.msra.mxu0 0
    %2560 = vmatprep.subr.bf16.mxu0 0
    %2561 = vmatpush1.bf16.msra.mxu0 0
    %2562 = vmatprep.subr.bf16.mxu0 0
    %2563 = vmatpush1.bf16.msra.mxu0 0
    %2564 = vmatprep.subr.bf16.mxu0 0
    %2565 = vmatpush1.bf16.msra.mxu0 0
    %2566 = vmatprep.subr.bf16.mxu0 0
    %2567 = vmatpush1.bf16.msra.mxu0 0
    %2568 = vmatprep.mubr.bf16.mxu0 %v2525
    %2569 = vmatmul.mubr.bf16.gmra.mrb[0].mxu0 %v2512
    %v2570 = vpop.f32.mrb[0].mxu0
    %v2571 = vadd.f32 0.0, %v2570
    %v2572 = vpop.f32.mrb[0].mxu0
    %v2573 = vpop.f32.mrb[0].mxu0
    %v2574 = vadd.f32 0.0, %v2573
    %v2575 = vpop.f32.mrb[0].mxu0
    %2576 = vmatprep.mubr.bf16.mxu0 %v2528
    %2577 = vmatmul.mubr.bf16.gmra.mrb[0].mxu0 %v2514
    %v2578 = vpop.f32.mrb[0].mxu0
    %v2579 = vadd.f32 0.0, %v2578
    %v2580 = vpop.f32.mrb[0].mxu0
    %v2581 = vpop.f32.mrb[0].mxu0
    %v2582 = vadd.f32 0.0, %v2581
    %v2583 = vpop.f32.mrb[0].mxu0
    %2584 = vmatprep.mubr.bf16.mxu0 %v2531
    %2585 = vmatmul.mubr.bf16.gmra.mrb[0].mxu0 %v2516
    %v2586 = vpop.f32.mrb[0].mxu0
    %v2587 = vadd.f32 0.0, %v2586
    %v2588 = vpop.f32.mrb[0].mxu0
    %v2589 = vpop.f32.mrb[0].mxu0
    %v2590 = vadd.f32 0.0, %v2589
    %v2591 = vpop.f32.mrb[0].mxu0
    %2592 = vmatprep.mubr.bf16.mxu0 %v2534
    %2593 = vmatmul.mubr.bf16.gmra.mrb[0].mxu0 %v2518
    %v2594 = vpop.f32.mrb[0].mxu0
    %v2595 = vadd.f32 0.0, %v2594
    %v2596 = vpop.f32.mrb[0].mxu0
    %v2597 = vpop.f32.mrb[0].mxu0
    %v2598 = vadd.f32 0.0, %v2597
    %v2599 = vpop.f32.mrb[0].mxu0
    %2600 = vdwg.mxu0
    %v2601 = vpack.c.bf16 %v2574, %v2571
    %v2602 = vpack.c.bf16 %v2582, %v2579
    %v2603 = vpack.c.bf16 %v2590, %v2587
    %v2604 = vpack.c.bf16 %v2598, %v2595
    %s2605 = scalar_lea.vmem %s6, 512
    %v2606 = vld [vmem:[%s2605] sm:$0xf]
    %v2607 = vld [vmem:[%s2605 + $0x4] sm:$0xf]
    %v2608 = vld [vmem:[%s2605 + $0x8] sm:$0xf]
    %v2609 = vld [vmem:[%s2605 + $0xc] sm:$0xf]
    %v2610 = vld [vmem:[%s2605 + $0x10] sm:$0xf]
    %v2611 = vld [vmem:[%s2605 + $0x14] sm:$0xf]
    %v2612 = vld [vmem:[%s2605 + $0x18] sm:$0xf]
    %v2613 = vld [vmem:[%s2605 + $0x1c] sm:$0xf]
    %v2614 = vld [vmem:[%s2605 + $0x20] sm:$0xf]
    %v2615 = vld [vmem:[%s2605 + $0x24] sm:$0xf]
    %v2616 = vld [vmem:[%s2605 + $0x28] sm:$0xf]
    %v2617 = vld [vmem:[%s2605 + $0x2c] sm:$0xf]
    %v2618 = vld [vmem:[%s2605 + $0x30] sm:$0xf]
    %v2619 = vld [vmem:[%s2605 + $0x34] sm:$0xf]
    %v2620 = vld [vmem:[%s2605 + $0x38] sm:$0xf]
    %v2621 = vld [vmem:[%s2605 + $0x3c] sm:$0xf]
    %v2638 = vunpack.c.l.b16 %v2606
    %v2639 = vunpack.c.l.b16 %v2607
    %v2640 = vunpack.c.l.b16 %v2608
    %v2641 = vunpack.c.l.b16 %v2609
    %v2642 = vunpack.c.l.b16 %v2610
    %v2643 = vunpack.c.l.b16 %v2611
    %v2644 = vunpack.c.l.b16 %v2612
    %v2645 = vunpack.c.l.b16 %v2613
    %v2646 = vunpack.c.l.b16 %v2614
    %v2647 = vunpack.c.l.b16 %v2615
    %v2648 = vunpack.c.l.b16 %v2616
    %v2649 = vunpack.c.l.b16 %v2617
    %v2650 = vunpack.c.l.b16 %v2618
    %v2651 = vunpack.c.l.b16 %v2619
    %v2652 = vunpack.c.l.b16 %v2620
    %v2653 = vunpack.c.l.b16 %v2621
    %v2654 = vpack.c.b16 %v2639, %v2638
    %v2655 = vpack.c.b16 %v2641, %v2640
    %v2656 = vpack.c.b16 %v2643, %v2642
    %v2657 = vpack.c.b16 %v2645, %v2644
    %v2658 = vpack.c.b16 %v2647, %v2646
    %v2659 = vpack.c.b16 %v2649, %v2648
    %v2660 = vpack.c.b16 %v2651, %v2650
    %v2661 = vpack.c.b16 %v2653, %v2652
    %2670 = vmatprep.subr.bf16.mxu0 0
    %2671 = vmatpush1.bf16.msra.mxu0 %v2654
    %2672 = vmatprep.subr.bf16.mxu0 0
    %2673 = vmatpush1.bf16.msra.mxu0 %v2655
    %2674 = vmatprep.subr.bf16.mxu0 0
    %2675 = vmatpush1.bf16.msra.mxu0 %v2656
    %2676 = vmatprep.subr.bf16.mxu0 0
    %2677 = vmatpush1.bf16.msra.mxu0 %v2657
    %2678 = vmatprep.subr.bf16.mxu0 0
    %2679 = vmatpush1.bf16.msra.mxu0 %v2658
    %2680 = vmatprep.subr.bf16.mxu0 0
    %2681 = vmatpush1.bf16.msra.mxu0 %v2659
    %2682 = vmatprep.subr.bf16.mxu0 0
    %2683 = vmatpush1.bf16.msra.mxu0 %v2660
    %2684 = vmatprep.subr.bf16.mxu0 0
    %2685 = vmatpush1.bf16.msra.mxu0 %v2661
    %2686 = vmatprep.subr.bf16.mxu0 0
    %2687 = vmatpush1.bf16.msra.mxu0 0
    %2688 = vmatprep.subr.bf16.mxu0 0
    %2689 = vmatpush1.bf16.msra.mxu0 0
    %2690 = vmatprep.subr.bf16.mxu0 0
    %2691 = vmatpush1.bf16.msra.mxu0 0
    %2692 = vmatprep.subr.bf16.mxu0 0
    %2693 = vmatpush1.bf16.msra.mxu0 0
    %2694 = vmatprep.subr.bf16.mxu0 0
    %2695 = vmatpush1.bf16.msra.mxu0 0
    %2696 = vmatprep.subr.bf16.mxu0 0
    %2697 = vmatpush1.bf16.msra.mxu0 0
    %2698 = vmatprep.subr.bf16.mxu0 0
    %2699 = vmatpush1.bf16.msra.mxu0 0
    %2700 = vmatprep.subr.bf16.mxu0 0
    %2701 = vmatpush1.bf16.msra.mxu0 0
    %2702 = vmatprep.mubr.bf16.mxu0 0
    %2703 = vmatmul.mubr.bf16.gmra.mrb[0].mxu0 %v2601
    %v2704 = vpop.f32.mrb[0].mxu0
    %v2705 = vadd.f32 0.0, %v2704
    %v2706 = vpop.f32.mrb[0].mxu0
    %v2707 = vpop.f32.mrb[0].mxu0
    %v2708 = vadd.f32 0.0, %v2707
    %v2709 = vpop.f32.mrb[0].mxu0
    %2710 = vmatprep.mubr.bf16.mxu0 0
    %2711 = vmatmul.mubr.bf16.gmra.mrb[0].mxu0 %v2602
    %v2712 = vpop.f32.mrb[0].mxu0
    %v2713 = vadd.f32 0.0, %v2712
    %v2714 = vpop.f32.mrb[0].mxu0
    %v2715 = vpop.f32.mrb[0].mxu0
    %v2716 = vadd.f32 0.0, %v2715
    %v2717 = vpop.f32.mrb[0].mxu0
    %2718 = vmatprep.mubr.bf16.mxu0 0
    %2719 = vmatmul.mubr.bf16.gmra.mrb[0].mxu0 %v2603
    %v2720 = vpop.f32.mrb[0].mxu0
    %v2721 = vadd.f32 0.0, %v2720
    %v2722 = vpop.f32.mrb[0].mxu0
    %v2723 = vpop.f32.mrb[0].mxu0
    %v2724 = vadd.f32 0.0, %v2723
    %v2725 = vpop.f32.mrb[0].mxu0
    %2726 = vmatprep.mubr.bf16.mxu0 0
    %2727 = vmatmul.mubr.bf16.gmra.mrb[0].mxu0 %v2604
    %v2728 = vpop.f32.mrb[0].mxu0
    %v2729 = vadd.f32 0.0, %v2728
    %v2730 = vpop.f32.mrb[0].mxu0
    %v2731 = vpop.f32.mrb[0].mxu0
    %v2732 = vadd.f32 0.0, %v2731
    %v2733 = vpop.f32.mrb[0].mxu0
    %2734 = vdwg.mxu0
    %v2735 = vadd.f32 %v2471, %v2705
    %v2736 = vadd.f32 %v2472, %v2708
    %v2737 = vadd.f32 %v2473, %v2713
    %v2738 = vadd.f32 %v2474, %v2716
    %v2739 = vadd.f32 %v2475, %v2721
    %v2740 = vadd.f32 %v2476, %v2724
    %v2741 = vadd.f32 %v2477, %v2729
    %v2742 = vadd.f32 %v2478, %v2732
    %v2743 = vld [vmem:[%s7] sm:$0x1]
    %v2745 = vlaneseq
    %v2746 = vshrl.u32 %v2745, 7
    %v2747 = vsub.s32 0, %v2746
    %v2748 = vrot.slane %v2743, %v2747
    %v2750 = vadd.f32 %v2735, %v2748
    %v2751 = vadd.f32 %v2736, %v2748
    %v2752 = vadd.f32 %v2737, %v2748
    %v2753 = vadd.f32 %v2738, %v2748
    %v2754 = vadd.f32 %v2739, %v2748
    %v2755 = vadd.f32 %v2740, %v2748
    %v2756 = vadd.f32 %v2741, %v2748
    %v2757 = vadd.f32 %v2742, %v2748
    %v2758 = vmax.f32 %v2750, 0.0
    %v2759 = vmax.f32 %v2751, 0.0
    %v2760 = vmax.f32 %v2752, 0.0
    %v2761 = vmax.f32 %v2753, 0.0
    %v2762 = vmax.f32 %v2754, 0.0
    %v2763 = vmax.f32 %v2755, 0.0
    %v2764 = vmax.f32 %v2756, 0.0
    %v2765 = vmax.f32 %v2757, 0.0
    %v2766 = vlaneseq
    %v2767 = vshrl.u32 %v2766, 7
    %v2768 = vadd.s32 %v2767, 8
    %v2769 = vadd.s32 %v2767, 16
    %v2770 = vadd.s32 %v2767, 24
    %vm2771 = vcmp.lt.s32.totalorder %v2767, 25
    %vm2772 = vcmp.lt.s32.totalorder %v2768, 25
    %vm2773 = vcmp.lt.s32.totalorder %v2769, 25
    %vm2774 = vcmp.lt.s32.totalorder %v2770, 25
    %v2775 = vsel %vm2771, %v2758, 0.0
    %v2776 = vsel %vm2772, %v2759, 0.0
    %v2777 = vsel %vm2773, %v2760, 0.0
    %v2778 = vsel %vm2774, %v2761, 0.0
    %v2779 = vsel %vm2771, %v2762, 0.0
    %v2780 = vsel %vm2772, %v2763, 0.0
    %v2781 = vsel %vm2773, %v2764, 0.0
    %v2782 = vsel %vm2774, %v2765, 0.0
    %v2783 = vmax.f32 %v2775, %v2777
    %v2784 = vmax.f32 %v2776, %v2778
    %v2785 = vmax.f32 %v2783, %v2784
    %v2786 = vrot.slane %v2785, 4
    %v2787 = vmax.f32 %v2785, %v2786
    %v2788 = vrot.slane %v2787, 2
    %v2789 = vmax.f32 %v2787, %v2788
    %v2790 = vrot.slane %v2789, 1
    %v2791 = vmax.f32 %v2789, %v2790
    %v2792 = vmax.f32 %v2779, %v2781
    %v2793 = vmax.f32 %v2780, %v2782
    %v2794 = vmax.f32 %v2792, %v2793
    %v2795 = vrot.slane %v2794, 4
    %v2796 = vmax.f32 %v2794, %v2795
    %v2797 = vrot.slane %v2796, 2
    %v2798 = vmax.f32 %v2796, %v2797
    %v2799 = vrot.slane %v2798, 1
    %v2800 = vmax.f32 %v2798, %v2799
    %v2801 = vld [vmem:[%s8] sm:$0x1]
    %v2803 = vlaneseq
    %v2804 = vshrl.u32 %v2803, 7
    %v2805 = vsub.s32 0, %v2804
    %v2806 = vrot.slane %v2801, %v2805
    %v2808 = vmul.f32 %v2791, %v2806
    %v2809 = vmul.f32 %v2800, %v2806
    %v2810 = vld [vmem:[%s9] sm:$0x1]
    %v2812 = vlaneseq
    %v2813 = vshrl.u32 %v2812, 7
    %v2814 = vsub.s32 0, %v2813
    %v2815 = vrot.slane %v2810, %v2814
    %v2817 = vadd.f32 %v2808, %v2815
    %v2818 = vadd.f32 %v2809, %v2815
    %v2819 = vpack.c.bf16 %v2817, %v2817
    %v2820 = vpack.c.bf16 %v2818, %v2818
    %v2821 = vld [vmem:[%s10] sm:$0xf]
    %v2822 = vld [vmem:[%s10 + $0x4] sm:$0xf]
    %v2823 = vld [vmem:[%s10 + $0x8] sm:$0xf]
    %v2824 = vld [vmem:[%s10 + $0xc] sm:$0xf]
    %v2825 = vld [vmem:[%s10 + $0x10] sm:$0xf]
    %v2826 = vld [vmem:[%s10 + $0x14] sm:$0xf]
    %v2827 = vld [vmem:[%s10 + $0x18] sm:$0xf]
    %v2828 = vld [vmem:[%s10 + $0x1c] sm:$0xf]
    %v2829 = vld [vmem:[%s10 + $0x20] sm:$0xf]
    %v2830 = vld [vmem:[%s10 + $0x24] sm:$0xf]
    %v2831 = vld [vmem:[%s10 + $0x28] sm:$0xf]
    %v2832 = vld [vmem:[%s10 + $0x2c] sm:$0xf]
    %v2833 = vld [vmem:[%s10 + $0x30] sm:$0xf]
    %v2834 = vld [vmem:[%s10 + $0x34] sm:$0xf]
    %v2835 = vld [vmem:[%s10 + $0x38] sm:$0xf]
    %v2836 = vld [vmem:[%s10 + $0x3c] sm:$0xf]
    %v2837 = vld [vmem:[%s11] sm:$0x1]
    %v2839 = vlaneseq
    %v2840 = vshrl.u32 %v2839, 7
    %v2841 = vsub.s32 0, %v2840
    %v2842 = vrot.slane %v2837, %v2841
    %v2846 = vunpack.c.l.b16 %v2819
    %v2847 = vunpack.c.l.b16 %v2820
    %v2848 = vrot.slane %v2847, 7
    %vm2849 = vcmask 1041409
    %v2850 = vsel %vm2849, %v2848, %v2846
    %v2851 = vpack.c.b16 %v2850, %v2850
    %v2869 = vunpack.c.l.b16 %v2821
    %v2870 = vunpack.c.l.b16 %v2822
    %v2871 = vunpack.c.l.b16 %v2823
    %v2872 = vunpack.c.l.b16 %v2824
    %v2873 = vunpack.c.l.b16 %v2825
    %v2874 = vunpack.c.l.b16 %v2826
    %v2875 = vunpack.c.l.b16 %v2827
    %v2876 = vunpack.c.l.b16 %v2828
    %v2877 = vunpack.c.l.b16 %v2829
    %v2878 = vunpack.c.l.b16 %v2830
    %v2879 = vunpack.c.l.b16 %v2831
    %v2880 = vunpack.c.l.b16 %v2832
    %v2881 = vunpack.c.l.b16 %v2833
    %v2882 = vunpack.c.l.b16 %v2834
    %v2883 = vunpack.c.l.b16 %v2835
    %v2884 = vunpack.c.l.b16 %v2836
    %v2885 = vpack.c.b16 %v2870, %v2869
    %v2886 = vpack.c.b16 %v2872, %v2871
    %v2887 = vpack.c.b16 %v2874, %v2873
    %v2888 = vpack.c.b16 %v2876, %v2875
    %v2889 = vpack.c.b16 %v2878, %v2877
    %v2890 = vpack.c.b16 %v2880, %v2879
    %v2891 = vpack.c.b16 %v2882, %v2881
    %v2892 = vpack.c.b16 %v2884, %v2883
    %2901 = vmatprep.subr.bf16.mxu0 0
    %2902 = vmatpush1.bf16.msra.mxu0 %v2885
    %2903 = vmatprep.subr.bf16.mxu0 0
    %2904 = vmatpush1.bf16.msra.mxu0 %v2886
    %2905 = vmatprep.subr.bf16.mxu0 0
    %2906 = vmatpush1.bf16.msra.mxu0 %v2887
    %2907 = vmatprep.subr.bf16.mxu0 0
    %2908 = vmatpush1.bf16.msra.mxu0 %v2888
    %2909 = vmatprep.subr.bf16.mxu0 0
    %2910 = vmatpush1.bf16.msra.mxu0 %v2889
    %2911 = vmatprep.subr.bf16.mxu0 0
    %2912 = vmatpush1.bf16.msra.mxu0 %v2890
    %2913 = vmatprep.subr.bf16.mxu0 0
    %2914 = vmatpush1.bf16.msra.mxu0 %v2891
    %2915 = vmatprep.subr.bf16.mxu0 0
    %2916 = vmatpush1.bf16.msra.mxu0 %v2892
    %2917 = vmatprep.subr.bf16.mxu0 0
    %2918 = vmatpush1.bf16.msra.mxu0 0
    %2919 = vmatprep.subr.bf16.mxu0 0
    %2920 = vmatpush1.bf16.msra.mxu0 0
    %2921 = vmatprep.subr.bf16.mxu0 0
    %2922 = vmatpush1.bf16.msra.mxu0 0
    %2923 = vmatprep.subr.bf16.mxu0 0
    %2924 = vmatpush1.bf16.msra.mxu0 0
    %2925 = vmatprep.subr.bf16.mxu0 0
    %2926 = vmatpush1.bf16.msra.mxu0 0
    %2927 = vmatprep.subr.bf16.mxu0 0
    %2928 = vmatpush1.bf16.msra.mxu0 0
    %2929 = vmatprep.subr.bf16.mxu0 0
    %2930 = vmatpush1.bf16.msra.mxu0 0
    %2931 = vmatprep.subr.bf16.mxu0 0
    %2932 = vmatpush1.bf16.msra.mxu0 0
    %2933 = vmatprep.mubr.bf16.mxu0 0
    %2934 = vmatmul.mubr.bf16.gmra.mrb[0].mxu0 %v2851
    %v2935 = vpop.f32.mrb[0].mxu0
    %v2936 = vadd.f32 %v2842, %v2935
    %v2937 = vpop.f32.mrb[0].mxu0
    %v2938 = vpop.f32.mrb[0].mxu0
    %v2939 = vpop.f32.mrb[0].mxu0
    %2940 = vdwg.mxu0
    %v2941 = vmax.f32 %v2936, 0.0
    %v2942 = vpack.c.bf16 %v2941, %v2941
    %v2943 = vld [vmem:[%s12] sm:$0xf]
    %v2944 = vld [vmem:[%s12 + $0x4] sm:$0xf]
    %v2945 = vld [vmem:[%s12 + $0x8] sm:$0xf]
    %v2946 = vld [vmem:[%s12 + $0xc] sm:$0xf]
    %v2947 = vld [vmem:[%s12 + $0x10] sm:$0xf]
    %v2948 = vld [vmem:[%s12 + $0x14] sm:$0xf]
    %v2949 = vld [vmem:[%s12 + $0x18] sm:$0xf]
    %v2950 = vld [vmem:[%s12 + $0x1c] sm:$0xf]
    %v2951 = vld [vmem:[%s12 + $0x20] sm:$0xf]
    %v2952 = vld [vmem:[%s12 + $0x24] sm:$0xf]
    %v2953 = vld [vmem:[%s12 + $0x28] sm:$0xf]
    %v2954 = vld [vmem:[%s12 + $0x2c] sm:$0xf]
    %v2955 = vld [vmem:[%s12 + $0x30] sm:$0xf]
    %v2956 = vld [vmem:[%s12 + $0x34] sm:$0xf]
    %v2957 = vld [vmem:[%s12 + $0x38] sm:$0xf]
    %v2958 = vld [vmem:[%s12 + $0x3c] sm:$0xf]
    %v2959 = vld [vmem:[%s13] sm:$0x1]
    %v2961 = vlaneseq
    %v2962 = vshrl.u32 %v2961, 7
    %v2963 = vsub.s32 0, %v2962
    %v2964 = vrot.slane %v2959, %v2963
    %v2982 = vunpack.c.l.b16 %v2943
    %v2983 = vunpack.c.l.b16 %v2944
    %v2984 = vunpack.c.l.b16 %v2945
    %v2985 = vunpack.c.l.b16 %v2946
    %v2986 = vunpack.c.l.b16 %v2947
    %v2987 = vunpack.c.l.b16 %v2948
    %v2988 = vunpack.c.l.b16 %v2949
    %v2989 = vunpack.c.l.b16 %v2950
    %v2990 = vunpack.c.l.b16 %v2951
    %v2991 = vunpack.c.l.b16 %v2952
    %v2992 = vunpack.c.l.b16 %v2953
    %v2993 = vunpack.c.l.b16 %v2954
    %v2994 = vunpack.c.l.b16 %v2955
    %v2995 = vunpack.c.l.b16 %v2956
    %v2996 = vunpack.c.l.b16 %v2957
    %v2997 = vunpack.c.l.b16 %v2958
    %v2998 = vpack.c.b16 %v2983, %v2982
    %v2999 = vpack.c.b16 %v2985, %v2984
    %v3000 = vpack.c.b16 %v2987, %v2986
    %v3001 = vpack.c.b16 %v2989, %v2988
    %v3002 = vpack.c.b16 %v2991, %v2990
    %v3003 = vpack.c.b16 %v2993, %v2992
    %v3004 = vpack.c.b16 %v2995, %v2994
    %v3005 = vpack.c.b16 %v2997, %v2996
    %3014 = vmatprep.subr.bf16.mxu0 0
    %3015 = vmatpush1.bf16.msra.mxu0 %v2998
    %3016 = vmatprep.subr.bf16.mxu0 0
    %3017 = vmatpush1.bf16.msra.mxu0 %v2999
    %3018 = vmatprep.subr.bf16.mxu0 0
    %3019 = vmatpush1.bf16.msra.mxu0 %v3000
    %3020 = vmatprep.subr.bf16.mxu0 0
    %3021 = vmatpush1.bf16.msra.mxu0 %v3001
    %3022 = vmatprep.subr.bf16.mxu0 0
    %3023 = vmatpush1.bf16.msra.mxu0 %v3002
    %3024 = vmatprep.subr.bf16.mxu0 0
    %3025 = vmatpush1.bf16.msra.mxu0 %v3003
    %3026 = vmatprep.subr.bf16.mxu0 0
    %3027 = vmatpush1.bf16.msra.mxu0 %v3004
    %3028 = vmatprep.subr.bf16.mxu0 0
    %3029 = vmatpush1.bf16.msra.mxu0 %v3005
    %3030 = vmatprep.subr.bf16.mxu0 0
    %3031 = vmatpush1.bf16.msra.mxu0 0
    %3032 = vmatprep.subr.bf16.mxu0 0
    %3033 = vmatpush1.bf16.msra.mxu0 0
    %3034 = vmatprep.subr.bf16.mxu0 0
    %3035 = vmatpush1.bf16.msra.mxu0 0
    %3036 = vmatprep.subr.bf16.mxu0 0
    %3037 = vmatpush1.bf16.msra.mxu0 0
    %3038 = vmatprep.subr.bf16.mxu0 0
    %3039 = vmatpush1.bf16.msra.mxu0 0
    %3040 = vmatprep.subr.bf16.mxu0 0
    %3041 = vmatpush1.bf16.msra.mxu0 0
    %3042 = vmatprep.subr.bf16.mxu0 0
    %3043 = vmatpush1.bf16.msra.mxu0 0
    %3044 = vmatprep.subr.bf16.mxu0 0
    %3045 = vmatpush1.bf16.msra.mxu0 0
    %3046 = vmatprep.mubr.bf16.mxu0 0
    %3047 = vmatmul.mubr.bf16.gmra.mrb[0].mxu0 %v2942
    %v3048 = vpop.f32.mrb[0].mxu0
    %v3049 = vadd.f32 %v2964, %v3048
    %v3050 = vpop.f32.mrb[0].mxu0
    %v3051 = vpop.f32.mrb[0].mxu0
    %v3052 = vpop.f32.mrb[0].mxu0
    %3053 = vdwg.mxu0
    %3054 = vst [vmem:[#allocation2] sm:$0x3] %v3049
    // Predicated region
    $region58: #{audio_classifier_forward.1} parent=1 // pred_check
      _
    $region59: #{audio_classifier_forward.1} parent=1 // pred_check_branch
      %3056 = sbr.rel (0) target = $region61
    $region60: #{audio_classifier_forward.1} parent=1 // pred_region
      %s3058 = ssub.s32 32, 32
      %3059 = vsyncadd [#allocation3], %s3058
      %s3061 = sshll.u32 [#allocation2], 4
      %s3062 = int_to_ptr.vmem [resolvable:$true] %s3061
      %3064 = dma.vmem_to_hbm [thread:$0]  %s3062, 32, %s14, [#allocation3]
    $region61: #{audio_classifier_forward.1} parent=1 // pred_fallthru
      _
    // Predicated region
    $region62: #{audio_classifier_forward.1} parent=1 // pred_check
      _
    $region63: #{audio_classifier_forward.1} parent=1 // pred_check_branch
      %3066 = sbr.rel (0) target = $region65
    $region64: #{audio_classifier_forward.1} parent=1 // pred_region
      %3067 = dma.done [#allocation3], 32
    $region65: #{audio_classifier_forward.1} parent=1 // pred_fallthru
      _
    %3068 = vsyncpa [#allocation3], 1

</llo_original>
